<compile_context>
chip_gen: v5e
topology: v5e:2x2
jax: 0.10.0
libtpu: 0.0.40
codegen_flags: <defaults>
</compile_context>

<pallas_src>
import jax
import jax.numpy as jnp
from jax.experimental import pallas as pl
from jax.experimental.pallas import tpu as pltpu

FC1, FC2, FC3 = 800, 500, 26
FC1_PAD, FC2_PAD, FC3_PAD = 896, 512, 128   # lane-dense (multiples of 128) padded widths


# ----------------------------- fused whole-network kernel -----------------------------

def make_net_kernel(n_layers, T, B, H):
    """Kernel closed over the static network structure.

    Ref order:
      x_ref                      : (T*B, D0) f32   flattened time-major input
      per layer l:
        wih_ref                  : (D_l, 8H) bf16  [fwd 4H | rev 4H], pre-transposed
        whh_ref                  : (H, 8H)  bf16   [fwd 4H | rev 4H]
        b_ref                    : (1, 8H)  f32    b_ih + b_hh per direction
      h0_ref, c0_ref             : (L, 2B, H) f32  rows 0:B fwd, B:2B rev
      b1_ref, b2_ref, b3_ref     : (1, 896)/(1, 512)/(1, 128) f32
      w1_hbm, w2_hbm, w3_hbm     : bf16 head weights in HBM (memory_space=pl.ANY)
      out_ref                    : (B, 128) f32
    scratch:
      seq_scr                    : (T*B, 2H) f32   next layer's input slab
      w1_vm, w2_vm, w3_vm        : VMEM destinations for the head-weight DMAs
      sem                        : DMA semaphores (3,)
    """

    def kernel(*refs):
        pos = 0
        x_ref = refs[pos]; pos += 1
        layer_refs = []
        for _ in range(n_layers):
            layer_refs.append(refs[pos:pos + 3]); pos += 3
        h0_ref, c0_ref = refs[pos], refs[pos + 1]; pos += 2
        b1_ref, b2_ref, b3_ref = refs[pos:pos + 3]; pos += 3
        w1_hbm, w2_hbm, w3_hbm = refs[pos:pos + 3]; pos += 3
        out_ref = refs[pos]; pos += 1
        seq_scr, w1_vm, w2_vm, w3_vm, sem = refs[pos:pos + 5]

        # Kick off the head-weight DMAs immediately so they overlap with the serial
        # LSTM recurrence (largest single input is fc2: 896x512 bf16 ~= 0.9 MB).
        cp_w1 = pltpu.make_async_copy(w1_hbm, w1_vm, sem.at[0])
        cp_w2 = pltpu.make_async_copy(w2_hbm, w2_vm, sem.at[1])
        cp_w3 = pltpu.make_async_copy(w3_hbm, w3_vm, sem.at[2])
        cp_w1.start(); cp_w2.start(); cp_w3.start()

        def lstm_cell(gates, c):
            # sigmoid(x) = 0.5*(tanh(x/2)+1): full gate block stays on tanh (EUP),
            # no exp + full-precision divide on the per-step critical path.
            sg = 0.5 * jnp.tanh(0.5 * gates) + 0.5
            th = jnp.tanh(gates)
            i_g = sg[:, 0 * H:1 * H]
            f_g = sg[:, 1 * H:2 * H]
            g_g = th[:, 2 * H:3 * H]
            o_g = sg[:, 3 * H:4 * H]
            c_new = f_g * c + i_g * g_g
            h_new = o_g * jnp.tanh(c_new)
            return h_new, c_new

        seq = x_ref[...]                                       # (T*B, D0) f32
        last = None
        for l in range(n_layers):
            wih_ref, whh_ref, b_ref = layer_refs[l]
            is_last = (l == n_layers - 1)

            # Hoisted input projection for BOTH directions in one 8H-wide bf16 matmul.
            xg = jnp.dot(seq.astype(jnp.bfloat16), wih_ref[...],
                         preferred_element_type=jnp.float32) + b_ref[...]   # (T*B, 8H)
            whh = whh_ref[...]                                              # (H, 8H) bf16

            # Pre-combined per-step gate inputs [fwd @ t | rev @ T-1-t]; independent of
            # h, so these sit off the serial critical path.
            xg_steps = [
                jnp.concatenate([xg[t * B:(t + 1) * B, 0:4 * H],
                                 xg[(T - 1 - t) * B:(T - t) * B, 4 * H:8 * H]],
                                axis=0)
                for t in range(T)
            ]

            h = h0_ref[l]                                      # (2B, H) [fwd | rev]
            c = c0_ref[l]
            rev_last = None
            for t in range(T):                                 # fully unrolled (T static)
                tr = T - 1 - t
                rec = jnp.dot(h.astype(jnp.bfloat16), whh,
                              preferred_element_type=jnp.float32)           # (2B, 8H)
                # fwd rows take cols 0:4H, rev rows take cols 4H:8H (pure sublane select).
                rec_sel = jnp.concatenate([rec[0:B, 0:4 * H],
                                           rec[B:2 * B, 4 * H:8 * H]], axis=0)
                h, c = lstm_cell(xg_steps[t] + rec_sel, c)
                if is_last:
                    if t == 0:
                        rev_last = h[B:2 * B]   # reverse output at time index T-1
                else:
                    # Scatter this step's outputs straight into the next layer's
                    # time-major input slab (vst slot; no concat tree).
                    seq_scr[t * B:(t + 1) * B, 0:H] = h[0:B]
                    seq_scr[tr * B:(tr + 1) * B, H:2 * H] = h[B:2 * B]
            if is_last:
                # out[:, -1, :] = [fwd hidden after step T-1 | rev hidden after step 0]
                last = jnp.concatenate([h[0:B], rev_last], axis=-1)          # (B, 2H)
            else:
                seq = seq_scr[...]                                           # (T*B, 2H)

        # -------- MLP head: fc -> relu -> fc2 -> relu -> fc3 (lane-dense, padded) ------
        cp_w1.wait(); cp_w2.wait(); cp_w3.wait()
        h1 = jnp.maximum(
            jnp.dot(last.astype(jnp.bfloat16), w1_vm[...],
                    preferred_element_type=jnp.float32) + b1_ref[...], 0.0)
        h2 = jnp.maximum(
            jnp.dot(h1.astype(jnp.bfloat16), w2_vm[...],
                    preferred_element_type=jnp.float32) + b2_ref[...], 0.0)
        out_ref[...] = (
            jnp.dot(h2.astype(jnp.bfloat16), w3_vm[...],
                    preferred_element_type=jnp.float32) + b3_ref[...])

    return kernel


# ----------------------------- wrapper -----------------------------

_VMEM = pl.BlockSpec(memory_space=pltpu.MemorySpace.VMEM)
_ANY = pl.BlockSpec(memory_space=pl.ANY)


@jax.jit
def net_forward(x_ncl, layer_params, head_params, init_h, init_c):
    """x_ncl: (B, input_dim, seq) — same convention as the PyTorch forward."""
    B, D, T = x_ncl.shape
    H = init_h.shape[-1]
    L = len(layer_params)

    # permute(0,2,1) -> (B, T, D); kernel wants flattened time-major (T*B, D).
    x_flat = jnp.transpose(x_ncl, (2, 0, 1)).reshape(T * B, D)
    # PyTorch layout (2L, B, H) with [2l]=fwd, [2l+1]=rev -> (L, 2B, H) stacked states.
    h0 = init_h.reshape(L, 2, B, H).reshape(L, 2 * B, H)
    c0 = init_c.reshape(L, 2, B, H).reshape(L, 2 * B, H)

    w1, b1, w2, b2, w3, b3 = head_params
    inputs = [x_flat]
    for lp in layer_params:
        inputs.extend(lp)
    inputs.extend([h0, c0, b1, b2, b3, w1, w2, w3])
    # Everything VMEM except the three head weight matrices, which stay in HBM and are
    # DMA'd manually inside the kernel (overlapped with the recurrence).
    in_specs = [_VMEM] * (len(inputs) - 3) + [_ANY] * 3

    kernel = make_net_kernel(n_layers=L, T=T, B=B, H=H)
    out_padded = pl.pallas_call(
        kernel,
        out_shape=jax.ShapeDtypeStruct((B, 128), jnp.float32),
        in_specs=in_specs,
        out_specs=_VMEM,
        scratch_shapes=[
            pltpu.VMEM((T * B, 2 * H), jnp.float32),   # next-layer input slab
            pltpu.VMEM(w1.shape, w1.dtype),
            pltpu.VMEM(w2.shape, w2.dtype),
            pltpu.VMEM(w3.shape, w3.dtype),
            pltpu.SemaphoreType.DMA((3,)),
        ],
    )(*inputs)
    return out_padded[:, :FC3]


# ----------------------------- parameter init -----------------------------

def init_params(key, input_dim, hidden_dim, n_layers):
    H = hidden_dim
    k = key
    layer_params = []
    for layer in range(n_layers):
        d_in = input_dim if layer == 0 else 2 * H
        bound = 1.0 / (H ** 0.5)
        wih_dirs, whh_dirs, b_dirs = [], [], []
        for _direction in range(2):                      # 0 = forward, 1 = reverse
            k, k1, k2, k3, k4 = jax.random.split(k, 5)
            w_ih = jax.random.uniform(k1, (4 * H, d_in), jnp.float32, -bound, bound)
            w_hh = jax.random.uniform(k2, (4 * H, H), jnp.float32, -bound, bound)
            b_ih = jax.random.uniform(k3, (4 * H,), jnp.float32, -bound, bound)
            b_hh = jax.random.uniform(k4, (4 * H,), jnp.float32, -bound, bound)
            wih_dirs.append(w_ih.T)                      # (d_in, 4H)
            whh_dirs.append(w_hh.T)                      # (H, 4H)
            b_dirs.append((b_ih + b_hh)[None, :])        # (1, 4H)
        layer_params.append((
            jnp.concatenate(wih_dirs, axis=1).astype(jnp.bfloat16),   # (d_in, 8H)
            jnp.concatenate(whh_dirs, axis=1).astype(jnp.bfloat16),   # (H, 8H)
            jnp.concatenate(b_dirs, axis=1),                          # (1, 8H) f32
        ))

    def linear(key, fan_in, fan_out, rows_pad, cols_pad):
        k1, k2 = jax.random.split(key)
        bound = 1.0 / (fan_in ** 0.5)
        w = jax.random.uniform(k1, (fan_in, fan_out), jnp.float32, -bound, bound)
        b = jax.random.uniform(k2, (fan_out,), jnp.float32, -bound, bound)
        # Zero-pad to lane-dense widths (numerically exact: padded rows only ever see
        # zero activations, padded columns produce zeros that are sliced off / relu(0)).
        wp = jnp.zeros((rows_pad, cols_pad), jnp.float32).at[:fan_in, :fan_out].set(w)
        bp = jnp.zeros((1, cols_pad), jnp.float32).at[0, :fan_out].set(b)
        return wp.astype(jnp.bfloat16), bp

    k, kf1, kf2, kf3 = jax.random.split(k, 4)
    w1, b1 = linear(kf1, 2 * H, FC1, 2 * H, FC1_PAD)
    w2, b2 = linear(kf2, FC1, FC2, FC1_PAD, FC2_PAD)
    w3, b3 = linear(kf3, FC2, FC3, FC2_PAD, FC3_PAD)
    return tuple(layer_params), (w1, b1, w2, b2, w3, b3)


# ----------------------------- main -----------------------------

if __name__ == "__main__":
    INPUT_DIM = 16
    HIDDEN_DIM = 32
    N_LAYERS = 2
    BATCH = 2      # TODO(synk): batch more sequences per call (B>=8) for ~free throughput.
    SEQ = 8

    root = jax.random.PRNGKey(0)
    k_x, k_p, k_h, k_c = jax.random.split(root, 4)

    # x has shape (B, input_dim, seq) — the forward permutes it to (B, seq, input_dim).
    x = jax.random.normal(k_x, (BATCH, INPUT_DIM, SEQ), jnp.float32)

    layer_params, head_params = init_params(k_p, INPUT_DIM, HIDDEN_DIM, N_LAYERS)

    # Deterministic stand-in for the torch.randn initial states drawn in forward().
    init_h = jax.random.normal(k_h, (N_LAYERS * 2, BATCH, HIDDEN_DIM), jnp.float32)
    init_c = jax.random.normal(k_c, (N_LAYERS * 2, BATCH, HIDDEN_DIM), jnp.float32)

    out = net_forward(x, layer_params, head_params, init_h, init_c)
    out = jax.block_until_ready(out)
    assert out.shape == (BATCH, 26), out.shape
    assert bool(jnp.all(jnp.isfinite(out)))
    print("KERNEL_OK")
</pallas_src>

<mosaic_0001>
module attributes {stable_mosaic.version = 11 : i64} {
  func.func @kernel(%arg0: memref<16x16xf32, #tpu.memory_space<vmem>>, %arg1: memref<16x256xbf16, #tpu.memory_space<vmem>>, %arg2: memref<32x256xbf16, #tpu.memory_space<vmem>>, %arg3: memref<1x256xf32, #tpu.memory_space<vmem>>, %arg4: memref<64x256xbf16, #tpu.memory_space<vmem>>, %arg5: memref<32x256xbf16, #tpu.memory_space<vmem>>, %arg6: memref<1x256xf32, #tpu.memory_space<vmem>>, %arg7: memref<2x4x32xf32, #tpu.memory_space<vmem>>, %arg8: memref<2x4x32xf32, #tpu.memory_space<vmem>>, %arg9: memref<1x896xf32, #tpu.memory_space<vmem>>, %arg10: memref<1x512xf32, #tpu.memory_space<vmem>>, %arg11: memref<1x128xf32, #tpu.memory_space<vmem>>, %arg12: memref<64x896xbf16, #tpu.memory_space<any>>, %arg13: memref<896x512xbf16, #tpu.memory_space<any>>, %arg14: memref<512x128xbf16, #tpu.memory_space<any>>, %arg15: memref<2x128xf32, #tpu.memory_space<vmem>>, %arg16: memref<16x64xf32, #tpu.memory_space<vmem>>, %arg17: memref<64x896xbf16, #tpu.memory_space<vmem>>, %arg18: memref<896x512xbf16, #tpu.memory_space<vmem>>, %arg19: memref<512x128xbf16, #tpu.memory_space<vmem>>, %arg20: memref<3x!tpu.dma_semaphore, #tpu.memory_space<semaphore_mem>>) attributes {dimension_semantics = [], scalar_prefetch = 0 : i64, scratch_operands = 5 : i64, tpu.core_type = #tpu.core_type<tc>} {
    %c0_i32 = arith.constant 0 : i32
    %0 = tpu.memref_slice %arg20[%c0_i32] : memref<3x!tpu.dma_semaphore, #tpu.memory_space<semaphore_mem>> -> memref<1x!tpu.dma_semaphore, #tpu.memory_space<semaphore_mem>>
    %1 = tpu.memref_squeeze %0 : memref<1x!tpu.dma_semaphore, #tpu.memory_space<semaphore_mem>> -> memref<!tpu.dma_semaphore, #tpu.memory_space<semaphore_mem>>
    tpu.enqueue_dma source(%arg12 : memref<64x896xbf16, #tpu.memory_space<any>>) target(%arg17 : memref<64x896xbf16, #tpu.memory_space<vmem>>) target_semaphore(%1 : memref<!tpu.dma_semaphore, #tpu.memory_space<semaphore_mem>>)
    %c1_i32 = arith.constant 1 : i32
    %2 = tpu.memref_slice %arg20[%c1_i32] : memref<3x!tpu.dma_semaphore, #tpu.memory_space<semaphore_mem>> -> memref<1x!tpu.dma_semaphore, #tpu.memory_space<semaphore_mem>>
    %3 = tpu.memref_squeeze %2 : memref<1x!tpu.dma_semaphore, #tpu.memory_space<semaphore_mem>> -> memref<!tpu.dma_semaphore, #tpu.memory_space<semaphore_mem>>
    tpu.enqueue_dma source(%arg13 : memref<896x512xbf16, #tpu.memory_space<any>>) target(%arg18 : memref<896x512xbf16, #tpu.memory_space<vmem>>) target_semaphore(%3 : memref<!tpu.dma_semaphore, #tpu.memory_space<semaphore_mem>>)
    %c2_i32 = arith.constant 2 : i32
    %4 = tpu.memref_slice %arg20[%c2_i32] : memref<3x!tpu.dma_semaphore, #tpu.memory_space<semaphore_mem>> -> memref<1x!tpu.dma_semaphore, #tpu.memory_space<semaphore_mem>>
    %5 = tpu.memref_squeeze %4 : memref<1x!tpu.dma_semaphore, #tpu.memory_space<semaphore_mem>> -> memref<!tpu.dma_semaphore, #tpu.memory_space<semaphore_mem>>
    tpu.enqueue_dma source(%arg14 : memref<512x128xbf16, #tpu.memory_space<any>>) target(%arg19 : memref<512x128xbf16, #tpu.memory_space<vmem>>) target_semaphore(%5 : memref<!tpu.dma_semaphore, #tpu.memory_space<semaphore_mem>>)
    %c0 = arith.constant 0 : index
    %c0_0 = arith.constant 0 : index
    %6 = vector.load %arg0[%c0, %c0_0] : memref<16x16xf32, #tpu.memory_space<vmem>>, vector<16x16xf32>
    %7 = arith.truncf %6 : vector<16x16xf32> to vector<16x16xbf16>
    %c0_1 = arith.constant 0 : index
    %c0_2 = arith.constant 0 : index
    %8 = vector.load %arg1[%c0_1, %c0_2] : memref<16x256xbf16, #tpu.memory_space<vmem>>, vector<16x256xbf16>
    %cst = arith.constant dense<0.000000e+00> : vector<16x256xf32>
    %9 = tpu.matmul %7, %8, %cst {dimension_numbers = #tpu.dot_dimension_numbers<[1], [0], [0], [1], [0, 0, 1, 1], [], []>} : vector<16x16xbf16>, vector<16x256xbf16>, vector<16x256xf32> -> vector<16x256xf32>
    %c0_3 = arith.constant 0 : index
    %c0_4 = arith.constant 0 : index
    %10 = vector.load %arg3[%c0_3, %c0_4] : memref<1x256xf32, #tpu.memory_space<vmem>>, vector<1x256xf32>
    %11 = vector.broadcast %10 : vector<1x256xf32> to vector<16x256xf32>
    %12 = arith.addf %9, %11 : vector<16x256xf32>
    %c0_5 = arith.constant 0 : index
    %c0_6 = arith.constant 0 : index
    %13 = vector.load %arg2[%c0_5, %c0_6] : memref<32x256xbf16, #tpu.memory_space<vmem>>, vector<32x256xbf16>
    %14 = vector.extract_strided_slice %12 {offsets = [0, 0], sizes = [2, 128], strides = [1, 1]} : vector<16x256xf32> to vector<2x128xf32>
    %15 = vector.extract_strided_slice %12 {offsets = [14, 128], sizes = [2, 128], strides = [1, 1]} : vector<16x256xf32> to vector<2x128xf32>
    %16 = tpu.concatenate %14, %15 in 0 : vector<2x128xf32>, vector<2x128xf32> -> vector<4x128xf32>
    %17 = vector.extract_strided_slice %12 {offsets = [2, 0], sizes = [2, 128], strides = [1, 1]} : vector<16x256xf32> to vector<2x128xf32>
    %18 = vector.extract_strided_slice %12 {offsets = [12, 128], sizes = [2, 128], strides = [1, 1]} : vector<16x256xf32> to vector<2x128xf32>
    %19 = tpu.concatenate %17, %18 in 0 : vector<2x128xf32>, vector<2x128xf32> -> vector<4x128xf32>
    %20 = vector.extract_strided_slice %12 {offsets = [4, 0], sizes = [2, 128], strides = [1, 1]} : vector<16x256xf32> to vector<2x128xf32>
    %21 = vector.extract_strided_slice %12 {offsets = [10, 128], sizes = [2, 128], strides = [1, 1]} : vector<16x256xf32> to vector<2x128xf32>
    %22 = tpu.concatenate %20, %21 in 0 : vector<2x128xf32>, vector<2x128xf32> -> vector<4x128xf32>
    %23 = vector.extract_strided_slice %12 {offsets = [6, 0], sizes = [2, 128], strides = [1, 1]} : vector<16x256xf32> to vector<2x128xf32>
    %24 = vector.extract_strided_slice %12 {offsets = [8, 128], sizes = [2, 128], strides = [1, 1]} : vector<16x256xf32> to vector<2x128xf32>
    %25 = tpu.concatenate %23, %24 in 0 : vector<2x128xf32>, vector<2x128xf32> -> vector<4x128xf32>
    %26 = vector.extract_strided_slice %12 {offsets = [8, 0], sizes = [2, 128], strides = [1, 1]} : vector<16x256xf32> to vector<2x128xf32>
    %27 = vector.extract_strided_slice %12 {offsets = [6, 128], sizes = [2, 128], strides = [1, 1]} : vector<16x256xf32> to vector<2x128xf32>
    %28 = tpu.concatenate %26, %27 in 0 : vector<2x128xf32>, vector<2x128xf32> -> vector<4x128xf32>
    %29 = vector.extract_strided_slice %12 {offsets = [10, 0], sizes = [2, 128], strides = [1, 1]} : vector<16x256xf32> to vector<2x128xf32>
    %30 = vector.extract_strided_slice %12 {offsets = [4, 128], sizes = [2, 128], strides = [1, 1]} : vector<16x256xf32> to vector<2x128xf32>
    %31 = tpu.concatenate %29, %30 in 0 : vector<2x128xf32>, vector<2x128xf32> -> vector<4x128xf32>
    %32 = vector.extract_strided_slice %12 {offsets = [12, 0], sizes = [2, 128], strides = [1, 1]} : vector<16x256xf32> to vector<2x128xf32>
    %33 = vector.extract_strided_slice %12 {offsets = [2, 128], sizes = [2, 128], strides = [1, 1]} : vector<16x256xf32> to vector<2x128xf32>
    %34 = tpu.concatenate %32, %33 in 0 : vector<2x128xf32>, vector<2x128xf32> -> vector<4x128xf32>
    %35 = vector.extract_strided_slice %12 {offsets = [14, 0], sizes = [2, 128], strides = [1, 1]} : vector<16x256xf32> to vector<2x128xf32>
    %36 = vector.extract_strided_slice %12 {offsets = [0, 128], sizes = [2, 128], strides = [1, 1]} : vector<16x256xf32> to vector<2x128xf32>
    %37 = tpu.concatenate %35, %36 in 0 : vector<2x128xf32>, vector<2x128xf32> -> vector<4x128xf32>
    %c0_7 = arith.constant 0 : index
    %c0_8 = arith.constant 0 : index
    %c0_9 = arith.constant 0 : index
    %38 = vector.load %arg7[%c0_7, %c0_8, %c0_9] : memref<2x4x32xf32, #tpu.memory_space<vmem>>, vector<1x4x32xf32>
    %39 = vector.shape_cast %38 : vector<1x4x32xf32> to vector<4x32xf32>
    %c0_10 = arith.constant 0 : index
    %c0_11 = arith.constant 0 : index
    %c0_12 = arith.constant 0 : index
    %40 = vector.load %arg8[%c0_10, %c0_11, %c0_12] : memref<2x4x32xf32, #tpu.memory_space<vmem>>, vector<1x4x32xf32>
    %41 = vector.shape_cast %40 : vector<1x4x32xf32> to vector<4x32xf32>
    %42 = arith.truncf %39 : vector<4x32xf32> to vector<4x32xbf16>
    %cst_13 = arith.constant dense<0.000000e+00> : vector<4x256xf32>
    %43 = tpu.matmul %42, %13, %cst_13 {dimension_numbers = #tpu.dot_dimension_numbers<[1], [0], [0], [1], [0, 0, 1, 1], [], []>} : vector<4x32xbf16>, vector<32x256xbf16>, vector<4x256xf32> -> vector<4x256xf32>
    %44 = vector.extract_strided_slice %43 {offsets = [0, 0], sizes = [2, 128], strides = [1, 1]} : vector<4x256xf32> to vector<2x128xf32>
    %45 = vector.extract_strided_slice %43 {offsets = [2, 128], sizes = [2, 128], strides = [1, 1]} : vector<4x256xf32> to vector<2x128xf32>
    %46 = tpu.concatenate %44, %45 in 0 : vector<2x128xf32>, vector<2x128xf32> -> vector<4x128xf32>
    %47 = arith.addf %16, %46 : vector<4x128xf32>
    %cst_14 = arith.constant 5.000000e-01 : f32
    %48 = vector.broadcast %cst_14 : f32 to vector<4x128xf32>
    %49 = arith.mulf %48, %47 : vector<4x128xf32>
    %50 = math.tanh %49 : vector<4x128xf32>
    %cst_15 = arith.constant 5.000000e-01 : f32
    %51 = vector.broadcast %cst_15 : f32 to vector<4x128xf32>
    %52 = arith.mulf %51, %50 : vector<4x128xf32>
    %cst_16 = arith.constant 5.000000e-01 : f32
    %53 = vector.broadcast %cst_16 : f32 to vector<4x128xf32>
    %54 = arith.addf %52, %53 : vector<4x128xf32>
    %55 = math.tanh %47 : vector<4x128xf32>
    %56 = vector.extract_strided_slice %54 {offsets = [0, 0], sizes = [4, 32], strides = [1, 1]} : vector<4x128xf32> to vector<4x32xf32>
    %57 = vector.extract_strided_slice %54 {offsets = [0, 32], sizes = [4, 32], strides = [1, 1]} : vector<4x128xf32> to vector<4x32xf32>
    %58 = vector.extract_strided_slice %55 {offsets = [0, 64], sizes = [4, 32], strides = [1, 1]} : vector<4x128xf32> to vector<4x32xf32>
    %59 = vector.extract_strided_slice %54 {offsets = [0, 96], sizes = [4, 32], strides = [1, 1]} : vector<4x128xf32> to vector<4x32xf32>
    %60 = arith.mulf %57, %41 : vector<4x32xf32>
    %61 = arith.mulf %56, %58 : vector<4x32xf32>
    %62 = arith.addf %60, %61 : vector<4x32xf32>
    %63 = math.tanh %62 : vector<4x32xf32>
    %64 = arith.mulf %59, %63 : vector<4x32xf32>
    %65 = vector.extract_strided_slice %64 {offsets = [0, 0], sizes = [2, 32], strides = [1, 1]} : vector<4x32xf32> to vector<2x32xf32>
    %c0_17 = arith.constant 0 : index
    %c0_18 = arith.constant 0 : index
    %66 = vector.load %arg16[%c0_17, %c0_18] : memref<16x64xf32, #tpu.memory_space<vmem>>, vector<2x32xf32>
    tpu.vector_store %arg16[%c0_17, %c0_18], %65 {strides = array<i32>} : memref<16x64xf32, #tpu.memory_space<vmem>>, vector<2x32xf32>,
    %67 = vector.extract_strided_slice %64 {offsets = [2, 0], sizes = [2, 32], strides = [1, 1]} : vector<4x32xf32> to vector<2x32xf32>
    %c14 = arith.constant 14 : index
    %c32 = arith.constant 32 : index
    %68 = vector.load %arg16[%c14, %c32] : memref<16x64xf32, #tpu.memory_space<vmem>>, vector<2x32xf32>
    tpu.vector_store %arg16[%c14, %c32], %67 {strides = array<i32>} : memref<16x64xf32, #tpu.memory_space<vmem>>, vector<2x32xf32>,
    %69 = arith.truncf %64 : vector<4x32xf32> to vector<4x32xbf16>
    %cst_19 = arith.constant dense<0.000000e+00> : vector<4x256xf32>
    %70 = tpu.matmul %69, %13, %cst_19 {dimension_numbers = #tpu.dot_dimension_numbers<[1], [0], [0], [1], [0, 0, 1, 1], [], []>} : vector<4x32xbf16>, vector<32x256xbf16>, vector<4x256xf32> -> vector<4x256xf32>
    %71 = vector.extract_strided_slice %70 {offsets = [0, 0], sizes = [2, 128], strides = [1, 1]} : vector<4x256xf32> to vector<2x128xf32>
    %72 = vector.extract_strided_slice %70 {offsets = [2, 128], sizes = [2, 128], strides = [1, 1]} : vector<4x256xf32> to vector<2x128xf32>
    %73 = tpu.concatenate %71, %72 in 0 : vector<2x128xf32>, vector<2x128xf32> -> vector<4x128xf32>
    %74 = arith.addf %19, %73 : vector<4x128xf32>
    %cst_20 = arith.constant 5.000000e-01 : f32
    %75 = vector.broadcast %cst_20 : f32 to vector<4x128xf32>
    %76 = arith.mulf %75, %74 : vector<4x128xf32>
    %77 = math.tanh %76 : vector<4x128xf32>
    %cst_21 = arith.constant 5.000000e-01 : f32
    %78 = vector.broadcast %cst_21 : f32 to vector<4x128xf32>
    %79 = arith.mulf %78, %77 : vector<4x128xf32>
    %cst_22 = arith.constant 5.000000e-01 : f32
    %80 = vector.broadcast %cst_22 : f32 to vector<4x128xf32>
    %81 = arith.addf %79, %80 : vector<4x128xf32>
    %82 = math.tanh %74 : vector<4x128xf32>
    %83 = vector.extract_strided_slice %81 {offsets = [0, 0], sizes = [4, 32], strides = [1, 1]} : vector<4x128xf32> to vector<4x32xf32>
    %84 = vector.extract_strided_slice %81 {offsets = [0, 32], sizes = [4, 32], strides = [1, 1]} : vector<4x128xf32> to vector<4x32xf32>
    %85 = vector.extract_strided_slice %82 {offsets = [0, 64], sizes = [4, 32], strides = [1, 1]} : vector<4x128xf32> to vector<4x32xf32>
    %86 = vector.extract_strided_slice %81 {offsets = [0, 96], sizes = [4, 32], strides = [1, 1]} : vector<4x128xf32> to vector<4x32xf32>
    %87 = arith.mulf %84, %62 : vector<4x32xf32>
    %88 = arith.mulf %83, %85 : vector<4x32xf32>
    %89 = arith.addf %87, %88 : vector<4x32xf32>
    %90 = math.tanh %89 : vector<4x32xf32>
    %91 = arith.mulf %86, %90 : vector<4x32xf32>
    %92 = vector.extract_strided_slice %91 {offsets = [0, 0], sizes = [2, 32], strides = [1, 1]} : vector<4x32xf32> to vector<2x32xf32>
    %c2 = arith.constant 2 : index
    %c0_23 = arith.constant 0 : index
    %93 = vector.load %arg16[%c2, %c0_23] : memref<16x64xf32, #tpu.memory_space<vmem>>, vector<2x32xf32>
    tpu.vector_store %arg16[%c2, %c0_23], %92 {strides = array<i32>} : memref<16x64xf32, #tpu.memory_space<vmem>>, vector<2x32xf32>,
    %94 = vector.extract_strided_slice %91 {offsets = [2, 0], sizes = [2, 32], strides = [1, 1]} : vector<4x32xf32> to vector<2x32xf32>
    %c12 = arith.constant 12 : index
    %c32_24 = arith.constant 32 : index
    %95 = vector.load %arg16[%c12, %c32_24] : memref<16x64xf32, #tpu.memory_space<vmem>>, vector<2x32xf32>
    tpu.vector_store %arg16[%c12, %c32_24], %94 {strides = array<i32>} : memref<16x64xf32, #tpu.memory_space<vmem>>, vector<2x32xf32>,
    %96 = arith.truncf %91 : vector<4x32xf32> to vector<4x32xbf16>
    %cst_25 = arith.constant dense<0.000000e+00> : vector<4x256xf32>
    %97 = tpu.matmul %96, %13, %cst_25 {dimension_numbers = #tpu.dot_dimension_numbers<[1], [0], [0], [1], [0, 0, 1, 1], [], []>} : vector<4x32xbf16>, vector<32x256xbf16>, vector<4x256xf32> -> vector<4x256xf32>
    %98 = vector.extract_strided_slice %97 {offsets = [0, 0], sizes = [2, 128], strides = [1, 1]} : vector<4x256xf32> to vector<2x128xf32>
    %99 = vector.extract_strided_slice %97 {offsets = [2, 128], sizes = [2, 128], strides = [1, 1]} : vector<4x256xf32> to vector<2x128xf32>
    %100 = tpu.concatenate %98, %99 in 0 : vector<2x128xf32>, vector<2x128xf32> -> vector<4x128xf32>
    %101 = arith.addf %22, %100 : vector<4x128xf32>
    %cst_26 = arith.constant 5.000000e-01 : f32
    %102 = vector.broadcast %cst_26 : f32 to vector<4x128xf32>
    %103 = arith.mulf %102, %101 : vector<4x128xf32>
    %104 = math.tanh %103 : vector<4x128xf32>
    %cst_27 = arith.constant 5.000000e-01 : f32
    %105 = vector.broadcast %cst_27 : f32 to vector<4x128xf32>
    %106 = arith.mulf %105, %104 : vector<4x128xf32>
    %cst_28 = arith.constant 5.000000e-01 : f32
    %107 = vector.broadcast %cst_28 : f32 to vector<4x128xf32>
    %108 = arith.addf %106, %107 : vector<4x128xf32>
    %109 = math.tanh %101 : vector<4x128xf32>
    %110 = vector.extract_strided_slice %108 {offsets = [0, 0], sizes = [4, 32], strides = [1, 1]} : vector<4x128xf32> to vector<4x32xf32>
    %111 = vector.extract_strided_slice %108 {offsets = [0, 32], sizes = [4, 32], strides = [1, 1]} : vector<4x128xf32> to vector<4x32xf32>
    %112 = vector.extract_strided_slice %109 {offsets = [0, 64], sizes = [4, 32], strides = [1, 1]} : vector<4x128xf32> to vector<4x32xf32>
    %113 = vector.extract_strided_slice %108 {offsets = [0, 96], sizes = [4, 32], strides = [1, 1]} : vector<4x128xf32> to vector<4x32xf32>
    %114 = arith.mulf %111, %89 : vector<4x32xf32>
    %115 = arith.mulf %110, %112 : vector<4x32xf32>
    %116 = arith.addf %114, %115 : vector<4x32xf32>
    %117 = math.tanh %116 : vector<4x32xf32>
    %118 = arith.mulf %113, %117 : vector<4x32xf32>
    %119 = vector.extract_strided_slice %118 {offsets = [0, 0], sizes = [2, 32], strides = [1, 1]} : vector<4x32xf32> to vector<2x32xf32>
    %c4 = arith.constant 4 : index
    %c0_29 = arith.constant 0 : index
    %120 = vector.load %arg16[%c4, %c0_29] : memref<16x64xf32, #tpu.memory_space<vmem>>, vector<2x32xf32>
    tpu.vector_store %arg16[%c4, %c0_29], %119 {strides = array<i32>} : memref<16x64xf32, #tpu.memory_space<vmem>>, vector<2x32xf32>,
    %121 = vector.extract_strided_slice %118 {offsets = [2, 0], sizes = [2, 32], strides = [1, 1]} : vector<4x32xf32> to vector<2x32xf32>
    %c10 = arith.constant 10 : index
    %c32_30 = arith.constant 32 : index
    %122 = vector.load %arg16[%c10, %c32_30] : memref<16x64xf32, #tpu.memory_space<vmem>>, vector<2x32xf32>
    tpu.vector_store %arg16[%c10, %c32_30], %121 {strides = array<i32>} : memref<16x64xf32, #tpu.memory_space<vmem>>, vector<2x32xf32>,
    %123 = arith.truncf %118 : vector<4x32xf32> to vector<4x32xbf16>
    %cst_31 = arith.constant dense<0.000000e+00> : vector<4x256xf32>
    %124 = tpu.matmul %123, %13, %cst_31 {dimension_numbers = #tpu.dot_dimension_numbers<[1], [0], [0], [1], [0, 0, 1, 1], [], []>} : vector<4x32xbf16>, vector<32x256xbf16>, vector<4x256xf32> -> vector<4x256xf32>
    %125 = vector.extract_strided_slice %124 {offsets = [0, 0], sizes = [2, 128], strides = [1, 1]} : vector<4x256xf32> to vector<2x128xf32>
    %126 = vector.extract_strided_slice %124 {offsets = [2, 128], sizes = [2, 128], strides = [1, 1]} : vector<4x256xf32> to vector<2x128xf32>
    %127 = tpu.concatenate %125, %126 in 0 : vector<2x128xf32>, vector<2x128xf32> -> vector<4x128xf32>
    %128 = arith.addf %25, %127 : vector<4x128xf32>
    %cst_32 = arith.constant 5.000000e-01 : f32
    %129 = vector.broadcast %cst_32 : f32 to vector<4x128xf32>
    %130 = arith.mulf %129, %128 : vector<4x128xf32>
    %131 = math.tanh %130 : vector<4x128xf32>
    %cst_33 = arith.constant 5.000000e-01 : f32
    %132 = vector.broadcast %cst_33 : f32 to vector<4x128xf32>
    %133 = arith.mulf %132, %131 : vector<4x128xf32>
    %cst_34 = arith.constant 5.000000e-01 : f32
    %134 = vector.broadcast %cst_34 : f32 to vector<4x128xf32>
    %135 = arith.addf %133, %134 : vector<4x128xf32>
    %136 = math.tanh %128 : vector<4x128xf32>
    %137 = vector.extract_strided_slice %135 {offsets = [0, 0], sizes = [4, 32], strides = [1, 1]} : vector<4x128xf32> to vector<4x32xf32>
    %138 = vector.extract_strided_slice %135 {offsets = [0, 32], sizes = [4, 32], strides = [1, 1]} : vector<4x128xf32> to vector<4x32xf32>
    %139 = vector.extract_strided_slice %136 {offsets = [0, 64], sizes = [4, 32], strides = [1, 1]} : vector<4x128xf32> to vector<4x32xf32>
    %140 = vector.extract_strided_slice %135 {offsets = [0, 96], sizes = [4, 32], strides = [1, 1]} : vector<4x128xf32> to vector<4x32xf32>
    %141 = arith.mulf %138, %116 : vector<4x32xf32>
    %142 = arith.mulf %137, %139 : vector<4x32xf32>
    %143 = arith.addf %141, %142 : vector<4x32xf32>
    %144 = math.tanh %143 : vector<4x32xf32>
    %145 = arith.mulf %140, %144 : vector<4x32xf32>
    %146 = vector.extract_strided_slice %145 {offsets = [0, 0], sizes = [2, 32], strides = [1, 1]} : vector<4x32xf32> to vector<2x32xf32>
    %c6 = arith.constant 6 : index
    %c0_35 = arith.constant 0 : index
    %147 = vector.load %arg16[%c6, %c0_35] : memref<16x64xf32, #tpu.memory_space<vmem>>, vector<2x32xf32>
    tpu.vector_store %arg16[%c6, %c0_35], %146 {strides = array<i32>} : memref<16x64xf32, #tpu.memory_space<vmem>>, vector<2x32xf32>,
    %148 = vector.extract_strided_slice %145 {offsets = [2, 0], sizes = [2, 32], strides = [1, 1]} : vector<4x32xf32> to vector<2x32xf32>
    %c8 = arith.constant 8 : index
    %c32_36 = arith.constant 32 : index
    %149 = vector.load %arg16[%c8, %c32_36] : memref<16x64xf32, #tpu.memory_space<vmem>>, vector<2x32xf32>
    tpu.vector_store %arg16[%c8, %c32_36], %148 {strides = array<i32>} : memref<16x64xf32, #tpu.memory_space<vmem>>, vector<2x32xf32>,
    %150 = arith.truncf %145 : vector<4x32xf32> to vector<4x32xbf16>
    %cst_37 = arith.constant dense<0.000000e+00> : vector<4x256xf32>
    %151 = tpu.matmul %150, %13, %cst_37 {dimension_numbers = #tpu.dot_dimension_numbers<[1], [0], [0], [1], [0, 0, 1, 1], [], []>} : vector<4x32xbf16>, vector<32x256xbf16>, vector<4x256xf32> -> vector<4x256xf32>
    %152 = vector.extract_strided_slice %151 {offsets = [0, 0], sizes = [2, 128], strides = [1, 1]} : vector<4x256xf32> to vector<2x128xf32>
    %153 = vector.extract_strided_slice %151 {offsets = [2, 128], sizes = [2, 128], strides = [1, 1]} : vector<4x256xf32> to vector<2x128xf32>
    %154 = tpu.concatenate %152, %153 in 0 : vector<2x128xf32>, vector<2x128xf32> -> vector<4x128xf32>
    %155 = arith.addf %28, %154 : vector<4x128xf32>
    %cst_38 = arith.constant 5.000000e-01 : f32
    %156 = vector.broadcast %cst_38 : f32 to vector<4x128xf32>
    %157 = arith.mulf %156, %155 : vector<4x128xf32>
    %158 = math.tanh %157 : vector<4x128xf32>
    %cst_39 = arith.constant 5.000000e-01 : f32
    %159 = vector.broadcast %cst_39 : f32 to vector<4x128xf32>
    %160 = arith.mulf %159, %158 : vector<4x128xf32>
    %cst_40 = arith.constant 5.000000e-01 : f32
    %161 = vector.broadcast %cst_40 : f32 to vector<4x128xf32>
    %162 = arith.addf %160, %161 : vector<4x128xf32>
    %163 = math.tanh %155 : vector<4x128xf32>
    %164 = vector.extract_strided_slice %162 {offsets = [0, 0], sizes = [4, 32], strides = [1, 1]} : vector<4x128xf32> to vector<4x32xf32>
    %165 = vector.extract_strided_slice %162 {offsets = [0, 32], sizes = [4, 32], strides = [1, 1]} : vector<4x128xf32> to vector<4x32xf32>
    %166 = vector.extract_strided_slice %163 {offsets = [0, 64], sizes = [4, 32], strides = [1, 1]} : vector<4x128xf32> to vector<4x32xf32>
    %167 = vector.extract_strided_slice %162 {offsets = [0, 96], sizes = [4, 32], strides = [1, 1]} : vector<4x128xf32> to vector<4x32xf32>
    %168 = arith.mulf %165, %143 : vector<4x32xf32>
    %169 = arith.mulf %164, %166 : vector<4x32xf32>
    %170 = arith.addf %168, %169 : vector<4x32xf32>
    %171 = math.tanh %170 : vector<4x32xf32>
    %172 = arith.mulf %167, %171 : vector<4x32xf32>
    %173 = vector.extract_strided_slice %172 {offsets = [0, 0], sizes = [2, 32], strides = [1, 1]} : vector<4x32xf32> to vector<2x32xf32>
    %c8_41 = arith.constant 8 : index
    %c0_42 = arith.constant 0 : index
    %174 = vector.load %arg16[%c8_41, %c0_42] : memref<16x64xf32, #tpu.memory_space<vmem>>, vector<2x32xf32>
    tpu.vector_store %arg16[%c8_41, %c0_42], %173 {strides = array<i32>} : memref<16x64xf32, #tpu.memory_space<vmem>>, vector<2x32xf32>,
    %175 = vector.extract_strided_slice %172 {offsets = [2, 0], sizes = [2, 32], strides = [1, 1]} : vector<4x32xf32> to vector<2x32xf32>
    %c6_43 = arith.constant 6 : index
    %c32_44 = arith.constant 32 : index
    %176 = vector.load %arg16[%c6_43, %c32_44] : memref<16x64xf32, #tpu.memory_space<vmem>>, vector<2x32xf32>
    tpu.vector_store %arg16[%c6_43, %c32_44], %175 {strides = array<i32>} : memref<16x64xf32, #tpu.memory_space<vmem>>, vector<2x32xf32>,
    %177 = arith.truncf %172 : vector<4x32xf32> to vector<4x32xbf16>
    %cst_45 = arith.constant dense<0.000000e+00> : vector<4x256xf32>
    %178 = tpu.matmul %177, %13, %cst_45 {dimension_numbers = #tpu.dot_dimension_numbers<[1], [0], [0], [1], [0, 0, 1, 1], [], []>} : vector<4x32xbf16>, vector<32x256xbf16>, vector<4x256xf32> -> vector<4x256xf32>
    %179 = vector.extract_strided_slice %178 {offsets = [0, 0], sizes = [2, 128], strides = [1, 1]} : vector<4x256xf32> to vector<2x128xf32>
    %180 = vector.extract_strided_slice %178 {offsets = [2, 128], sizes = [2, 128], strides = [1, 1]} : vector<4x256xf32> to vector<2x128xf32>
    %181 = tpu.concatenate %179, %180 in 0 : vector<2x128xf32>, vector<2x128xf32> -> vector<4x128xf32>
    %182 = arith.addf %31, %181 : vector<4x128xf32>
    %cst_46 = arith.constant 5.000000e-01 : f32
    %183 = vector.broadcast %cst_46 : f32 to vector<4x128xf32>
    %184 = arith.mulf %183, %182 : vector<4x128xf32>
    %185 = math.tanh %184 : vector<4x128xf32>
    %cst_47 = arith.constant 5.000000e-01 : f32
    %186 = vector.broadcast %cst_47 : f32 to vector<4x128xf32>
    %187 = arith.mulf %186, %185 : vector<4x128xf32>
    %cst_48 = arith.constant 5.000000e-01 : f32
    %188 = vector.broadcast %cst_48 : f32 to vector<4x128xf32>
    %189 = arith.addf %187, %188 : vector<4x128xf32>
    %190 = math.tanh %182 : vector<4x128xf32>
    %191 = vector.extract_strided_slice %189 {offsets = [0, 0], sizes = [4, 32], strides = [1, 1]} : vector<4x128xf32> to vector<4x32xf32>
    %192 = vector.extract_strided_slice %189 {offsets = [0, 32], sizes = [4, 32], strides = [1, 1]} : vector<4x128xf32> to vector<4x32xf32>
    %193 = vector.extract_strided_slice %190 {offsets = [0, 64], sizes = [4, 32], strides = [1, 1]} : vector<4x128xf32> to vector<4x32xf32>
    %194 = vector.extract_strided_slice %189 {offsets = [0, 96], sizes = [4, 32], strides = [1, 1]} : vector<4x128xf32> to vector<4x32xf32>
    %195 = arith.mulf %192, %170 : vector<4x32xf32>
    %196 = arith.mulf %191, %193 : vector<4x32xf32>
    %197 = arith.addf %195, %196 : vector<4x32xf32>
    %198 = math.tanh %197 : vector<4x32xf32>
    %199 = arith.mulf %194, %198 : vector<4x32xf32>
    %200 = vector.extract_strided_slice %199 {offsets = [0, 0], sizes = [2, 32], strides = [1, 1]} : vector<4x32xf32> to vector<2x32xf32>
    %c10_49 = arith.constant 10 : index
    %c0_50 = arith.constant 0 : index
    %201 = vector.load %arg16[%c10_49, %c0_50] : memref<16x64xf32, #tpu.memory_space<vmem>>, vector<2x32xf32>
    tpu.vector_store %arg16[%c10_49, %c0_50], %200 {strides = array<i32>} : memref<16x64xf32, #tpu.memory_space<vmem>>, vector<2x32xf32>,
    %202 = vector.extract_strided_slice %199 {offsets = [2, 0], sizes = [2, 32], strides = [1, 1]} : vector<4x32xf32> to vector<2x32xf32>
    %c4_51 = arith.constant 4 : index
    %c32_52 = arith.constant 32 : index
    %203 = vector.load %arg16[%c4_51, %c32_52] : memref<16x64xf32, #tpu.memory_space<vmem>>, vector<2x32xf32>
    tpu.vector_store %arg16[%c4_51, %c32_52], %202 {strides = array<i32>} : memref<16x64xf32, #tpu.memory_space<vmem>>, vector<2x32xf32>,
    %204 = arith.truncf %199 : vector<4x32xf32> to vector<4x32xbf16>
    %cst_53 = arith.constant dense<0.000000e+00> : vector<4x256xf32>
    %205 = tpu.matmul %204, %13, %cst_53 {dimension_numbers = #tpu.dot_dimension_numbers<[1], [0], [0], [1], [0, 0, 1, 1], [], []>} : vector<4x32xbf16>, vector<32x256xbf16>, vector<4x256xf32> -> vector<4x256xf32>
    %206 = vector.extract_strided_slice %205 {offsets = [0, 0], sizes = [2, 128], strides = [1, 1]} : vector<4x256xf32> to vector<2x128xf32>
    %207 = vector.extract_strided_slice %205 {offsets = [2, 128], sizes = [2, 128], strides = [1, 1]} : vector<4x256xf32> to vector<2x128xf32>
    %208 = tpu.concatenate %206, %207 in 0 : vector<2x128xf32>, vector<2x128xf32> -> vector<4x128xf32>
    %209 = arith.addf %34, %208 : vector<4x128xf32>
    %cst_54 = arith.constant 5.000000e-01 : f32
    %210 = vector.broadcast %cst_54 : f32 to vector<4x128xf32>
    %211 = arith.mulf %210, %209 : vector<4x128xf32>
    %212 = math.tanh %211 : vector<4x128xf32>
    %cst_55 = arith.constant 5.000000e-01 : f32
    %213 = vector.broadcast %cst_55 : f32 to vector<4x128xf32>
    %214 = arith.mulf %213, %212 : vector<4x128xf32>
    %cst_56 = arith.constant 5.000000e-01 : f32
    %215 = vector.broadcast %cst_56 : f32 to vector<4x128xf32>
    %216 = arith.addf %214, %215 : vector<4x128xf32>
    %217 = math.tanh %209 : vector<4x128xf32>
    %218 = vector.extract_strided_slice %216 {offsets = [0, 0], sizes = [4, 32], strides = [1, 1]} : vector<4x128xf32> to vector<4x32xf32>
    %219 = vector.extract_strided_slice %216 {offsets = [0, 32], sizes = [4, 32], strides = [1, 1]} : vector<4x128xf32> to vector<4x32xf32>
    %220 = vector.extract_strided_slice %217 {offsets = [0, 64], sizes = [4, 32], strides = [1, 1]} : vector<4x128xf32> to vector<4x32xf32>
    %221 = vector.extract_strided_slice %216 {offsets = [0, 96], sizes = [4, 32], strides = [1, 1]} : vector<4x128xf32> to vector<4x32xf32>
    %222 = arith.mulf %219, %197 : vector<4x32xf32>
    %223 = arith.mulf %218, %220 : vector<4x32xf32>
    %224 = arith.addf %222, %223 : vector<4x32xf32>
    %225 = math.tanh %224 : vector<4x32xf32>
    %226 = arith.mulf %221, %225 : vector<4x32xf32>
    %227 = vector.extract_strided_slice %226 {offsets = [0, 0], sizes = [2, 32], strides = [1, 1]} : vector<4x32xf32> to vector<2x32xf32>
    %c12_57 = arith.constant 12 : index
    %c0_58 = arith.constant 0 : index
    %228 = vector.load %arg16[%c12_57, %c0_58] : memref<16x64xf32, #tpu.memory_space<vmem>>, vector<2x32xf32>
    tpu.vector_store %arg16[%c12_57, %c0_58], %227 {strides = array<i32>} : memref<16x64xf32, #tpu.memory_space<vmem>>, vector<2x32xf32>,
    %229 = vector.extract_strided_slice %226 {offsets = [2, 0], sizes = [2, 32], strides = [1, 1]} : vector<4x32xf32> to vector<2x32xf32>
    %c2_59 = arith.constant 2 : index
    %c32_60 = arith.constant 32 : index
    %230 = vector.load %arg16[%c2_59, %c32_60] : memref<16x64xf32, #tpu.memory_space<vmem>>, vector<2x32xf32>
    tpu.vector_store %arg16[%c2_59, %c32_60], %229 {strides = array<i32>} : memref<16x64xf32, #tpu.memory_space<vmem>>, vector<2x32xf32>,
    %231 = arith.truncf %226 : vector<4x32xf32> to vector<4x32xbf16>
    %cst_61 = arith.constant dense<0.000000e+00> : vector<4x256xf32>
    %232 = tpu.matmul %231, %13, %cst_61 {dimension_numbers = #tpu.dot_dimension_numbers<[1], [0], [0], [1], [0, 0, 1, 1], [], []>} : vector<4x32xbf16>, vector<32x256xbf16>, vector<4x256xf32> -> vector<4x256xf32>
    %233 = vector.extract_strided_slice %232 {offsets = [0, 0], sizes = [2, 128], strides = [1, 1]} : vector<4x256xf32> to vector<2x128xf32>
    %234 = vector.extract_strided_slice %232 {offsets = [2, 128], sizes = [2, 128], strides = [1, 1]} : vector<4x256xf32> to vector<2x128xf32>
    %235 = tpu.concatenate %233, %234 in 0 : vector<2x128xf32>, vector<2x128xf32> -> vector<4x128xf32>
    %236 = arith.addf %37, %235 : vector<4x128xf32>
    %cst_62 = arith.constant 5.000000e-01 : f32
    %237 = vector.broadcast %cst_62 : f32 to vector<4x128xf32>
    %238 = arith.mulf %237, %236 : vector<4x128xf32>
    %239 = math.tanh %238 : vector<4x128xf32>
    %cst_63 = arith.constant 5.000000e-01 : f32
    %240 = vector.broadcast %cst_63 : f32 to vector<4x128xf32>
    %241 = arith.mulf %240, %239 : vector<4x128xf32>
    %cst_64 = arith.constant 5.000000e-01 : f32
    %242 = vector.broadcast %cst_64 : f32 to vector<4x128xf32>
    %243 = arith.addf %241, %242 : vector<4x128xf32>
    %244 = math.tanh %236 : vector<4x128xf32>
    %245 = vector.extract_strided_slice %243 {offsets = [0, 0], sizes = [4, 32], strides = [1, 1]} : vector<4x128xf32> to vector<4x32xf32>
    %246 = vector.extract_strided_slice %243 {offsets = [0, 32], sizes = [4, 32], strides = [1, 1]} : vector<4x128xf32> to vector<4x32xf32>
    %247 = vector.extract_strided_slice %244 {offsets = [0, 64], sizes = [4, 32], strides = [1, 1]} : vector<4x128xf32> to vector<4x32xf32>
    %248 = vector.extract_strided_slice %243 {offsets = [0, 96], sizes = [4, 32], strides = [1, 1]} : vector<4x128xf32> to vector<4x32xf32>
    %249 = arith.mulf %246, %224 : vector<4x32xf32>
    %250 = arith.mulf %245, %247 : vector<4x32xf32>
    %251 = arith.addf %249, %250 : vector<4x32xf32>
    %252 = math.tanh %251 : vector<4x32xf32>
    %253 = arith.mulf %248, %252 : vector<4x32xf32>
    %254 = vector.extract_strided_slice %253 {offsets = [0, 0], sizes = [2, 32], strides = [1, 1]} : vector<4x32xf32> to vector<2x32xf32>
    %c14_65 = arith.constant 14 : index
    %c0_66 = arith.constant 0 : index
    %255 = vector.load %arg16[%c14_65, %c0_66] : memref<16x64xf32, #tpu.memory_space<vmem>>, vector<2x32xf32>
    tpu.vector_store %arg16[%c14_65, %c0_66], %254 {strides = array<i32>} : memref<16x64xf32, #tpu.memory_space<vmem>>, vector<2x32xf32>,
    %256 = vector.extract_strided_slice %253 {offsets = [2, 0], sizes = [2, 32], strides = [1, 1]} : vector<4x32xf32> to vector<2x32xf32>
    %c0_67 = arith.constant 0 : index
    %c32_68 = arith.constant 32 : index
    %257 = vector.load %arg16[%c0_67, %c32_68] : memref<16x64xf32, #tpu.memory_space<vmem>>, vector<2x32xf32>
    tpu.vector_store %arg16[%c0_67, %c32_68], %256 {strides = array<i32>} : memref<16x64xf32, #tpu.memory_space<vmem>>, vector<2x32xf32>,
    %c0_69 = arith.constant 0 : index
    %c0_70 = arith.constant 0 : index
    %258 = vector.load %arg16[%c0_69, %c0_70] : memref<16x64xf32, #tpu.memory_space<vmem>>, vector<16x64xf32>
    %259 = arith.truncf %258 : vector<16x64xf32> to vector<16x64xbf16>
    %c0_71 = arith.constant 0 : index
    %c0_72 = arith.constant 0 : index
    %260 = vector.load %arg4[%c0_71, %c0_72] : memref<64x256xbf16, #tpu.memory_space<vmem>>, vector<64x256xbf16>
    %cst_73 = arith.constant dense<0.000000e+00> : vector<16x256xf32>
    %261 = tpu.matmul %259, %260, %cst_73 {dimension_numbers = #tpu.dot_dimension_numbers<[1], [0], [0], [1], [0, 0, 1, 1], [], []>} : vector<16x64xbf16>, vector<64x256xbf16>, vector<16x256xf32> -> vector<16x256xf32>
    %c0_74 = arith.constant 0 : index
    %c0_75 = arith.constant 0 : index
    %262 = vector.load %arg6[%c0_74, %c0_75] : memref<1x256xf32, #tpu.memory_space<vmem>>, vector<1x256xf32>
    %263 = vector.broadcast %262 : vector<1x256xf32> to vector<16x256xf32>
    %264 = arith.addf %261, %263 : vector<16x256xf32>
    %c0_76 = arith.constant 0 : index
    %c0_77 = arith.constant 0 : index
    %265 = vector.load %arg5[%c0_76, %c0_77] : memref<32x256xbf16, #tpu.memory_space<vmem>>, vector<32x256xbf16>
    %266 = vector.extract_strided_slice %264 {offsets = [0, 0], sizes = [2, 128], strides = [1, 1]} : vector<16x256xf32> to vector<2x128xf32>
    %267 = vector.extract_strided_slice %264 {offsets = [14, 128], sizes = [2, 128], strides = [1, 1]} : vector<16x256xf32> to vector<2x128xf32>
    %268 = tpu.concatenate %266, %267 in 0 : vector<2x128xf32>, vector<2x128xf32> -> vector<4x128xf32>
    %269 = vector.extract_strided_slice %264 {offsets = [2, 0], sizes = [2, 128], strides = [1, 1]} : vector<16x256xf32> to vector<2x128xf32>
    %270 = vector.extract_strided_slice %264 {offsets = [12, 128], sizes = [2, 128], strides = [1, 1]} : vector<16x256xf32> to vector<2x128xf32>
    %271 = tpu.concatenate %269, %270 in 0 : vector<2x128xf32>, vector<2x128xf32> -> vector<4x128xf32>
    %272 = vector.extract_strided_slice %264 {offsets = [4, 0], sizes = [2, 128], strides = [1, 1]} : vector<16x256xf32> to vector<2x128xf32>
    %273 = vector.extract_strided_slice %264 {offsets = [10, 128], sizes = [2, 128], strides = [1, 1]} : vector<16x256xf32> to vector<2x128xf32>
    %274 = tpu.concatenate %272, %273 in 0 : vector<2x128xf32>, vector<2x128xf32> -> vector<4x128xf32>
    %275 = vector.extract_strided_slice %264 {offsets = [6, 0], sizes = [2, 128], strides = [1, 1]} : vector<16x256xf32> to vector<2x128xf32>
    %276 = vector.extract_strided_slice %264 {offsets = [8, 128], sizes = [2, 128], strides = [1, 1]} : vector<16x256xf32> to vector<2x128xf32>
    %277 = tpu.concatenate %275, %276 in 0 : vector<2x128xf32>, vector<2x128xf32> -> vector<4x128xf32>
    %278 = vector.extract_strided_slice %264 {offsets = [8, 0], sizes = [2, 128], strides = [1, 1]} : vector<16x256xf32> to vector<2x128xf32>
    %279 = vector.extract_strided_slice %264 {offsets = [6, 128], sizes = [2, 128], strides = [1, 1]} : vector<16x256xf32> to vector<2x128xf32>
    %280 = tpu.concatenate %278, %279 in 0 : vector<2x128xf32>, vector<2x128xf32> -> vector<4x128xf32>
    %281 = vector.extract_strided_slice %264 {offsets = [10, 0], sizes = [2, 128], strides = [1, 1]} : vector<16x256xf32> to vector<2x128xf32>
    %282 = vector.extract_strided_slice %264 {offsets = [4, 128], sizes = [2, 128], strides = [1, 1]} : vector<16x256xf32> to vector<2x128xf32>
    %283 = tpu.concatenate %281, %282 in 0 : vector<2x128xf32>, vector<2x128xf32> -> vector<4x128xf32>
    %284 = vector.extract_strided_slice %264 {offsets = [12, 0], sizes = [2, 128], strides = [1, 1]} : vector<16x256xf32> to vector<2x128xf32>
    %285 = vector.extract_strided_slice %264 {offsets = [2, 128], sizes = [2, 128], strides = [1, 1]} : vector<16x256xf32> to vector<2x128xf32>
    %286 = tpu.concatenate %284, %285 in 0 : vector<2x128xf32>, vector<2x128xf32> -> vector<4x128xf32>
    %287 = vector.extract_strided_slice %264 {offsets = [14, 0], sizes = [2, 128], strides = [1, 1]} : vector<16x256xf32> to vector<2x128xf32>
    %288 = vector.extract_strided_slice %264 {offsets = [0, 128], sizes = [2, 128], strides = [1, 1]} : vector<16x256xf32> to vector<2x128xf32>
    %289 = tpu.concatenate %287, %288 in 0 : vector<2x128xf32>, vector<2x128xf32> -> vector<4x128xf32>
    %c1 = arith.constant 1 : index
    %c0_78 = arith.constant 0 : index
    %c0_79 = arith.constant 0 : index
    %290 = vector.load %arg7[%c1, %c0_78, %c0_79] : memref<2x4x32xf32, #tpu.memory_space<vmem>>, vector<1x4x32xf32>
    %291 = vector.shape_cast %290 : vector<1x4x32xf32> to vector<4x32xf32>
    %c1_80 = arith.constant 1 : index
    %c0_81 = arith.constant 0 : index
    %c0_82 = arith.constant 0 : index
    %292 = vector.load %arg8[%c1_80, %c0_81, %c0_82] : memref<2x4x32xf32, #tpu.memory_space<vmem>>, vector<1x4x32xf32>
    %293 = vector.shape_cast %292 : vector<1x4x32xf32> to vector<4x32xf32>
    %294 = arith.truncf %291 : vector<4x32xf32> to vector<4x32xbf16>
    %cst_83 = arith.constant dense<0.000000e+00> : vector<4x256xf32>
    %295 = tpu.matmul %294, %265, %cst_83 {dimension_numbers = #tpu.dot_dimension_numbers<[1], [0], [0], [1], [0, 0, 1, 1], [], []>} : vector<4x32xbf16>, vector<32x256xbf16>, vector<4x256xf32> -> vector<4x256xf32>
    %296 = vector.extract_strided_slice %295 {offsets = [0, 0], sizes = [2, 128], strides = [1, 1]} : vector<4x256xf32> to vector<2x128xf32>
    %297 = vector.extract_strided_slice %295 {offsets = [2, 128], sizes = [2, 128], strides = [1, 1]} : vector<4x256xf32> to vector<2x128xf32>
    %298 = tpu.concatenate %296, %297 in 0 : vector<2x128xf32>, vector<2x128xf32> -> vector<4x128xf32>
    %299 = arith.addf %268, %298 : vector<4x128xf32>
    %cst_84 = arith.constant 5.000000e-01 : f32
    %300 = vector.broadcast %cst_84 : f32 to vector<4x128xf32>
    %301 = arith.mulf %300, %299 : vector<4x128xf32>
    %302 = math.tanh %301 : vector<4x128xf32>
    %cst_85 = arith.constant 5.000000e-01 : f32
    %303 = vector.broadcast %cst_85 : f32 to vector<4x128xf32>
    %304 = arith.mulf %303, %302 : vector<4x128xf32>
    %cst_86 = arith.constant 5.000000e-01 : f32
    %305 = vector.broadcast %cst_86 : f32 to vector<4x128xf32>
    %306 = arith.addf %304, %305 : vector<4x128xf32>
    %307 = math.tanh %299 : vector<4x128xf32>
    %308 = vector.extract_strided_slice %306 {offsets = [0, 0], sizes = [4, 32], strides = [1, 1]} : vector<4x128xf32> to vector<4x32xf32>
    %309 = vector.extract_strided_slice %306 {offsets = [0, 32], sizes = [4, 32], strides = [1, 1]} : vector<4x128xf32> to vector<4x32xf32>
    %310 = vector.extract_strided_slice %307 {offsets = [0, 64], sizes = [4, 32], strides = [1, 1]} : vector<4x128xf32> to vector<4x32xf32>
    %311 = vector.extract_strided_slice %306 {offsets = [0, 96], sizes = [4, 32], strides = [1, 1]} : vector<4x128xf32> to vector<4x32xf32>
    %312 = arith.mulf %309, %293 : vector<4x32xf32>
    %313 = arith.mulf %308, %310 : vector<4x32xf32>
    %314 = arith.addf %312, %313 : vector<4x32xf32>
    %315 = math.tanh %314 : vector<4x32xf32>
    %316 = arith.mulf %311, %315 : vector<4x32xf32>
    %317 = vector.extract_strided_slice %316 {offsets = [2, 0], sizes = [2, 32], strides = [1, 1]} : vector<4x32xf32> to vector<2x32xf32>
    %318 = arith.truncf %316 : vector<4x32xf32> to vector<4x32xbf16>
    %cst_87 = arith.constant dense<0.000000e+00> : vector<4x256xf32>
    %319 = tpu.matmul %318, %265, %cst_87 {dimension_numbers = #tpu.dot_dimension_numbers<[1], [0], [0], [1], [0, 0, 1, 1], [], []>} : vector<4x32xbf16>, vector<32x256xbf16>, vector<4x256xf32> -> vector<4x256xf32>
    %320 = vector.extract_strided_slice %319 {offsets = [0, 0], sizes = [2, 128], strides = [1, 1]} : vector<4x256xf32> to vector<2x128xf32>
    %321 = vector.extract_strided_slice %319 {offsets = [2, 128], sizes = [2, 128], strides = [1, 1]} : vector<4x256xf32> to vector<2x128xf32>
    %322 = tpu.concatenate %320, %321 in 0 : vector<2x128xf32>, vector<2x128xf32> -> vector<4x128xf32>
    %323 = arith.addf %271, %322 : vector<4x128xf32>
    %cst_88 = arith.constant 5.000000e-01 : f32
    %324 = vector.broadcast %cst_88 : f32 to vector<4x128xf32>
    %325 = arith.mulf %324, %323 : vector<4x128xf32>
    %326 = math.tanh %325 : vector<4x128xf32>
    %cst_89 = arith.constant 5.000000e-01 : f32
    %327 = vector.broadcast %cst_89 : f32 to vector<4x128xf32>
    %328 = arith.mulf %327, %326 : vector<4x128xf32>
    %cst_90 = arith.constant 5.000000e-01 : f32
    %329 = vector.broadcast %cst_90 : f32 to vector<4x128xf32>
    %330 = arith.addf %328, %329 : vector<4x128xf32>
    %331 = math.tanh %323 : vector<4x128xf32>
    %332 = vector.extract_strided_slice %330 {offsets = [0, 0], sizes = [4, 32], strides = [1, 1]} : vector<4x128xf32> to vector<4x32xf32>
    %333 = vector.extract_strided_slice %330 {offsets = [0, 32], sizes = [4, 32], strides = [1, 1]} : vector<4x128xf32> to vector<4x32xf32>
    %334 = vector.extract_strided_slice %331 {offsets = [0, 64], sizes = [4, 32], strides = [1, 1]} : vector<4x128xf32> to vector<4x32xf32>
    %335 = vector.extract_strided_slice %330 {offsets = [0, 96], sizes = [4, 32], strides = [1, 1]} : vector<4x128xf32> to vector<4x32xf32>
    %336 = arith.mulf %333, %314 : vector<4x32xf32>
    %337 = arith.mulf %332, %334 : vector<4x32xf32>
    %338 = arith.addf %336, %337 : vector<4x32xf32>
    %339 = math.tanh %338 : vector<4x32xf32>
    %340 = arith.mulf %335, %339 : vector<4x32xf32>
    %341 = arith.truncf %340 : vector<4x32xf32> to vector<4x32xbf16>
    %cst_91 = arith.constant dense<0.000000e+00> : vector<4x256xf32>
    %342 = tpu.matmul %341, %265, %cst_91 {dimension_numbers = #tpu.dot_dimension_numbers<[1], [0], [0], [1], [0, 0, 1, 1], [], []>} : vector<4x32xbf16>, vector<32x256xbf16>, vector<4x256xf32> -> vector<4x256xf32>
    %343 = vector.extract_strided_slice %342 {offsets = [0, 0], sizes = [2, 128], strides = [1, 1]} : vector<4x256xf32> to vector<2x128xf32>
    %344 = vector.extract_strided_slice %342 {offsets = [2, 128], sizes = [2, 128], strides = [1, 1]} : vector<4x256xf32> to vector<2x128xf32>
    %345 = tpu.concatenate %343, %344 in 0 : vector<2x128xf32>, vector<2x128xf32> -> vector<4x128xf32>
    %346 = arith.addf %274, %345 : vector<4x128xf32>
    %cst_92 = arith.constant 5.000000e-01 : f32
    %347 = vector.broadcast %cst_92 : f32 to vector<4x128xf32>
    %348 = arith.mulf %347, %346 : vector<4x128xf32>
    %349 = math.tanh %348 : vector<4x128xf32>
    %cst_93 = arith.constant 5.000000e-01 : f32
    %350 = vector.broadcast %cst_93 : f32 to vector<4x128xf32>
    %351 = arith.mulf %350, %349 : vector<4x128xf32>
    %cst_94 = arith.constant 5.000000e-01 : f32
    %352 = vector.broadcast %cst_94 : f32 to vector<4x128xf32>
    %353 = arith.addf %351, %352 : vector<4x128xf32>
    %354 = math.tanh %346 : vector<4x128xf32>
    %355 = vector.extract_strided_slice %353 {offsets = [0, 0], sizes = [4, 32], strides = [1, 1]} : vector<4x128xf32> to vector<4x32xf32>
    %356 = vector.extract_strided_slice %353 {offsets = [0, 32], sizes = [4, 32], strides = [1, 1]} : vector<4x128xf32> to vector<4x32xf32>
    %357 = vector.extract_strided_slice %354 {offsets = [0, 64], sizes = [4, 32], strides = [1, 1]} : vector<4x128xf32> to vector<4x32xf32>
    %358 = vector.extract_strided_slice %353 {offsets = [0, 96], sizes = [4, 32], strides = [1, 1]} : vector<4x128xf32> to vector<4x32xf32>
    %359 = arith.mulf %356, %338 : vector<4x32xf32>
    %360 = arith.mulf %355, %357 : vector<4x32xf32>
    %361 = arith.addf %359, %360 : vector<4x32xf32>
    %362 = math.tanh %361 : vector<4x32xf32>
    %363 = arith.mulf %358, %362 : vector<4x32xf32>
    %364 = arith.truncf %363 : vector<4x32xf32> to vector<4x32xbf16>
    %cst_95 = arith.constant dense<0.000000e+00> : vector<4x256xf32>
    %365 = tpu.matmul %364, %265, %cst_95 {dimension_numbers = #tpu.dot_dimension_numbers<[1], [0], [0], [1], [0, 0, 1, 1], [], []>} : vector<4x32xbf16>, vector<32x256xbf16>, vector<4x256xf32> -> vector<4x256xf32>
    %366 = vector.extract_strided_slice %365 {offsets = [0, 0], sizes = [2, 128], strides = [1, 1]} : vector<4x256xf32> to vector<2x128xf32>
    %367 = vector.extract_strided_slice %365 {offsets = [2, 128], sizes = [2, 128], strides = [1, 1]} : vector<4x256xf32> to vector<2x128xf32>
    %368 = tpu.concatenate %366, %367 in 0 : vector<2x128xf32>, vector<2x128xf32> -> vector<4x128xf32>
    %369 = arith.addf %277, %368 : vector<4x128xf32>
    %cst_96 = arith.constant 5.000000e-01 : f32
    %370 = vector.broadcast %cst_96 : f32 to vector<4x128xf32>
    %371 = arith.mulf %370, %369 : vector<4x128xf32>
    %372 = math.tanh %371 : vector<4x128xf32>
    %cst_97 = arith.constant 5.000000e-01 : f32
    %373 = vector.broadcast %cst_97 : f32 to vector<4x128xf32>
    %374 = arith.mulf %373, %372 : vector<4x128xf32>
    %cst_98 = arith.constant 5.000000e-01 : f32
    %375 = vector.broadcast %cst_98 : f32 to vector<4x128xf32>
    %376 = arith.addf %374, %375 : vector<4x128xf32>
    %377 = math.tanh %369 : vector<4x128xf32>
    %378 = vector.extract_strided_slice %376 {offsets = [0, 0], sizes = [4, 32], strides = [1, 1]} : vector<4x128xf32> to vector<4x32xf32>
    %379 = vector.extract_strided_slice %376 {offsets = [0, 32], sizes = [4, 32], strides = [1, 1]} : vector<4x128xf32> to vector<4x32xf32>
    %380 = vector.extract_strided_slice %377 {offsets = [0, 64], sizes = [4, 32], strides = [1, 1]} : vector<4x128xf32> to vector<4x32xf32>
    %381 = vector.extract_strided_slice %376 {offsets = [0, 96], sizes = [4, 32], strides = [1, 1]} : vector<4x128xf32> to vector<4x32xf32>
    %382 = arith.mulf %379, %361 : vector<4x32xf32>
    %383 = arith.mulf %378, %380 : vector<4x32xf32>
    %384 = arith.addf %382, %383 : vector<4x32xf32>
    %385 = math.tanh %384 : vector<4x32xf32>
    %386 = arith.mulf %381, %385 : vector<4x32xf32>
    %387 = arith.truncf %386 : vector<4x32xf32> to vector<4x32xbf16>
    %cst_99 = arith.constant dense<0.000000e+00> : vector<4x256xf32>
    %388 = tpu.matmul %387, %265, %cst_99 {dimension_numbers = #tpu.dot_dimension_numbers<[1], [0], [0], [1], [0, 0, 1, 1], [], []>} : vector<4x32xbf16>, vector<32x256xbf16>, vector<4x256xf32> -> vector<4x256xf32>
    %389 = vector.extract_strided_slice %388 {offsets = [0, 0], sizes = [2, 128], strides = [1, 1]} : vector<4x256xf32> to vector<2x128xf32>
    %390 = vector.extract_strided_slice %388 {offsets = [2, 128], sizes = [2, 128], strides = [1, 1]} : vector<4x256xf32> to vector<2x128xf32>
    %391 = tpu.concatenate %389, %390 in 0 : vector<2x128xf32>, vector<2x128xf32> -> vector<4x128xf32>
    %392 = arith.addf %280, %391 : vector<4x128xf32>
    %cst_100 = arith.constant 5.000000e-01 : f32
    %393 = vector.broadcast %cst_100 : f32 to vector<4x128xf32>
    %394 = arith.mulf %393, %392 : vector<4x128xf32>
    %395 = math.tanh %394 : vector<4x128xf32>
    %cst_101 = arith.constant 5.000000e-01 : f32
    %396 = vector.broadcast %cst_101 : f32 to vector<4x128xf32>
    %397 = arith.mulf %396, %395 : vector<4x128xf32>
    %cst_102 = arith.constant 5.000000e-01 : f32
    %398 = vector.broadcast %cst_102 : f32 to vector<4x128xf32>
    %399 = arith.addf %397, %398 : vector<4x128xf32>
    %400 = math.tanh %392 : vector<4x128xf32>
    %401 = vector.extract_strided_slice %399 {offsets = [0, 0], sizes = [4, 32], strides = [1, 1]} : vector<4x128xf32> to vector<4x32xf32>
    %402 = vector.extract_strided_slice %399 {offsets = [0, 32], sizes = [4, 32], strides = [1, 1]} : vector<4x128xf32> to vector<4x32xf32>
    %403 = vector.extract_strided_slice %400 {offsets = [0, 64], sizes = [4, 32], strides = [1, 1]} : vector<4x128xf32> to vector<4x32xf32>
    %404 = vector.extract_strided_slice %399 {offsets = [0, 96], sizes = [4, 32], strides = [1, 1]} : vector<4x128xf32> to vector<4x32xf32>
    %405 = arith.mulf %402, %384 : vector<4x32xf32>
    %406 = arith.mulf %401, %403 : vector<4x32xf32>
    %407 = arith.addf %405, %406 : vector<4x32xf32>
    %408 = math.tanh %407 : vector<4x32xf32>
    %409 = arith.mulf %404, %408 : vector<4x32xf32>
    %410 = arith.truncf %409 : vector<4x32xf32> to vector<4x32xbf16>
    %cst_103 = arith.constant dense<0.000000e+00> : vector<4x256xf32>
    %411 = tpu.matmul %410, %265, %cst_103 {dimension_numbers = #tpu.dot_dimension_numbers<[1], [0], [0], [1], [0, 0, 1, 1], [], []>} : vector<4x32xbf16>, vector<32x256xbf16>, vector<4x256xf32> -> vector<4x256xf32>
    %412 = vector.extract_strided_slice %411 {offsets = [0, 0], sizes = [2, 128], strides = [1, 1]} : vector<4x256xf32> to vector<2x128xf32>
    %413 = vector.extract_strided_slice %411 {offsets = [2, 128], sizes = [2, 128], strides = [1, 1]} : vector<4x256xf32> to vector<2x128xf32>
    %414 = tpu.concatenate %412, %413 in 0 : vector<2x128xf32>, vector<2x128xf32> -> vector<4x128xf32>
    %415 = arith.addf %283, %414 : vector<4x128xf32>
    %cst_104 = arith.constant 5.000000e-01 : f32
    %416 = vector.broadcast %cst_104 : f32 to vector<4x128xf32>
    %417 = arith.mulf %416, %415 : vector<4x128xf32>
    %418 = math.tanh %417 : vector<4x128xf32>
    %cst_105 = arith.constant 5.000000e-01 : f32
    %419 = vector.broadcast %cst_105 : f32 to vector<4x128xf32>
    %420 = arith.mulf %419, %418 : vector<4x128xf32>
    %cst_106 = arith.constant 5.000000e-01 : f32
    %421 = vector.broadcast %cst_106 : f32 to vector<4x128xf32>
    %422 = arith.addf %420, %421 : vector<4x128xf32>
    %423 = math.tanh %415 : vector<4x128xf32>
    %424 = vector.extract_strided_slice %422 {offsets = [0, 0], sizes = [4, 32], strides = [1, 1]} : vector<4x128xf32> to vector<4x32xf32>
    %425 = vector.extract_strided_slice %422 {offsets = [0, 32], sizes = [4, 32], strides = [1, 1]} : vector<4x128xf32> to vector<4x32xf32>
    %426 = vector.extract_strided_slice %423 {offsets = [0, 64], sizes = [4, 32], strides = [1, 1]} : vector<4x128xf32> to vector<4x32xf32>
    %427 = vector.extract_strided_slice %422 {offsets = [0, 96], sizes = [4, 32], strides = [1, 1]} : vector<4x128xf32> to vector<4x32xf32>
    %428 = arith.mulf %425, %407 : vector<4x32xf32>
    %429 = arith.mulf %424, %426 : vector<4x32xf32>
    %430 = arith.addf %428, %429 : vector<4x32xf32>
    %431 = math.tanh %430 : vector<4x32xf32>
    %432 = arith.mulf %427, %431 : vector<4x32xf32>
    %433 = arith.truncf %432 : vector<4x32xf32> to vector<4x32xbf16>
    %cst_107 = arith.constant dense<0.000000e+00> : vector<4x256xf32>
    %434 = tpu.matmul %433, %265, %cst_107 {dimension_numbers = #tpu.dot_dimension_numbers<[1], [0], [0], [1], [0, 0, 1, 1], [], []>} : vector<4x32xbf16>, vector<32x256xbf16>, vector<4x256xf32> -> vector<4x256xf32>
    %435 = vector.extract_strided_slice %434 {offsets = [0, 0], sizes = [2, 128], strides = [1, 1]} : vector<4x256xf32> to vector<2x128xf32>
    %436 = vector.extract_strided_slice %434 {offsets = [2, 128], sizes = [2, 128], strides = [1, 1]} : vector<4x256xf32> to vector<2x128xf32>
    %437 = tpu.concatenate %435, %436 in 0 : vector<2x128xf32>, vector<2x128xf32> -> vector<4x128xf32>
    %438 = arith.addf %286, %437 : vector<4x128xf32>
    %cst_108 = arith.constant 5.000000e-01 : f32
    %439 = vector.broadcast %cst_108 : f32 to vector<4x128xf32>
    %440 = arith.mulf %439, %438 : vector<4x128xf32>
    %441 = math.tanh %440 : vector<4x128xf32>
    %cst_109 = arith.constant 5.000000e-01 : f32
    %442 = vector.broadcast %cst_109 : f32 to vector<4x128xf32>
    %443 = arith.mulf %442, %441 : vector<4x128xf32>
    %cst_110 = arith.constant 5.000000e-01 : f32
    %444 = vector.broadcast %cst_110 : f32 to vector<4x128xf32>
    %445 = arith.addf %443, %444 : vector<4x128xf32>
    %446 = math.tanh %438 : vector<4x128xf32>
    %447 = vector.extract_strided_slice %445 {offsets = [0, 0], sizes = [4, 32], strides = [1, 1]} : vector<4x128xf32> to vector<4x32xf32>
    %448 = vector.extract_strided_slice %445 {offsets = [0, 32], sizes = [4, 32], strides = [1, 1]} : vector<4x128xf32> to vector<4x32xf32>
    %449 = vector.extract_strided_slice %446 {offsets = [0, 64], sizes = [4, 32], strides = [1, 1]} : vector<4x128xf32> to vector<4x32xf32>
    %450 = vector.extract_strided_slice %445 {offsets = [0, 96], sizes = [4, 32], strides = [1, 1]} : vector<4x128xf32> to vector<4x32xf32>
    %451 = arith.mulf %448, %430 : vector<4x32xf32>
    %452 = arith.mulf %447, %449 : vector<4x32xf32>
    %453 = arith.addf %451, %452 : vector<4x32xf32>
    %454 = math.tanh %453 : vector<4x32xf32>
    %455 = arith.mulf %450, %454 : vector<4x32xf32>
    %456 = arith.truncf %455 : vector<4x32xf32> to vector<4x32xbf16>
    %cst_111 = arith.constant dense<0.000000e+00> : vector<4x256xf32>
    %457 = tpu.matmul %456, %265, %cst_111 {dimension_numbers = #tpu.dot_dimension_numbers<[1], [0], [0], [1], [0, 0, 1, 1], [], []>} : vector<4x32xbf16>, vector<32x256xbf16>, vector<4x256xf32> -> vector<4x256xf32>
    %458 = vector.extract_strided_slice %457 {offsets = [0, 0], sizes = [2, 128], strides = [1, 1]} : vector<4x256xf32> to vector<2x128xf32>
    %459 = vector.extract_strided_slice %457 {offsets = [2, 128], sizes = [2, 128], strides = [1, 1]} : vector<4x256xf32> to vector<2x128xf32>
    %460 = tpu.concatenate %458, %459 in 0 : vector<2x128xf32>, vector<2x128xf32> -> vector<4x128xf32>
    %461 = arith.addf %289, %460 : vector<4x128xf32>
    %cst_112 = arith.constant 5.000000e-01 : f32
    %462 = vector.broadcast %cst_112 : f32 to vector<4x128xf32>
    %463 = arith.mulf %462, %461 : vector<4x128xf32>
    %464 = math.tanh %463 : vector<4x128xf32>
    %cst_113 = arith.constant 5.000000e-01 : f32
    %465 = vector.broadcast %cst_113 : f32 to vector<4x128xf32>
    %466 = arith.mulf %465, %464 : vector<4x128xf32>
    %cst_114 = arith.constant 5.000000e-01 : f32
    %467 = vector.broadcast %cst_114 : f32 to vector<4x128xf32>
    %468 = arith.addf %466, %467 : vector<4x128xf32>
    %469 = math.tanh %461 : vector<4x128xf32>
    %470 = vector.extract_strided_slice %468 {offsets = [0, 0], sizes = [4, 32], strides = [1, 1]} : vector<4x128xf32> to vector<4x32xf32>
    %471 = vector.extract_strided_slice %468 {offsets = [0, 32], sizes = [4, 32], strides = [1, 1]} : vector<4x128xf32> to vector<4x32xf32>
    %472 = vector.extract_strided_slice %469 {offsets = [0, 64], sizes = [4, 32], strides = [1, 1]} : vector<4x128xf32> to vector<4x32xf32>
    %473 = vector.extract_strided_slice %468 {offsets = [0, 96], sizes = [4, 32], strides = [1, 1]} : vector<4x128xf32> to vector<4x32xf32>
    %474 = arith.mulf %471, %453 : vector<4x32xf32>
    %475 = arith.mulf %470, %472 : vector<4x32xf32>
    %476 = arith.addf %474, %475 : vector<4x32xf32>
    %477 = math.tanh %476 : vector<4x32xf32>
    %478 = arith.mulf %473, %477 : vector<4x32xf32>
    %479 = vector.extract_strided_slice %478 {offsets = [0, 0], sizes = [2, 32], strides = [1, 1]} : vector<4x32xf32> to vector<2x32xf32>
    %480 = tpu.concatenate %479, %317 in 1 : vector<2x32xf32>, vector<2x32xf32> -> vector<2x64xf32>
    %c0_i32_115 = arith.constant 0 : i32
    %481 = tpu.memref_slice %arg20[%c0_i32_115] : memref<3x!tpu.dma_semaphore, #tpu.memory_space<semaphore_mem>> -> memref<1x!tpu.dma_semaphore, #tpu.memory_space<semaphore_mem>>
    %482 = tpu.memref_squeeze %481 : memref<1x!tpu.dma_semaphore, #tpu.memory_space<semaphore_mem>> -> memref<!tpu.dma_semaphore, #tpu.memory_space<semaphore_mem>>
    tpu.wait_dma2 semaphore(%482 : memref<!tpu.dma_semaphore, #tpu.memory_space<semaphore_mem>>) src(%arg12 : memref<64x896xbf16, #tpu.memory_space<any>>) dst(%arg17 : memref<64x896xbf16, #tpu.memory_space<vmem>>)
    %c1_i32_116 = arith.constant 1 : i32
    %483 = tpu.memref_slice %arg20[%c1_i32_116] : memref<3x!tpu.dma_semaphore, #tpu.memory_space<semaphore_mem>> -> memref<1x!tpu.dma_semaphore, #tpu.memory_space<semaphore_mem>>
    %484 = tpu.memref_squeeze %483 : memref<1x!tpu.dma_semaphore, #tpu.memory_space<semaphore_mem>> -> memref<!tpu.dma_semaphore, #tpu.memory_space<semaphore_mem>>
    tpu.wait_dma2 semaphore(%484 : memref<!tpu.dma_semaphore, #tpu.memory_space<semaphore_mem>>) src(%arg13 : memref<896x512xbf16, #tpu.memory_space<any>>) dst(%arg18 : memref<896x512xbf16, #tpu.memory_space<vmem>>)
    %c2_i32_117 = arith.constant 2 : i32
    %485 = tpu.memref_slice %arg20[%c2_i32_117] : memref<3x!tpu.dma_semaphore, #tpu.memory_space<semaphore_mem>> -> memref<1x!tpu.dma_semaphore, #tpu.memory_space<semaphore_mem>>
    %486 = tpu.memref_squeeze %485 : memref<1x!tpu.dma_semaphore, #tpu.memory_space<semaphore_mem>> -> memref<!tpu.dma_semaphore, #tpu.memory_space<semaphore_mem>>
    tpu.wait_dma2 semaphore(%486 : memref<!tpu.dma_semaphore, #tpu.memory_space<semaphore_mem>>) src(%arg14 : memref<512x128xbf16, #tpu.memory_space<any>>) dst(%arg19 : memref<512x128xbf16, #tpu.memory_space<vmem>>)
    %487 = arith.truncf %480 : vector<2x64xf32> to vector<2x64xbf16>
    %c0_118 = arith.constant 0 : index
    %c0_119 = arith.constant 0 : index
    %488 = vector.load %arg17[%c0_118, %c0_119] : memref<64x896xbf16, #tpu.memory_space<vmem>>, vector<64x896xbf16>
    %cst_120 = arith.constant dense<0.000000e+00> : vector<2x896xf32>
    %489 = tpu.matmul %487, %488, %cst_120 {dimension_numbers = #tpu.dot_dimension_numbers<[1], [0], [0], [1], [0, 0, 1, 1], [], []>} : vector<2x64xbf16>, vector<64x896xbf16>, vector<2x896xf32> -> vector<2x896xf32>
    %c0_121 = arith.constant 0 : index
    %c0_122 = arith.constant 0 : index
    %490 = vector.load %arg9[%c0_121, %c0_122] : memref<1x896xf32, #tpu.memory_space<vmem>>, vector<1x896xf32>
    %491 = vector.broadcast %490 : vector<1x896xf32> to vector<2x896xf32>
    %492 = arith.addf %489, %491 : vector<2x896xf32>
    %cst_123 = arith.constant 0.000000e+00 : f32
    %493 = vector.broadcast %cst_123 : f32 to vector<2x896xf32>
    %494 = arith.maximumf %492, %493 : vector<2x896xf32>
    %495 = arith.truncf %494 : vector<2x896xf32> to vector<2x896xbf16>
    %c0_124 = arith.constant 0 : index
    %c0_125 = arith.constant 0 : index
    %496 = vector.load %arg18[%c0_124, %c0_125] : memref<896x512xbf16, #tpu.memory_space<vmem>>, vector<896x512xbf16>
    %cst_126 = arith.constant dense<0.000000e+00> : vector<2x512xf32>
    %497 = tpu.matmul %495, %496, %cst_126 {dimension_numbers = #tpu.dot_dimension_numbers<[1], [0], [0], [1], [0, 0, 1, 1], [], []>} : vector<2x896xbf16>, vector<896x512xbf16>, vector<2x512xf32> -> vector<2x512xf32>
    %c0_127 = arith.constant 0 : index
    %c0_128 = arith.constant 0 : index
    %498 = vector.load %arg10[%c0_127, %c0_128] : memref<1x512xf32, #tpu.memory_space<vmem>>, vector<1x512xf32>
    %499 = vector.broadcast %498 : vector<1x512xf32> to vector<2x512xf32>
    %500 = arith.addf %497, %499 : vector<2x512xf32>
    %cst_129 = arith.constant 0.000000e+00 : f32
    %501 = vector.broadcast %cst_129 : f32 to vector<2x512xf32>
    %502 = arith.maximumf %500, %501 : vector<2x512xf32>
    %503 = arith.truncf %502 : vector<2x512xf32> to vector<2x512xbf16>
    %c0_130 = arith.constant 0 : index
    %c0_131 = arith.constant 0 : index
    %504 = vector.load %arg19[%c0_130, %c0_131] : memref<512x128xbf16, #tpu.memory_space<vmem>>, vector<512x128xbf16>
    %cst_132 = arith.constant dense<0.000000e+00> : vector<2x128xf32>
    %505 = tpu.matmul %503, %504, %cst_132 {dimension_numbers = #tpu.dot_dimension_numbers<[1], [0], [0], [1], [0, 0, 1, 1], [], []>} : vector<2x512xbf16>, vector<512x128xbf16>, vector<2x128xf32> -> vector<2x128xf32>
    %c0_133 = arith.constant 0 : index
    %c0_134 = arith.constant 0 : index
    %506 = vector.load %arg11[%c0_133, %c0_134] : memref<1x128xf32, #tpu.memory_space<vmem>>, vector<1x128xf32>
    %507 = vector.broadcast %506 : vector<1x128xf32> to vector<2x128xf32>
    %508 = arith.addf %505, %507 : vector<2x128xf32>
    %c0_135 = arith.constant 0 : index
    %c0_136 = arith.constant 0 : index
    %509 = vector.load %arg15[%c0_135, %c0_136] : memref<2x128xf32, #tpu.memory_space<vmem>>, vector<2x128xf32>
    tpu.vector_store %arg15[%c0_135, %c0_136], %508 {strides = array<i32>} : memref<2x128xf32, #tpu.memory_space<vmem>>, vector<2x128xf32>,
    return
  }
}

</mosaic_0001>

<llo_original>
// kernel: net_forward.1
$region0: #{net_forward.1}
  #allocation0 [shape = 'u32[]', space=smem, size = 0x4, offset = 0x4, fixed_abs, tag = 'smem constant byte address 0x4 - core index']
  #allocation1 [shape = 'u32[72,128]{1,0:T(1,128)}', space=vmem, size = 0x9000, scoped, tag = 'internal scratch']
  #allocation2 [shape = 'f32[16,64]{1,0:T(8,128)}', space=vmem, size = 0x2000, scoped, tag = 'scratch operand']
  #allocation3 [shape = 'bf16[64,896]{1,0:T(8,128)(2,1)}', space=vmem, size = 0x1c000, scoped, tag = 'scratch operand']
  #allocation4 [shape = 'bf16[896,512]{1,0:T(8,128)(2,1)}', space=vmem, size = 0xe0000, scoped, tag = 'scratch operand']
  #allocation5 [shape = 'bf16[512,128]{1,0:T(8,128)(2,1)}', space=vmem, size = 0x20000, scoped, tag = 'scratch operand']
  #allocation6 [shape = 's32[3]{0}', space=sflag, size = 0xc, scoped, tag = 'scratch operand']
  #allocation22 [shape = 's32[]', space=sflag, size = 0x4, offset = 0, fixed_abs, tag = 'sflag constant byte address 0x0 - dummy sync flag']
  #allocation23 [shape = 's32[]', space=sflag, size = 0x4, offset = 0, fixed_abs, tag = 'sflag constant byte address 0x0 - dummy sync flag']
  #allocation24 [shape = 'u32[]', space=smem, size = 0x4, offset = 0x44, fixed_abs, tag = 'smem constant byte address 0x44 - assertion arg 0']
  #allocation25 [shape = 'u32[]', space=smem, size = 0x4, offset = 0x48, fixed_abs, tag = 'smem constant byte address 0x48 - assertion arg 1']
  #allocation26 [shape = 's32[]', space=sflag, size = 0x4, offset = 0, fixed_abs, tag = 'sflag constant byte address 0x0 - dummy sync flag']
  #allocation27 [shape = 's32[]', space=sflag, size = 0x4, offset = 0, fixed_abs, tag = 'sflag constant byte address 0x0 - dummy sync flag']
  #allocation28 [shape = 's32[]', space=sflag, size = 0x4, offset = 0, fixed_abs, tag = 'sflag constant byte address 0x0 - dummy sync flag']
  #allocation29 [shape = 's32[]', space=sflag, size = 0x4, offset = 0, fixed_abs, tag = 'sflag constant byte address 0x0 - dummy sync flag']
  %s0 = inlined_call_operand.vmem [shape: f32[16,16], index: 0, kind: input, shape index: {}]
  %s1 = inlined_call_operand.hbm [shape: bf16[16,256], index: 1, kind: input, shape index: {}]
  %s2 = inlined_call_operand.vmem [shape: bf16[32,256], index: 2, kind: input, shape index: {}]
  %s3 = inlined_call_operand.hbm [shape: f32[1,256], index: 3, kind: input, shape index: {}]
  %s4 = inlined_call_operand.hbm [shape: bf16[64,256], index: 4, kind: input, shape index: {}]
  %s5 = inlined_call_operand.hbm [shape: bf16[32,256], index: 5, kind: input, shape index: {}]
  %s6 = inlined_call_operand.hbm [shape: f32[1,256], index: 6, kind: input, shape index: {}]
  %s7 = inlined_call_operand.vmem [shape: f32[2,4,32], index: 7, kind: input, shape index: {}]
  %s8 = inlined_call_operand.vmem [shape: f32[2,4,32], index: 8, kind: input, shape index: {}]
  %s9 = inlined_call_operand.hbm [shape: f32[1,896], index: 9, kind: input, shape index: {}]
  %s10 = inlined_call_operand.hbm [shape: f32[1,512], index: 10, kind: input, shape index: {}]
  %s11 = inlined_call_operand.hbm [shape: f32[1,128], index: 11, kind: input, shape index: {}]
  %s12 = inlined_call_operand.hbm [shape: bf16[64,896], index: 12, kind: input, shape index: {}]
  %s13 = inlined_call_operand.hbm [shape: bf16[896,512], index: 13, kind: input, shape index: {}]
  %s14 = inlined_call_operand.hbm [shape: bf16[512,128], index: 14, kind: input, shape index: {}]
  %s15 = inlined_call_operand.hbm [shape: f32[2,128], index: 15, kind: output, shape index: {}]
  %s16 = sld [smem:[#allocation0]]
  $region102: #{net_forward.1} parent=0
    _
  %s18 = ssub.s32 1, %s16
  %s19 = scalar_select 0, %s18, %s16
  $region1: #{net_forward.1} parent=0
    #allocation7 [shape = 'u8[8192]{0}', space=vmem, size = 0x2000, scoped, tag = 'input window, operand 1, single buffered']
    #allocation8 [shape = 's32[1]{0}', space=sflag, size = 0x4, scoped, tag = 'scoped memory for net_forward.1']
    #allocation9 [shape = 's32[1]{0}', space=sflag, size = 0x4, scoped, tag = 'scoped memory for net_forward.1']
    #allocation10 [shape = 'u8[1024]{0}', space=vmem, size = 0x400, scoped, tag = 'input window, operand 3, single buffered']
    #allocation11 [shape = 's32[1]{0}', space=sflag, size = 0x4, scoped, tag = 'scoped memory for net_forward.1']
    #allocation12 [shape = 'u8[32768]{0}', space=vmem, size = 0x8000, scoped, tag = 'input window, operand 4, single buffered']
    #allocation13 [shape = 'u8[16384]{0}', space=vmem, size = 0x4000, scoped, tag = 'input window, operand 5, single buffered']
    #allocation14 [shape = 's32[1]{0}', space=sflag, size = 0x4, scoped, tag = 'scoped memory for net_forward.1']
    #allocation15 [shape = 'u8[1024]{0}', space=vmem, size = 0x400, scoped, tag = 'input window, operand 6, single buffered']
    #allocation16 [shape = 'u8[3584]{0}', space=vmem, size = 0x1000, scoped, tag = 'input window, operand 9, single buffered']
    #allocation17 [shape = 's32[1]{0}', space=sflag, size = 0x4, scoped, tag = 'scoped memory for net_forward.1']
    #allocation18 [shape = 'u8[2048]{0}', space=vmem, size = 0x800, scoped, tag = 'input window, operand 10, single buffered']
    #allocation19 [shape = 'u8[512]{0}', space=vmem, size = 0x400, scoped, tag = 'input window, operand 11, single buffered']
    #allocation20 [shape = 's32[1]{0}', space=sflag, size = 0x4, scoped, tag = 'scoped memory for net_forward.1']
    #allocation21 [shape = 'u8[1024]{0}', space=vmem, size = 0x400, scoped, tag = 'output window, operand 0, single buffered']
    %20 = vsyncpa [#allocation8], 0
    %21 = vsyncpa [#allocation11], 0
    %22 = vsyncpa [#allocation14], 0
    %23 = vsyncpa [#allocation17], 0
    %24 = vsyncpa [#allocation20], 0
    %25 = vsyncpa [#allocation9], 0
    // Predicated region
    $region2: #{net_forward.1} parent=1 // pred_check
      _
    $region3: #{net_forward.1} parent=1 // pred_check_branch
      %27 = sbr.rel (0) target = $region5
    $region4: #{net_forward.1} parent=1 // pred_region
      _
    $region5: #{net_forward.1} parent=1 // pred_fallthru
      _
    // Predicated region
    $region6: #{net_forward.1} parent=1 // pred_check
      _
    $region7: #{net_forward.1} parent=1 // pred_check_branch
      %29 = sbr.rel (0) target = $region9
    $region8: #{net_forward.1} parent=1 // pred_region
      %31 = vsyncadd [#allocation8], 0
      %s32 = sshll.u32 %s1, 4
      %s33 = int_to_ptr.hbm [resolvable:$true] %s32
      %s34 = sshll.u32 [#allocation7], 4
      %s35 = int_to_ptr.vmem [resolvable:$true] %s34
      %40 = dma.hbm_to_vmem [thread:$0]  %s33, 256, %s35, [#allocation8], 128, 128, 8
    $region9: #{net_forward.1} parent=1 // pred_fallthru
      _
    // Predicated region
    $region10: #{net_forward.1} parent=1 // pred_check
      _
    $region11: #{net_forward.1} parent=1 // pred_check_branch
      %42 = sbr.rel (0) target = $region13
    $region12: #{net_forward.1} parent=1 // pred_region
      _
    $region13: #{net_forward.1} parent=1 // pred_fallthru
      _
    // Predicated region
    $region14: #{net_forward.1} parent=1 // pred_check
      _
    $region15: #{net_forward.1} parent=1 // pred_check_branch
      %44 = sbr.rel (0) target = $region17
    $region16: #{net_forward.1} parent=1 // pred_region
      %46 = vsyncadd [#allocation11], 0
      %s48 = sshll.u32 %s3, 4
      %s49 = int_to_ptr.hbm [resolvable:$true] %s48
      %s50 = sshll.u32 [#allocation10], 4
      %s51 = int_to_ptr.vmem [resolvable:$true] %s50
      %53 = dma.hbm_to_vmem [thread:$0]  %s49, 32, %s51, [#allocation11]
    $region17: #{net_forward.1} parent=1 // pred_fallthru
      _
    // Predicated region
    $region18: #{net_forward.1} parent=1 // pred_check
      _
    $region19: #{net_forward.1} parent=1 // pred_check_branch
      %55 = sbr.rel (0) target = $region21
    $region20: #{net_forward.1} parent=1 // pred_region
      %57 = vsyncadd [#allocation11], 0
      %s58 = sshll.u32 %s4, 4
      %s59 = int_to_ptr.hbm [resolvable:$true] %s58
      %s60 = sshll.u32 [#allocation12], 4
      %s61 = int_to_ptr.vmem [resolvable:$true] %s60
      %66 = dma.hbm_to_vmem [thread:$0]  %s59, 1024, %s61, [#allocation11], 128, 128, 8
    $region21: #{net_forward.1} parent=1 // pred_fallthru
      _
    // Predicated region
    $region22: #{net_forward.1} parent=1 // pred_check
      _
    $region23: #{net_forward.1} parent=1 // pred_check_branch
      %68 = sbr.rel (0) target = $region25
    $region24: #{net_forward.1} parent=1 // pred_region
      %70 = vsyncadd [#allocation14], 0
      %s71 = sshll.u32 %s5, 4
      %s72 = int_to_ptr.hbm [resolvable:$true] %s71
      %s73 = sshll.u32 [#allocation13], 4
      %s74 = int_to_ptr.vmem [resolvable:$true] %s73
      %79 = dma.hbm_to_vmem [thread:$0]  %s72, 512, %s74, [#allocation14], 128, 128, 8
    $region25: #{net_forward.1} parent=1 // pred_fallthru
      _
    // Predicated region
    $region26: #{net_forward.1} parent=1 // pred_check
      _
    $region27: #{net_forward.1} parent=1 // pred_check_branch
      %81 = sbr.rel (0) target = $region29
    $region28: #{net_forward.1} parent=1 // pred_region
      %83 = vsyncadd [#allocation14], 0
      %s85 = sshll.u32 %s6, 4
      %s86 = int_to_ptr.hbm [resolvable:$true] %s85
      %s87 = sshll.u32 [#allocation15], 4
      %s88 = int_to_ptr.vmem [resolvable:$true] %s87
      %90 = dma.hbm_to_vmem [thread:$0]  %s86, 32, %s88, [#allocation14]
    $region29: #{net_forward.1} parent=1 // pred_fallthru
      _
    // Predicated region
    $region30: #{net_forward.1} parent=1 // pred_check
      _
    $region31: #{net_forward.1} parent=1 // pred_check_branch
      %92 = sbr.rel (0) target = $region33
    $region32: #{net_forward.1} parent=1 // pred_region
      _
    $region33: #{net_forward.1} parent=1 // pred_fallthru
      _
    // Predicated region
    $region34: #{net_forward.1} parent=1 // pred_check
      _
    $region35: #{net_forward.1} parent=1 // pred_check_branch
      %94 = sbr.rel (0) target = $region37
    $region36: #{net_forward.1} parent=1 // pred_region
      _
    $region37: #{net_forward.1} parent=1 // pred_fallthru
      _
    // Predicated region
    $region38: #{net_forward.1} parent=1 // pred_check
      _
    $region39: #{net_forward.1} parent=1 // pred_check_branch
      %96 = sbr.rel (0) target = $region41
    $region40: #{net_forward.1} parent=1 // pred_region
      %98 = vsyncadd [#allocation17], 0
      %s100 = sshll.u32 %s9, 4
      %s101 = int_to_ptr.hbm [resolvable:$true] %s100
      %s102 = sshll.u32 [#allocation16], 4
      %s103 = int_to_ptr.vmem [resolvable:$true] %s102
      %105 = dma.hbm_to_vmem [thread:$0]  %s101, 112, %s103, [#allocation17]
    $region41: #{net_forward.1} parent=1 // pred_fallthru
      _
    // Predicated region
    $region42: #{net_forward.1} parent=1 // pred_check
      _
    $region43: #{net_forward.1} parent=1 // pred_check_branch
      %107 = sbr.rel (0) target = $region45
    $region44: #{net_forward.1} parent=1 // pred_region
      %109 = vsyncadd [#allocation17], 0
      %s111 = sshll.u32 %s10, 4
      %s112 = int_to_ptr.hbm [resolvable:$true] %s111
      %s113 = sshll.u32 [#allocation18], 4
      %s114 = int_to_ptr.vmem [resolvable:$true] %s113
      %116 = dma.hbm_to_vmem [thread:$0]  %s112, 64, %s114, [#allocation17]
    $region45: #{net_forward.1} parent=1 // pred_fallthru
      _
    // Predicated region
    $region46: #{net_forward.1} parent=1 // pred_check
      _
    $region47: #{net_forward.1} parent=1 // pred_check_branch
      %118 = sbr.rel (0) target = $region49
    $region48: #{net_forward.1} parent=1 // pred_region
      %120 = vsyncadd [#allocation20], 0
      %s122 = sshll.u32 %s11, 4
      %s123 = int_to_ptr.hbm [resolvable:$true] %s122
      %s124 = sshll.u32 [#allocation19], 4
      %s125 = int_to_ptr.vmem [resolvable:$true] %s124
      %127 = dma.hbm_to_vmem [thread:$0]  %s123, 16, %s125, [#allocation20]
    $region49: #{net_forward.1} parent=1 // pred_fallthru
      _
    // Predicated region
    $region50: #{net_forward.1} parent=1 // pred_check
      _
    $region51: #{net_forward.1} parent=1 // pred_check_branch
      %129 = sbr.rel (0) target = $region53
    $region52: #{net_forward.1} parent=1 // pred_region
      %131 = dma.done [#allocation8], 256
    $region53: #{net_forward.1} parent=1 // pred_fallthru
      _
    // Predicated region
    $region54: #{net_forward.1} parent=1 // pred_check
      _
    $region55: #{net_forward.1} parent=1 // pred_check_branch
      %133 = sbr.rel (0) target = $region57
    $region56: #{net_forward.1} parent=1 // pred_region
      %135 = dma.done [#allocation11], 32
    $region57: #{net_forward.1} parent=1 // pred_fallthru
      _
    // Predicated region
    $region58: #{net_forward.1} parent=1 // pred_check
      _
    $region59: #{net_forward.1} parent=1 // pred_check_branch
      %137 = sbr.rel (0) target = $region61
    $region60: #{net_forward.1} parent=1 // pred_region
      %139 = dma.done [#allocation11], 1024
    $region61: #{net_forward.1} parent=1 // pred_fallthru
      _
    // Predicated region
    $region62: #{net_forward.1} parent=1 // pred_check
      _
    $region63: #{net_forward.1} parent=1 // pred_check_branch
      %141 = sbr.rel (0) target = $region65
    $region64: #{net_forward.1} parent=1 // pred_region
      %143 = dma.done [#allocation14], 512
    $region65: #{net_forward.1} parent=1 // pred_fallthru
      _
    // Predicated region
    $region66: #{net_forward.1} parent=1 // pred_check
      _
    $region67: #{net_forward.1} parent=1 // pred_check_branch
      %145 = sbr.rel (0) target = $region69
    $region68: #{net_forward.1} parent=1 // pred_region
      %147 = dma.done [#allocation14], 32
    $region69: #{net_forward.1} parent=1 // pred_fallthru
      _
    // Predicated region
    $region70: #{net_forward.1} parent=1 // pred_check
      _
    $region71: #{net_forward.1} parent=1 // pred_check_branch
      %149 = sbr.rel (0) target = $region73
    $region72: #{net_forward.1} parent=1 // pred_region
      %151 = dma.done [#allocation17], 112
    $region73: #{net_forward.1} parent=1 // pred_fallthru
      _
    // Predicated region
    $region74: #{net_forward.1} parent=1 // pred_check
      _
    $region75: #{net_forward.1} parent=1 // pred_check_branch
      %153 = sbr.rel (0) target = $region77
    $region76: #{net_forward.1} parent=1 // pred_region
      %155 = dma.done [#allocation17], 64
    $region77: #{net_forward.1} parent=1 // pred_fallthru
      _
    // Predicated region
    $region78: #{net_forward.1} parent=1 // pred_check
      _
    $region79: #{net_forward.1} parent=1 // pred_check_branch
      %157 = sbr.rel (0) target = $region81
    $region80: #{net_forward.1} parent=1 // pred_region
      %159 = dma.done [#allocation20], 16
    $region81: #{net_forward.1} parent=1 // pred_fallthru
      _
    // Predicated region
    $region82: #{net_forward.1} parent=1 // pred_check
      _
    $region83: #{net_forward.1} parent=1 // pred_check_branch
      %162 = sbr.rel target = $region85
    $region84: #{net_forward.1} parent=1 // pred_region
      %163 = sst [smem:[#allocation24]] [#allocation23]
      %164 = sst [smem:[#allocation25]] [#allocation22]
    $region85: #{net_forward.1} parent=1 // pred_fallthru
      _
    %166 = shalt.err (0)
    %s168 = sshll.u32 %s12, 4
    %s169 = int_to_ptr.hbm [resolvable:$true] %s168
    %s170 = sshll.u32 [#allocation3], 4
    %s171 = int_to_ptr.vmem [resolvable:$true] %s170
    %173 = dma.hbm_to_vmem [thread:$0]  %s169, 3584, %s171, [#allocation6]
    %s174 = scalar_lea.sflag [#allocation6], 1
    // Predicated region
    $region86: #{net_forward.1} parent=1 // pred_check
      _
    $region87: #{net_forward.1} parent=1 // pred_check_branch
      %176 = sbr.rel target = $region89
    $region88: #{net_forward.1} parent=1 // pred_region
      %177 = sst [smem:[#allocation24]] [#allocation27]
      %178 = sst [smem:[#allocation25]] [#allocation26]
    $region89: #{net_forward.1} parent=1 // pred_fallthru
      _
    %180 = shalt.err (0)
    %s182 = sshll.u32 %s13, 4
    %s183 = int_to_ptr.hbm [resolvable:$true] %s182
    %s184 = sshll.u32 [#allocation4], 4
    %s185 = int_to_ptr.vmem [resolvable:$true] %s184
    %187 = dma.hbm_to_vmem [thread:$0]  %s183, 28672, %s185, %s174
    %s188 = scalar_lea.sflag [#allocation6], 2
    // Predicated region
    $region90: #{net_forward.1} parent=1 // pred_check
      _
    $region91: #{net_forward.1} parent=1 // pred_check_branch
      %190 = sbr.rel target = $region93
    $region92: #{net_forward.1} parent=1 // pred_region
      %191 = sst [smem:[#allocation24]] [#allocation29]
      %192 = sst [smem:[#allocation25]] [#allocation28]
    $region93: #{net_forward.1} parent=1 // pred_fallthru
      _
    %194 = shalt.err (0)
    %s196 = sshll.u32 %s14, 4
    %s197 = int_to_ptr.hbm [resolvable:$true] %s196
    %s198 = sshll.u32 [#allocation5], 4
    %s199 = int_to_ptr.vmem [resolvable:$true] %s198
    %201 = dma.hbm_to_vmem [thread:$0]  %s197, 4096, %s199, %s188
    %v202 = vld [vmem:[%s0] sm:$0xff]
    %v203 = vld [vmem:[%s0 + $0x8] sm:$0xff]
    %v204 = vpack.c.bf16 %v203, %v202
    %v205 = vld [vmem:[#allocation7] sm:$0xff]
    %v206 = vld [vmem:[#allocation7 + $0x8] sm:$0xff]
    %v207 = vld [vmem:[#allocation10] sm:$0x3]
    %v209 = vperm.slane %v207, 0
    %v210 = vperm.slane %v207, 1
    %v215 = vunpack.c.l.b16 %v205
    %v216 = vunpack.c.h.b16 %v205
    %v217 = vunpack.c.l.b16 %v206
    %v218 = vunpack.c.h.b16 %v206
    %v219 = vpack.c.b16 %v217, %v215
    %v220 = vpack.c.b16 %v218, %v216
    %vm223 = vcmask 130048
    %v225 = vsel %vm223, %v204, 0
    %227 = vmatpush.bf16.msra.mxu0 0
    %228 = vmatpush.bf16.msra.mxu0 0
    %229 = vmatpush.bf16.msra.mxu0 0
    %230 = vmatpush.bf16.msra.mxu0 0
    %231 = vmatpush.bf16.msra.mxu0 0
    %232 = vmatpush.bf16.msra.mxu0 0
    %233 = vmatpush.bf16.msra.mxu0 0
    %234 = vmatpush.bf16.msra.mxu0 %v219
    %235 = vmatmul.bf16.gmra.mxu0 %v225
    %v236 = vpop.f32.mrf.mxu0
    %v237 = vadd.f32 %v209, %v236
    %v238 = vpop.f32.mrf.mxu0
    %v239 = vadd.f32 %v209, %v238
    %240 = vdwg.mxu0
    %241 = vmatpush.bf16.msra.mxu0 0
    %242 = vmatpush.bf16.msra.mxu0 0
    %243 = vmatpush.bf16.msra.mxu0 0
    %244 = vmatpush.bf16.msra.mxu0 0
    %245 = vmatpush.bf16.msra.mxu0 0
    %246 = vmatpush.bf16.msra.mxu0 0
    %247 = vmatpush.bf16.msra.mxu0 0
    %248 = vmatpush.bf16.msra.mxu0 %v220
    %249 = vmatmul.bf16.gmra.mxu0 %v225
    %v250 = vpop.f32.mrf.mxu0
    %v251 = vadd.f32 %v210, %v250
    %v252 = vpop.f32.mrf.mxu0
    %v253 = vadd.f32 %v210, %v252
    %254 = vdwg.mxu0
    %v255 = vld [vmem:[%s2] sm:$0xff]
    %v256 = vld [vmem:[%s2 + $0x8] sm:$0xff]
    %v257 = vld [vmem:[%s2 + $0x10] sm:$0xff]
    %v258 = vld [vmem:[%s2 + $0x18] sm:$0xff]
    %v260 = vrot.slane %v253, 4
    %vm262 = vcmask 1041408
    %v263 = vsel %vm262, %v237, %v260
    %v265 = vrot.slane %v237, 2
    %v267 = vrot.slane %v253, 2
    %v269 = vsel %vm262, %v265, %v267
    %v270 = vrot.slane %v237, 4
    %v272 = vsel %vm262, %v270, %v253
    %v273 = vrot.slane %v237, 6
    %v275 = vrot.slane %v253, 6
    %v277 = vsel %vm262, %v273, %v275
    %v279 = vrot.slane %v251, 4
    %v281 = vsel %vm262, %v239, %v279
    %v283 = vrot.slane %v239, 2
    %v285 = vrot.slane %v251, 2
    %v287 = vsel %vm262, %v283, %v285
    %v288 = vrot.slane %v239, 4
    %v290 = vsel %vm262, %v288, %v251
    %v291 = vrot.slane %v239, 6
    %v293 = vrot.slane %v251, 6
    %v295 = vsel %vm262, %v291, %v293
    %v296 = vld [vmem:[%s7] sm:$0xf]
    %v297 = vld [vmem:[%s8] sm:$0xf]
    %v298 = vpack.c.bf16 %v296, %v296
    %v303 = vunpack.c.l.b16 %v255
    %v304 = vunpack.c.h.b16 %v255
    %v305 = vunpack.c.l.b16 %v256
    %v306 = vunpack.c.h.b16 %v256
    %v307 = vunpack.c.l.b16 %v257
    %v308 = vunpack.c.h.b16 %v257
    %v309 = vunpack.c.l.b16 %v258
    %v310 = vunpack.c.h.b16 %v258
    %v311 = vpack.c.b16 %v305, %v303
    %v312 = vpack.c.b16 %v306, %v304
    %v313 = vpack.c.b16 %v309, %v307
    %v314 = vpack.c.b16 %v310, %v308
    %vm319 = vcmask 261120
    %v321 = vsel %vm319, %v298, 0
    %323 = vmatpush.bf16.msra.mxu0 0
    %324 = vmatpush.bf16.msra.mxu0 0
    %325 = vmatpush.bf16.msra.mxu0 0
    %326 = vmatpush.bf16.msra.mxu0 0
    %327 = vmatpush.bf16.msra.mxu0 0
    %328 = vmatpush.bf16.msra.mxu0 0
    %329 = vmatpush.bf16.msra.mxu0 %v313
    %330 = vmatpush.bf16.msra.mxu0 %v311
    %331 = vmatmul.bf16.gmra.mxu0 %v321
    %v332 = vpop.f32.mrf.mxu0
    %v333 = vadd.f32 0.0, %v332
    %v334 = vpop.f32.mrf.mxu0
    %335 = vdwg.mxu0
    %336 = vmatpush.bf16.msra.mxu0 0
    %337 = vmatpush.bf16.msra.mxu0 0
    %338 = vmatpush.bf16.msra.mxu0 0
    %339 = vmatpush.bf16.msra.mxu0 0
    %340 = vmatpush.bf16.msra.mxu0 0
    %341 = vmatpush.bf16.msra.mxu0 0
    %342 = vmatpush.bf16.msra.mxu0 %v314
    %343 = vmatpush.bf16.msra.mxu0 %v312
    %344 = vmatmul.bf16.gmra.mxu0 %v321
    %v345 = vpop.f32.mrf.mxu0
    %v346 = vadd.f32 0.0, %v345
    %v347 = vpop.f32.mrf.mxu0
    %348 = vdwg.mxu0
    %v349 = vsel %vm262, %v333, %v346
    %v350 = vadd.f32 %v263, %v349
    %v351 = vmul.f32 %v350, 0.5
    %v352 = vtanh.pop %v351
    %v353 = vmul.f32 %v352, 0.5
    %v354 = vadd.f32 %v353, 0.5
    %v355 = vtanh.pop %v350
    %357 = vrot.lane.b32.xlu0 %v297, 32
    %v358 = vpop.permute.xlu0 %357
    %v360 = vmul.f32 %v354, %v358
    %362 = vrot.lane.b32.xlu0 %v355, 64
    %v363 = vpop.permute.xlu0 %362
    %v365 = vmul.f32 %v354, %v363
    %367 = vrot.lane.b32.xlu0 %v365, 32
    %v368 = vpop.permute.xlu0 %367
    %v370 = vadd.f32 %v360, %v368
    %v371 = vtanh.pop %v370
    %373 = vrot.lane.b32.xlu0 %v371, 64
    %v374 = vpop.permute.xlu0 %373
    %v376 = vmul.f32 %v354, %v374
    %378 = vrot.lane.b32.xlu0 %v376, 32
    %v379 = vpop.permute.xlu0 %378
    %vm381 = vcmask 254976
    %382 = vst.msk [vmem:[#allocation2] sm:$0x3] %vm381, %v379
    %383 = vrot.lane.b32.xlu0 %v376, 64
    %v384 = vpop.permute.xlu0 %383
    %vm386 = vcmask 519426
    %387 = vst.msk [vmem:[#allocation2 + $0xc] sm:$0xc] %vm386, %v384
    %v388 = vpack.c.bf16 %v376, %v376
    %390 = vrot.lane.b32.xlu0 %v388, 32
    %v391 = vpop.permute.xlu0 %390
    %v393 = vsel %vm319, %v391, 0
    %395 = vmatpush.bf16.msra.mxu0 0
    %396 = vmatpush.bf16.msra.mxu0 0
    %397 = vmatpush.bf16.msra.mxu0 0
    %398 = vmatpush.bf16.msra.mxu0 0
    %399 = vmatpush.bf16.msra.mxu0 0
    %400 = vmatpush.bf16.msra.mxu0 0
    %401 = vmatpush.bf16.msra.mxu0 %v313
    %402 = vmatpush.bf16.msra.mxu0 %v311
    %403 = vmatmul.bf16.gmra.mxu0 %v393
    %v404 = vpop.f32.mrf.mxu0
    %v405 = vadd.f32 0.0, %v404
    %v406 = vpop.f32.mrf.mxu0
    %407 = vdwg.mxu0
    %408 = vmatpush.bf16.msra.mxu0 0
    %409 = vmatpush.bf16.msra.mxu0 0
    %410 = vmatpush.bf16.msra.mxu0 0
    %411 = vmatpush.bf16.msra.mxu0 0
    %412 = vmatpush.bf16.msra.mxu0 0
    %413 = vmatpush.bf16.msra.mxu0 0
    %414 = vmatpush.bf16.msra.mxu0 %v314
    %415 = vmatpush.bf16.msra.mxu0 %v312
    %416 = vmatmul.bf16.gmra.mxu0 %v393
    %v417 = vpop.f32.mrf.mxu0
    %v418 = vadd.f32 0.0, %v417
    %v419 = vpop.f32.mrf.mxu0
    %420 = vdwg.mxu0
    %v421 = vsel %vm262, %v405, %v418
    %v422 = vadd.f32 %v269, %v421
    %v423 = vmul.f32 %v422, 0.5
    %v424 = vtanh.pop %v423
    %v425 = vmul.f32 %v424, 0.5
    %v426 = vadd.f32 %v425, 0.5
    %v427 = vtanh.pop %v422
    %v428 = vmul.f32 %v426, %v370
    %430 = vrot.lane.b32.xlu0 %v427, 64
    %v431 = vpop.permute.xlu0 %430
    %v433 = vmul.f32 %v426, %v431
    %435 = vrot.lane.b32.xlu0 %v433, 32
    %v436 = vpop.permute.xlu0 %435
    %v438 = vadd.f32 %v428, %v436
    %v439 = vtanh.pop %v438
    %441 = vrot.lane.b32.xlu0 %v439, 64
    %v442 = vpop.permute.xlu0 %441
    %v444 = vmul.f32 %v426, %v442
    %446 = vrot.lane.b32.xlu0 %v444, 32
    %v447 = vpop.permute.xlu0 %446
    %449 = vst.msk [vmem:[#allocation2 + $0x2] sm:$0x3] %vm381, %v447
    %450 = vrot.lane.b32.xlu0 %v444, 64
    %v451 = vpop.permute.xlu0 %450
    %453 = vst.msk [vmem:[#allocation2 + $0xa] sm:$0xc] %vm386, %v451
    %v454 = vpack.c.bf16 %v444, %v444
    %456 = vrot.lane.b32.xlu0 %v454, 32
    %v457 = vpop.permute.xlu0 %456
    %v459 = vsel %vm319, %v457, 0
    %461 = vmatpush.bf16.msra.mxu0 0
    %462 = vmatpush.bf16.msra.mxu0 0
    %463 = vmatpush.bf16.msra.mxu0 0
    %464 = vmatpush.bf16.msra.mxu0 0
    %465 = vmatpush.bf16.msra.mxu0 0
    %466 = vmatpush.bf16.msra.mxu0 0
    %467 = vmatpush.bf16.msra.mxu0 %v313
    %468 = vmatpush.bf16.msra.mxu0 %v311
    %469 = vmatmul.bf16.gmra.mxu0 %v459
    %v470 = vpop.f32.mrf.mxu0
    %v471 = vadd.f32 0.0, %v470
    %v472 = vpop.f32.mrf.mxu0
    %473 = vdwg.mxu0
    %474 = vmatpush.bf16.msra.mxu0 0
    %475 = vmatpush.bf16.msra.mxu0 0
    %476 = vmatpush.bf16.msra.mxu0 0
    %477 = vmatpush.bf16.msra.mxu0 0
    %478 = vmatpush.bf16.msra.mxu0 0
    %479 = vmatpush.bf16.msra.mxu0 0
    %480 = vmatpush.bf16.msra.mxu0 %v314
    %481 = vmatpush.bf16.msra.mxu0 %v312
    %482 = vmatmul.bf16.gmra.mxu0 %v459
    %v483 = vpop.f32.mrf.mxu0
    %v484 = vadd.f32 0.0, %v483
    %v485 = vpop.f32.mrf.mxu0
    %486 = vdwg.mxu0
    %v487 = vsel %vm262, %v471, %v484
    %v488 = vadd.f32 %v272, %v487
    %v489 = vmul.f32 %v488, 0.5
    %v490 = vtanh.pop %v489
    %v491 = vmul.f32 %v490, 0.5
    %v492 = vadd.f32 %v491, 0.5
    %v493 = vtanh.pop %v488
    %v494 = vmul.f32 %v492, %v438
    %496 = vrot.lane.b32.xlu0 %v493, 64
    %v497 = vpop.permute.xlu0 %496
    %v499 = vmul.f32 %v492, %v497
    %501 = vrot.lane.b32.xlu0 %v499, 32
    %v502 = vpop.permute.xlu0 %501
    %v504 = vadd.f32 %v494, %v502
    %v505 = vtanh.pop %v504
    %507 = vrot.lane.b32.xlu0 %v505, 64
    %v508 = vpop.permute.xlu0 %507
    %v510 = vmul.f32 %v492, %v508
    %512 = vrot.lane.b32.xlu0 %v510, 32
    %v513 = vpop.permute.xlu0 %512
    %515 = vst.msk [vmem:[#allocation2 + $0x4] sm:$0x3] %vm381, %v513
    %516 = vrot.lane.b32.xlu0 %v510, 64
    %v517 = vpop.permute.xlu0 %516
    %519 = vst.msk [vmem:[#allocation2 + $0x8] sm:$0xc] %vm386, %v517
    %v520 = vpack.c.bf16 %v510, %v510
    %522 = vrot.lane.b32.xlu0 %v520, 32
    %v523 = vpop.permute.xlu0 %522
    %v525 = vsel %vm319, %v523, 0
    %527 = vmatpush.bf16.msra.mxu0 0
    %528 = vmatpush.bf16.msra.mxu0 0
    %529 = vmatpush.bf16.msra.mxu0 0
    %530 = vmatpush.bf16.msra.mxu0 0
    %531 = vmatpush.bf16.msra.mxu0 0
    %532 = vmatpush.bf16.msra.mxu0 0
    %533 = vmatpush.bf16.msra.mxu0 %v313
    %534 = vmatpush.bf16.msra.mxu0 %v311
    %535 = vmatmul.bf16.gmra.mxu0 %v525
    %v536 = vpop.f32.mrf.mxu0
    %v537 = vadd.f32 0.0, %v536
    %v538 = vpop.f32.mrf.mxu0
    %539 = vdwg.mxu0
    %540 = vmatpush.bf16.msra.mxu0 0
    %541 = vmatpush.bf16.msra.mxu0 0
    %542 = vmatpush.bf16.msra.mxu0 0
    %543 = vmatpush.bf16.msra.mxu0 0
    %544 = vmatpush.bf16.msra.mxu0 0
    %545 = vmatpush.bf16.msra.mxu0 0
    %546 = vmatpush.bf16.msra.mxu0 %v314
    %547 = vmatpush.bf16.msra.mxu0 %v312
    %548 = vmatmul.bf16.gmra.mxu0 %v525
    %v549 = vpop.f32.mrf.mxu0
    %v550 = vadd.f32 0.0, %v549
    %v551 = vpop.f32.mrf.mxu0
    %552 = vdwg.mxu0
    %v553 = vsel %vm262, %v537, %v550
    %v554 = vadd.f32 %v277, %v553
    %v555 = vmul.f32 %v554, 0.5
    %v556 = vtanh.pop %v555
    %v557 = vmul.f32 %v556, 0.5
    %v558 = vadd.f32 %v557, 0.5
    %v559 = vtanh.pop %v554
    %v560 = vmul.f32 %v558, %v504
    %562 = vrot.lane.b32.xlu0 %v559, 64
    %v563 = vpop.permute.xlu0 %562
    %v565 = vmul.f32 %v558, %v563
    %567 = vrot.lane.b32.xlu0 %v565, 32
    %v568 = vpop.permute.xlu0 %567
    %v570 = vadd.f32 %v560, %v568
    %v571 = vtanh.pop %v570
    %573 = vrot.lane.b32.xlu0 %v571, 64
    %v574 = vpop.permute.xlu0 %573
    %v576 = vmul.f32 %v558, %v574
    %578 = vrot.lane.b32.xlu0 %v576, 32
    %v579 = vpop.permute.xlu0 %578
    %581 = vst.msk [vmem:[#allocation2 + $0x6] sm:$0x3] %vm381, %v579
    %582 = vrot.lane.b32.xlu0 %v576, 64
    %v583 = vpop.permute.xlu0 %582
    %585 = vst.msk [vmem:[#allocation2 + $0x6] sm:$0xc] %vm386, %v583
    %v586 = vpack.c.bf16 %v576, %v576
    %588 = vrot.lane.b32.xlu0 %v586, 32
    %v589 = vpop.permute.xlu0 %588
    %v591 = vsel %vm319, %v589, 0
    %593 = vmatpush.bf16.msra.mxu0 0
    %594 = vmatpush.bf16.msra.mxu0 0
    %595 = vmatpush.bf16.msra.mxu0 0
    %596 = vmatpush.bf16.msra.mxu0 0
    %597 = vmatpush.bf16.msra.mxu0 0
    %598 = vmatpush.bf16.msra.mxu0 0
    %599 = vmatpush.bf16.msra.mxu0 %v313
    %600 = vmatpush.bf16.msra.mxu0 %v311
    %601 = vmatmul.bf16.gmra.mxu0 %v591
    %v602 = vpop.f32.mrf.mxu0
    %v603 = vadd.f32 0.0, %v602
    %v604 = vpop.f32.mrf.mxu0
    %605 = vdwg.mxu0
    %606 = vmatpush.bf16.msra.mxu0 0
    %607 = vmatpush.bf16.msra.mxu0 0
    %608 = vmatpush.bf16.msra.mxu0 0
    %609 = vmatpush.bf16.msra.mxu0 0
    %610 = vmatpush.bf16.msra.mxu0 0
    %611 = vmatpush.bf16.msra.mxu0 0
    %612 = vmatpush.bf16.msra.mxu0 %v314
    %613 = vmatpush.bf16.msra.mxu0 %v312
    %614 = vmatmul.bf16.gmra.mxu0 %v591
    %v615 = vpop.f32.mrf.mxu0
    %v616 = vadd.f32 0.0, %v615
    %v617 = vpop.f32.mrf.mxu0
    %618 = vdwg.mxu0
    %v619 = vsel %vm262, %v603, %v616
    %v620 = vadd.f32 %v281, %v619
    %v621 = vmul.f32 %v620, 0.5
    %v622 = vtanh.pop %v621
    %v623 = vmul.f32 %v622, 0.5
    %v624 = vadd.f32 %v623, 0.5
    %v625 = vtanh.pop %v620
    %v626 = vmul.f32 %v624, %v570
    %628 = vrot.lane.b32.xlu0 %v625, 64
    %v629 = vpop.permute.xlu0 %628
    %v631 = vmul.f32 %v624, %v629
    %633 = vrot.lane.b32.xlu0 %v631, 32
    %v634 = vpop.permute.xlu0 %633
    %v636 = vadd.f32 %v626, %v634
    %v637 = vtanh.pop %v636
    %639 = vrot.lane.b32.xlu0 %v637, 64
    %v640 = vpop.permute.xlu0 %639
    %v642 = vmul.f32 %v624, %v640
    %644 = vrot.lane.b32.xlu0 %v642, 32
    %v645 = vpop.permute.xlu0 %644
    %647 = vst.msk [vmem:[#allocation2 + $0x8] sm:$0x3] %vm381, %v645
    %648 = vrot.lane.b32.xlu0 %v642, 64
    %v649 = vpop.permute.xlu0 %648
    %651 = vst.msk [vmem:[#allocation2 + $0x4] sm:$0xc] %vm386, %v649
    %v652 = vpack.c.bf16 %v642, %v642
    %654 = vrot.lane.b32.xlu0 %v652, 32
    %v655 = vpop.permute.xlu0 %654
    %v657 = vsel %vm319, %v655, 0
    %659 = vmatpush.bf16.msra.mxu0 0
    %660 = vmatpush.bf16.msra.mxu0 0
    %661 = vmatpush.bf16.msra.mxu0 0
    %662 = vmatpush.bf16.msra.mxu0 0
    %663 = vmatpush.bf16.msra.mxu0 0
    %664 = vmatpush.bf16.msra.mxu0 0
    %665 = vmatpush.bf16.msra.mxu0 %v313
    %666 = vmatpush.bf16.msra.mxu0 %v311
    %667 = vmatmul.bf16.gmra.mxu0 %v657
    %v668 = vpop.f32.mrf.mxu0
    %v669 = vadd.f32 0.0, %v668
    %v670 = vpop.f32.mrf.mxu0
    %671 = vdwg.mxu0
    %672 = vmatpush.bf16.msra.mxu0 0
    %673 = vmatpush.bf16.msra.mxu0 0
    %674 = vmatpush.bf16.msra.mxu0 0
    %675 = vmatpush.bf16.msra.mxu0 0
    %676 = vmatpush.bf16.msra.mxu0 0
    %677 = vmatpush.bf16.msra.mxu0 0
    %678 = vmatpush.bf16.msra.mxu0 %v314
    %679 = vmatpush.bf16.msra.mxu0 %v312
    %680 = vmatmul.bf16.gmra.mxu0 %v657
    %v681 = vpop.f32.mrf.mxu0
    %v682 = vadd.f32 0.0, %v681
    %v683 = vpop.f32.mrf.mxu0
    %684 = vdwg.mxu0
    %v685 = vsel %vm262, %v669, %v682
    %v686 = vadd.f32 %v287, %v685
    %v687 = vmul.f32 %v686, 0.5
    %v688 = vtanh.pop %v687
    %v689 = vmul.f32 %v688, 0.5
    %v690 = vadd.f32 %v689, 0.5
    %v691 = vtanh.pop %v686
    %v692 = vmul.f32 %v690, %v636
    %694 = vrot.lane.b32.xlu0 %v691, 64
    %v695 = vpop.permute.xlu0 %694
    %v697 = vmul.f32 %v690, %v695
    %699 = vrot.lane.b32.xlu0 %v697, 32
    %v700 = vpop.permute.xlu0 %699
    %v702 = vadd.f32 %v692, %v700
    %v703 = vtanh.pop %v702
    %705 = vrot.lane.b32.xlu0 %v703, 64
    %v706 = vpop.permute.xlu0 %705
    %v708 = vmul.f32 %v690, %v706
    %710 = vrot.lane.b32.xlu0 %v708, 32
    %v711 = vpop.permute.xlu0 %710
    %713 = vst.msk [vmem:[#allocation2 + $0xa] sm:$0x3] %vm381, %v711
    %714 = vrot.lane.b32.xlu0 %v708, 64
    %v715 = vpop.permute.xlu0 %714
    %717 = vst.msk [vmem:[#allocation2 + $0x2] sm:$0xc] %vm386, %v715
    %v718 = vpack.c.bf16 %v708, %v708
    %720 = vrot.lane.b32.xlu0 %v718, 32
    %v721 = vpop.permute.xlu0 %720
    %v723 = vsel %vm319, %v721, 0
    %725 = vmatpush.bf16.msra.mxu0 0
    %726 = vmatpush.bf16.msra.mxu0 0
    %727 = vmatpush.bf16.msra.mxu0 0
    %728 = vmatpush.bf16.msra.mxu0 0
    %729 = vmatpush.bf16.msra.mxu0 0
    %730 = vmatpush.bf16.msra.mxu0 0
    %731 = vmatpush.bf16.msra.mxu0 %v313
    %732 = vmatpush.bf16.msra.mxu0 %v311
    %733 = vmatmul.bf16.gmra.mxu0 %v723
    %v734 = vpop.f32.mrf.mxu0
    %v735 = vadd.f32 0.0, %v734
    %v736 = vpop.f32.mrf.mxu0
    %737 = vdwg.mxu0
    %738 = vmatpush.bf16.msra.mxu0 0
    %739 = vmatpush.bf16.msra.mxu0 0
    %740 = vmatpush.bf16.msra.mxu0 0
    %741 = vmatpush.bf16.msra.mxu0 0
    %742 = vmatpush.bf16.msra.mxu0 0
    %743 = vmatpush.bf16.msra.mxu0 0
    %744 = vmatpush.bf16.msra.mxu0 %v314
    %745 = vmatpush.bf16.msra.mxu0 %v312
    %746 = vmatmul.bf16.gmra.mxu0 %v723
    %v747 = vpop.f32.mrf.mxu0
    %v748 = vadd.f32 0.0, %v747
    %v749 = vpop.f32.mrf.mxu0
    %750 = vdwg.mxu0
    %v751 = vsel %vm262, %v735, %v748
    %v752 = vadd.f32 %v290, %v751
    %v753 = vmul.f32 %v752, 0.5
    %v754 = vtanh.pop %v753
    %v755 = vmul.f32 %v754, 0.5
    %v756 = vadd.f32 %v755, 0.5
    %v757 = vtanh.pop %v752
    %v758 = vmul.f32 %v756, %v702
    %760 = vrot.lane.b32.xlu0 %v757, 64
    %v761 = vpop.permute.xlu0 %760
    %v763 = vmul.f32 %v756, %v761
    %765 = vrot.lane.b32.xlu0 %v763, 32
    %v766 = vpop.permute.xlu0 %765
    %v768 = vadd.f32 %v758, %v766
    %v769 = vtanh.pop %v768
    %771 = vrot.lane.b32.xlu0 %v769, 64
    %v772 = vpop.permute.xlu0 %771
    %v774 = vmul.f32 %v756, %v772
    %776 = vrot.lane.b32.xlu0 %v774, 32
    %v777 = vpop.permute.xlu0 %776
    %779 = vst.msk [vmem:[#allocation2 + $0xc] sm:$0x3] %vm381, %v777
    %780 = vrot.lane.b32.xlu0 %v774, 64
    %v781 = vpop.permute.xlu0 %780
    %783 = vst.msk [vmem:[#allocation2] sm:$0xc] %vm386, %v781
    %v784 = vpack.c.bf16 %v774, %v774
    %786 = vrot.lane.b32.xlu0 %v784, 32
    %v787 = vpop.permute.xlu0 %786
    %v789 = vsel %vm319, %v787, 0
    %791 = vmatpush.bf16.msra.mxu0 0
    %792 = vmatpush.bf16.msra.mxu0 0
    %793 = vmatpush.bf16.msra.mxu0 0
    %794 = vmatpush.bf16.msra.mxu0 0
    %795 = vmatpush.bf16.msra.mxu0 0
    %796 = vmatpush.bf16.msra.mxu0 0
    %797 = vmatpush.bf16.msra.mxu0 %v313
    %798 = vmatpush.bf16.msra.mxu0 %v311
    %799 = vmatmul.bf16.gmra.mxu0 %v789
    %v800 = vpop.f32.mrf.mxu0
    %v801 = vadd.f32 0.0, %v800
    %v802 = vpop.f32.mrf.mxu0
    %803 = vdwg.mxu0
    %804 = vmatpush.bf16.msra.mxu0 0
    %805 = vmatpush.bf16.msra.mxu0 0
    %806 = vmatpush.bf16.msra.mxu0 0
    %807 = vmatpush.bf16.msra.mxu0 0
    %808 = vmatpush.bf16.msra.mxu0 0
    %809 = vmatpush.bf16.msra.mxu0 0
    %810 = vmatpush.bf16.msra.mxu0 %v314
    %811 = vmatpush.bf16.msra.mxu0 %v312
    %812 = vmatmul.bf16.gmra.mxu0 %v789
    %v813 = vpop.f32.mrf.mxu0
    %v814 = vadd.f32 0.0, %v813
    %v815 = vpop.f32.mrf.mxu0
    %816 = vdwg.mxu0
    %v817 = vsel %vm262, %v801, %v814
    %v818 = vadd.f32 %v295, %v817
    %v819 = vmul.f32 %v818, 0.5
    %v820 = vtanh.pop %v819
    %v821 = vmul.f32 %v820, 0.5
    %v822 = vadd.f32 %v821, 0.5
    %v823 = vtanh.pop %v818
    %v824 = vmul.f32 %v822, %v768
    %826 = vrot.lane.b32.xlu0 %v823, 64
    %v827 = vpop.permute.xlu0 %826
    %v829 = vmul.f32 %v822, %v827
    %831 = vrot.lane.b32.xlu0 %v829, 32
    %v832 = vpop.permute.xlu0 %831
    %v834 = vadd.f32 %v824, %v832
    %v835 = vtanh.pop %v834
    %837 = vrot.lane.b32.xlu0 %v835, 64
    %v838 = vpop.permute.xlu0 %837
    %v840 = vmul.f32 %v822, %v838
    %842 = vrot.lane.b32.xlu0 %v840, 32
    %v843 = vpop.permute.xlu0 %842
    %845 = vst.msk [vmem:[#allocation2 + $0xe] sm:$0x3] %vm381, %v843
    %846 = vrot.lane.b32.xlu0 %v840, 64
    %v847 = vpop.permute.xlu0 %846
    %849 = vst.msk [vmem:[#allocation2 - $0x2] sm:$0xc] %vm386, %v847
    %v850 = vld [vmem:[#allocation2] sm:$0xff]
    %v851 = vld [vmem:[#allocation2 + $0x8] sm:$0xff]
    %v852 = vpack.c.bf16 %v851, %v850
    %v853 = vld [vmem:[#allocation12] sm:$0xff]
    %v854 = vld [vmem:[#allocation12 + $0x8] sm:$0xff]
    %v855 = vld [vmem:[#allocation12 + $0x10] sm:$0xff]
    %v856 = vld [vmem:[#allocation12 + $0x18] sm:$0xff]
    %v857 = vld [vmem:[#allocation12 + $0x20] sm:$0xff]
    %v858 = vld [vmem:[#allocation12 + $0x28] sm:$0xff]
    %v859 = vld [vmem:[#allocation12 + $0x30] sm:$0xff]
    %v860 = vld [vmem:[#allocation12 + $0x38] sm:$0xff]
    %v861 = vld [vmem:[#allocation15] sm:$0x3]
    %v863 = vperm.slane %v861, 0
    %v864 = vperm.slane %v861, 1
    %v875 = vunpack.c.l.b16 %v853
    %v876 = vunpack.c.h.b16 %v853
    %v877 = vunpack.c.l.b16 %v854
    %v878 = vunpack.c.h.b16 %v854
    %v879 = vunpack.c.l.b16 %v855
    %v880 = vunpack.c.h.b16 %v855
    %v881 = vunpack.c.l.b16 %v856
    %v882 = vunpack.c.h.b16 %v856
    %v883 = vunpack.c.l.b16 %v857
    %v884 = vunpack.c.h.b16 %v857
    %v885 = vunpack.c.l.b16 %v858
    %v886 = vunpack.c.h.b16 %v858
    %v887 = vunpack.c.l.b16 %v859
    %v888 = vunpack.c.h.b16 %v859
    %v889 = vunpack.c.l.b16 %v860
    %v890 = vunpack.c.h.b16 %v860
    %v891 = vpack.c.b16 %v877, %v875
    %v892 = vpack.c.b16 %v878, %v876
    %v893 = vpack.c.b16 %v881, %v879
    %v894 = vpack.c.b16 %v882, %v880
    %v895 = vpack.c.b16 %v885, %v883
    %v896 = vpack.c.b16 %v886, %v884
    %v897 = vpack.c.b16 %v889, %v887
    %v898 = vpack.c.b16 %v890, %v888
    %vm907 = vcmask 523264
    %v909 = vsel %vm907, %v852, 0
    %911 = vmatpush.bf16.msra.mxu0 0
    %912 = vmatpush.bf16.msra.mxu0 0
    %913 = vmatpush.bf16.msra.mxu0 0
    %914 = vmatpush.bf16.msra.mxu0 0
    %915 = vmatpush.bf16.msra.mxu0 %v897
    %916 = vmatpush.bf16.msra.mxu0 %v895
    %917 = vmatpush.bf16.msra.mxu0 %v893
    %918 = vmatpush.bf16.msra.mxu0 %v891
    %919 = vmatmul.bf16.gmra.mxu0 %v909
    %v920 = vpop.f32.mrf.mxu0
    %v921 = vadd.f32 %v863, %v920
    %v922 = vpop.f32.mrf.mxu0
    %v923 = vadd.f32 %v863, %v922
    %924 = vdwg.mxu0
    %925 = vmatpush.bf16.msra.mxu0 0
    %926 = vmatpush.bf16.msra.mxu0 0
    %927 = vmatpush.bf16.msra.mxu0 0
    %928 = vmatpush.bf16.msra.mxu0 0
    %929 = vmatpush.bf16.msra.mxu0 %v898
    %930 = vmatpush.bf16.msra.mxu0 %v896
    %931 = vmatpush.bf16.msra.mxu0 %v894
    %932 = vmatpush.bf16.msra.mxu0 %v892
    %933 = vmatmul.bf16.gmra.mxu0 %v909
    %v934 = vpop.f32.mrf.mxu0
    %v935 = vadd.f32 %v864, %v934
    %v936 = vpop.f32.mrf.mxu0
    %v937 = vadd.f32 %v864, %v936
    %938 = vdwg.mxu0
    %v939 = vld [vmem:[#allocation13] sm:$0xff]
    %v940 = vld [vmem:[#allocation13 + $0x8] sm:$0xff]
    %v941 = vld [vmem:[#allocation13 + $0x10] sm:$0xff]
    %v942 = vld [vmem:[#allocation13 + $0x18] sm:$0xff]
    %v944 = vrot.slane %v937, 4
    %v946 = vsel %vm262, %v921, %v944
    %v948 = vrot.slane %v921, 2
    %v950 = vrot.slane %v937, 2
    %v952 = vsel %vm262, %v948, %v950
    %v953 = vrot.slane %v921, 4
    %v955 = vsel %vm262, %v953, %v937
    %v956 = vrot.slane %v921, 6
    %v958 = vrot.slane %v937, 6
    %v960 = vsel %vm262, %v956, %v958
    %v962 = vrot.slane %v935, 4
    %v964 = vsel %vm262, %v923, %v962
    %v966 = vrot.slane %v923, 2
    %v968 = vrot.slane %v935, 2
    %v970 = vsel %vm262, %v966, %v968
    %v971 = vrot.slane %v923, 4
    %v973 = vsel %vm262, %v971, %v935
    %v974 = vrot.slane %v923, 6
    %v976 = vrot.slane %v935, 6
    %v978 = vsel %vm262, %v974, %v976
    %s979 = scalar_lea.vmem %s7, 4
    %v980 = vld [vmem:[%s979] sm:$0xf]
    %s981 = scalar_lea.vmem %s8, 4
    %v982 = vld [vmem:[%s981] sm:$0xf]
    %v983 = vpack.c.bf16 %v980, %v980
    %v988 = vunpack.c.l.b16 %v939
    %v989 = vunpack.c.h.b16 %v939
    %v990 = vunpack.c.l.b16 %v940
    %v991 = vunpack.c.h.b16 %v940
    %v992 = vunpack.c.l.b16 %v941
    %v993 = vunpack.c.h.b16 %v941
    %v994 = vunpack.c.l.b16 %v942
    %v995 = vunpack.c.h.b16 %v942
    %v996 = vpack.c.b16 %v990, %v988
    %v997 = vpack.c.b16 %v991, %v989
    %v998 = vpack.c.b16 %v994, %v992
    %v999 = vpack.c.b16 %v995, %v993
    %v1005 = vsel %vm319, %v983, 0
    %1007 = vmatpush.bf16.msra.mxu0 0
    %1008 = vmatpush.bf16.msra.mxu0 0
    %1009 = vmatpush.bf16.msra.mxu0 0
    %1010 = vmatpush.bf16.msra.mxu0 0
    %1011 = vmatpush.bf16.msra.mxu0 0
    %1012 = vmatpush.bf16.msra.mxu0 0
    %1013 = vmatpush.bf16.msra.mxu0 %v998
    %1014 = vmatpush.bf16.msra.mxu0 %v996
    %1015 = vmatmul.bf16.gmra.mxu0 %v1005
    %v1016 = vpop.f32.mrf.mxu0
    %v1017 = vadd.f32 0.0, %v1016
    %v1018 = vpop.f32.mrf.mxu0
    %1019 = vdwg.mxu0
    %1020 = vmatpush.bf16.msra.mxu0 0
    %1021 = vmatpush.bf16.msra.mxu0 0
    %1022 = vmatpush.bf16.msra.mxu0 0
    %1023 = vmatpush.bf16.msra.mxu0 0
    %1024 = vmatpush.bf16.msra.mxu0 0
    %1025 = vmatpush.bf16.msra.mxu0 0
    %1026 = vmatpush.bf16.msra.mxu0 %v999
    %1027 = vmatpush.bf16.msra.mxu0 %v997
    %1028 = vmatmul.bf16.gmra.mxu0 %v1005
    %v1029 = vpop.f32.mrf.mxu0
    %v1030 = vadd.f32 0.0, %v1029
    %v1031 = vpop.f32.mrf.mxu0
    %1032 = vdwg.mxu0
    %v1033 = vsel %vm262, %v1017, %v1030
    %v1034 = vadd.f32 %v946, %v1033
    %v1035 = vmul.f32 %v1034, 0.5
    %v1036 = vtanh.pop %v1035
    %v1037 = vmul.f32 %v1036, 0.5
    %v1038 = vadd.f32 %v1037, 0.5
    %v1039 = vtanh.pop %v1034
    %1041 = vrot.lane.b32.xlu0 %v982, 32
    %v1042 = vpop.permute.xlu0 %1041
    %v1044 = vmul.f32 %v1038, %v1042
    %1046 = vrot.lane.b32.xlu0 %v1039, 64
    %v1047 = vpop.permute.xlu0 %1046
    %v1049 = vmul.f32 %v1038, %v1047
    %1051 = vrot.lane.b32.xlu0 %v1049, 32
    %v1052 = vpop.permute.xlu0 %1051
    %v1054 = vadd.f32 %v1044, %v1052
    %v1055 = vtanh.pop %v1054
    %1057 = vrot.lane.b32.xlu0 %v1055, 64
    %v1058 = vpop.permute.xlu0 %1057
    %v1060 = vmul.f32 %v1038, %v1058
    %v1061 = vpack.c.bf16 %v1060, %v1060
    %1063 = vrot.lane.b32.xlu0 %v1061, 32
    %v1064 = vpop.permute.xlu0 %1063
    %v1066 = vsel %vm319, %v1064, 0
    %1068 = vmatpush.bf16.msra.mxu0 0
    %1069 = vmatpush.bf16.msra.mxu0 0
    %1070 = vmatpush.bf16.msra.mxu0 0
    %1071 = vmatpush.bf16.msra.mxu0 0
    %1072 = vmatpush.bf16.msra.mxu0 0
    %1073 = vmatpush.bf16.msra.mxu0 0
    %1074 = vmatpush.bf16.msra.mxu0 %v998
    %1075 = vmatpush.bf16.msra.mxu0 %v996
    %1076 = vmatmul.bf16.gmra.mxu0 %v1066
    %v1077 = vpop.f32.mrf.mxu0
    %v1078 = vadd.f32 0.0, %v1077
    %v1079 = vpop.f32.mrf.mxu0
    %1080 = vdwg.mxu0
    %1081 = vmatpush.bf16.msra.mxu0 0
    %1082 = vmatpush.bf16.msra.mxu0 0
    %1083 = vmatpush.bf16.msra.mxu0 0
    %1084 = vmatpush.bf16.msra.mxu0 0
    %1085 = vmatpush.bf16.msra.mxu0 0
    %1086 = vmatpush.bf16.msra.mxu0 0
    %1087 = vmatpush.bf16.msra.mxu0 %v999
    %1088 = vmatpush.bf16.msra.mxu0 %v997
    %1089 = vmatmul.bf16.gmra.mxu0 %v1066
    %v1090 = vpop.f32.mrf.mxu0
    %v1091 = vadd.f32 0.0, %v1090
    %v1092 = vpop.f32.mrf.mxu0
    %1093 = vdwg.mxu0
    %v1094 = vsel %vm262, %v1078, %v1091
    %v1095 = vadd.f32 %v952, %v1094
    %v1096 = vmul.f32 %v1095, 0.5
    %v1097 = vtanh.pop %v1096
    %v1098 = vmul.f32 %v1097, 0.5
    %v1099 = vadd.f32 %v1098, 0.5
    %v1100 = vtanh.pop %v1095
    %v1101 = vmul.f32 %v1099, %v1054
    %1103 = vrot.lane.b32.xlu0 %v1100, 64
    %v1104 = vpop.permute.xlu0 %1103
    %v1106 = vmul.f32 %v1099, %v1104
    %1108 = vrot.lane.b32.xlu0 %v1106, 32
    %v1109 = vpop.permute.xlu0 %1108
    %v1111 = vadd.f32 %v1101, %v1109
    %v1112 = vtanh.pop %v1111
    %1114 = vrot.lane.b32.xlu0 %v1112, 64
    %v1115 = vpop.permute.xlu0 %1114
    %v1117 = vmul.f32 %v1099, %v1115
    %v1118 = vpack.c.bf16 %v1117, %v1117
    %1120 = vrot.lane.b32.xlu0 %v1118, 32
    %v1121 = vpop.permute.xlu0 %1120
    %v1123 = vsel %vm319, %v1121, 0
    %1125 = vmatpush.bf16.msra.mxu0 0
    %1126 = vmatpush.bf16.msra.mxu0 0
    %1127 = vmatpush.bf16.msra.mxu0 0
    %1128 = vmatpush.bf16.msra.mxu0 0
    %1129 = vmatpush.bf16.msra.mxu0 0
    %1130 = vmatpush.bf16.msra.mxu0 0
    %1131 = vmatpush.bf16.msra.mxu0 %v998
    %1132 = vmatpush.bf16.msra.mxu0 %v996
    %1133 = vmatmul.bf16.gmra.mxu0 %v1123
    %v1134 = vpop.f32.mrf.mxu0
    %v1135 = vadd.f32 0.0, %v1134
    %v1136 = vpop.f32.mrf.mxu0
    %1137 = vdwg.mxu0
    %1138 = vmatpush.bf16.msra.mxu0 0
    %1139 = vmatpush.bf16.msra.mxu0 0
    %1140 = vmatpush.bf16.msra.mxu0 0
    %1141 = vmatpush.bf16.msra.mxu0 0
    %1142 = vmatpush.bf16.msra.mxu0 0
    %1143 = vmatpush.bf16.msra.mxu0 0
    %1144 = vmatpush.bf16.msra.mxu0 %v999
    %1145 = vmatpush.bf16.msra.mxu0 %v997
    %1146 = vmatmul.bf16.gmra.mxu0 %v1123
    %v1147 = vpop.f32.mrf.mxu0
    %v1148 = vadd.f32 0.0, %v1147
    %v1149 = vpop.f32.mrf.mxu0
    %1150 = vdwg.mxu0
    %v1151 = vsel %vm262, %v1135, %v1148
    %v1152 = vadd.f32 %v955, %v1151
    %v1153 = vmul.f32 %v1152, 0.5
    %v1154 = vtanh.pop %v1153
    %v1155 = vmul.f32 %v1154, 0.5
    %v1156 = vadd.f32 %v1155, 0.5
    %v1157 = vtanh.pop %v1152
    %v1158 = vmul.f32 %v1156, %v1111
    %1160 = vrot.lane.b32.xlu0 %v1157, 64
    %v1161 = vpop.permute.xlu0 %1160
    %v1163 = vmul.f32 %v1156, %v1161
    %1165 = vrot.lane.b32.xlu0 %v1163, 32
    %v1166 = vpop.permute.xlu0 %1165
    %v1168 = vadd.f32 %v1158, %v1166
    %v1169 = vtanh.pop %v1168
    %1171 = vrot.lane.b32.xlu0 %v1169, 64
    %v1172 = vpop.permute.xlu0 %1171
    %v1174 = vmul.f32 %v1156, %v1172
    %v1175 = vpack.c.bf16 %v1174, %v1174
    %1177 = vrot.lane.b32.xlu0 %v1175, 32
    %v1178 = vpop.permute.xlu0 %1177
    %v1180 = vsel %vm319, %v1178, 0
    %1182 = vmatpush.bf16.msra.mxu0 0
    %1183 = vmatpush.bf16.msra.mxu0 0
    %1184 = vmatpush.bf16.msra.mxu0 0
    %1185 = vmatpush.bf16.msra.mxu0 0
    %1186 = vmatpush.bf16.msra.mxu0 0
    %1187 = vmatpush.bf16.msra.mxu0 0
    %1188 = vmatpush.bf16.msra.mxu0 %v998
    %1189 = vmatpush.bf16.msra.mxu0 %v996
    %1190 = vmatmul.bf16.gmra.mxu0 %v1180
    %v1191 = vpop.f32.mrf.mxu0
    %v1192 = vadd.f32 0.0, %v1191
    %v1193 = vpop.f32.mrf.mxu0
    %1194 = vdwg.mxu0
    %1195 = vmatpush.bf16.msra.mxu0 0
    %1196 = vmatpush.bf16.msra.mxu0 0
    %1197 = vmatpush.bf16.msra.mxu0 0
    %1198 = vmatpush.bf16.msra.mxu0 0
    %1199 = vmatpush.bf16.msra.mxu0 0
    %1200 = vmatpush.bf16.msra.mxu0 0
    %1201 = vmatpush.bf16.msra.mxu0 %v999
    %1202 = vmatpush.bf16.msra.mxu0 %v997
    %1203 = vmatmul.bf16.gmra.mxu0 %v1180
    %v1204 = vpop.f32.mrf.mxu0
    %v1205 = vadd.f32 0.0, %v1204
    %v1206 = vpop.f32.mrf.mxu0
    %1207 = vdwg.mxu0
    %v1208 = vsel %vm262, %v1192, %v1205
    %v1209 = vadd.f32 %v960, %v1208
    %v1210 = vmul.f32 %v1209, 0.5
    %v1211 = vtanh.pop %v1210
    %v1212 = vmul.f32 %v1211, 0.5
    %v1213 = vadd.f32 %v1212, 0.5
    %v1214 = vtanh.pop %v1209
    %v1215 = vmul.f32 %v1213, %v1168
    %1217 = vrot.lane.b32.xlu0 %v1214, 64
    %v1218 = vpop.permute.xlu0 %1217
    %v1220 = vmul.f32 %v1213, %v1218
    %1222 = vrot.lane.b32.xlu0 %v1220, 32
    %v1223 = vpop.permute.xlu0 %1222
    %v1225 = vadd.f32 %v1215, %v1223
    %v1226 = vtanh.pop %v1225
    %1228 = vrot.lane.b32.xlu0 %v1226, 64
    %v1229 = vpop.permute.xlu0 %1228
    %v1231 = vmul.f32 %v1213, %v1229
    %v1232 = vpack.c.bf16 %v1231, %v1231
    %1234 = vrot.lane.b32.xlu0 %v1232, 32
    %v1235 = vpop.permute.xlu0 %1234
    %v1237 = vsel %vm319, %v1235, 0
    %1239 = vmatpush.bf16.msra.mxu0 0
    %1240 = vmatpush.bf16.msra.mxu0 0
    %1241 = vmatpush.bf16.msra.mxu0 0
    %1242 = vmatpush.bf16.msra.mxu0 0
    %1243 = vmatpush.bf16.msra.mxu0 0
    %1244 = vmatpush.bf16.msra.mxu0 0
    %1245 = vmatpush.bf16.msra.mxu0 %v998
    %1246 = vmatpush.bf16.msra.mxu0 %v996
    %1247 = vmatmul.bf16.gmra.mxu0 %v1237
    %v1248 = vpop.f32.mrf.mxu0
    %v1249 = vadd.f32 0.0, %v1248
    %v1250 = vpop.f32.mrf.mxu0
    %1251 = vdwg.mxu0
    %1252 = vmatpush.bf16.msra.mxu0 0
    %1253 = vmatpush.bf16.msra.mxu0 0
    %1254 = vmatpush.bf16.msra.mxu0 0
    %1255 = vmatpush.bf16.msra.mxu0 0
    %1256 = vmatpush.bf16.msra.mxu0 0
    %1257 = vmatpush.bf16.msra.mxu0 0
    %1258 = vmatpush.bf16.msra.mxu0 %v999
    %1259 = vmatpush.bf16.msra.mxu0 %v997
    %1260 = vmatmul.bf16.gmra.mxu0 %v1237
    %v1261 = vpop.f32.mrf.mxu0
    %v1262 = vadd.f32 0.0, %v1261
    %v1263 = vpop.f32.mrf.mxu0
    %1264 = vdwg.mxu0
    %v1265 = vsel %vm262, %v1249, %v1262
    %v1266 = vadd.f32 %v964, %v1265
    %v1267 = vmul.f32 %v1266, 0.5
    %v1268 = vtanh.pop %v1267
    %v1269 = vmul.f32 %v1268, 0.5
    %v1270 = vadd.f32 %v1269, 0.5
    %v1271 = vtanh.pop %v1266
    %v1272 = vmul.f32 %v1270, %v1225
    %1274 = vrot.lane.b32.xlu0 %v1271, 64
    %v1275 = vpop.permute.xlu0 %1274
    %v1277 = vmul.f32 %v1270, %v1275
    %1279 = vrot.lane.b32.xlu0 %v1277, 32
    %v1280 = vpop.permute.xlu0 %1279
    %v1282 = vadd.f32 %v1272, %v1280
    %v1283 = vtanh.pop %v1282
    %1285 = vrot.lane.b32.xlu0 %v1283, 64
    %v1286 = vpop.permute.xlu0 %1285
    %v1288 = vmul.f32 %v1270, %v1286
    %v1289 = vpack.c.bf16 %v1288, %v1288
    %1291 = vrot.lane.b32.xlu0 %v1289, 32
    %v1292 = vpop.permute.xlu0 %1291
    %v1294 = vsel %vm319, %v1292, 0
    %1296 = vmatpush.bf16.msra.mxu0 0
    %1297 = vmatpush.bf16.msra.mxu0 0
    %1298 = vmatpush.bf16.msra.mxu0 0
    %1299 = vmatpush.bf16.msra.mxu0 0
    %1300 = vmatpush.bf16.msra.mxu0 0
    %1301 = vmatpush.bf16.msra.mxu0 0
    %1302 = vmatpush.bf16.msra.mxu0 %v998
    %1303 = vmatpush.bf16.msra.mxu0 %v996
    %1304 = vmatmul.bf16.gmra.mxu0 %v1294
    %v1305 = vpop.f32.mrf.mxu0
    %v1306 = vadd.f32 0.0, %v1305
    %v1307 = vpop.f32.mrf.mxu0
    %1308 = vdwg.mxu0
    %1309 = vmatpush.bf16.msra.mxu0 0
    %1310 = vmatpush.bf16.msra.mxu0 0
    %1311 = vmatpush.bf16.msra.mxu0 0
    %1312 = vmatpush.bf16.msra.mxu0 0
    %1313 = vmatpush.bf16.msra.mxu0 0
    %1314 = vmatpush.bf16.msra.mxu0 0
    %1315 = vmatpush.bf16.msra.mxu0 %v999
    %1316 = vmatpush.bf16.msra.mxu0 %v997
    %1317 = vmatmul.bf16.gmra.mxu0 %v1294
    %v1318 = vpop.f32.mrf.mxu0
    %v1319 = vadd.f32 0.0, %v1318
    %v1320 = vpop.f32.mrf.mxu0
    %1321 = vdwg.mxu0
    %v1322 = vsel %vm262, %v1306, %v1319
    %v1323 = vadd.f32 %v970, %v1322
    %v1324 = vmul.f32 %v1323, 0.5
    %v1325 = vtanh.pop %v1324
    %v1326 = vmul.f32 %v1325, 0.5
    %v1327 = vadd.f32 %v1326, 0.5
    %v1328 = vtanh.pop %v1323
    %v1329 = vmul.f32 %v1327, %v1282
    %1331 = vrot.lane.b32.xlu0 %v1328, 64
    %v1332 = vpop.permute.xlu0 %1331
    %v1334 = vmul.f32 %v1327, %v1332
    %1336 = vrot.lane.b32.xlu0 %v1334, 32
    %v1337 = vpop.permute.xlu0 %1336
    %v1339 = vadd.f32 %v1329, %v1337
    %v1340 = vtanh.pop %v1339
    %1342 = vrot.lane.b32.xlu0 %v1340, 64
    %v1343 = vpop.permute.xlu0 %1342
    %v1345 = vmul.f32 %v1327, %v1343
    %v1346 = vpack.c.bf16 %v1345, %v1345
    %1348 = vrot.lane.b32.xlu0 %v1346, 32
    %v1349 = vpop.permute.xlu0 %1348
    %v1351 = vsel %vm319, %v1349, 0
    %1353 = vmatpush.bf16.msra.mxu0 0
    %1354 = vmatpush.bf16.msra.mxu0 0
    %1355 = vmatpush.bf16.msra.mxu0 0
    %1356 = vmatpush.bf16.msra.mxu0 0
    %1357 = vmatpush.bf16.msra.mxu0 0
    %1358 = vmatpush.bf16.msra.mxu0 0
    %1359 = vmatpush.bf16.msra.mxu0 %v998
    %1360 = vmatpush.bf16.msra.mxu0 %v996
    %1361 = vmatmul.bf16.gmra.mxu0 %v1351
    %v1362 = vpop.f32.mrf.mxu0
    %v1363 = vadd.f32 0.0, %v1362
    %v1364 = vpop.f32.mrf.mxu0
    %1365 = vdwg.mxu0
    %1366 = vmatpush.bf16.msra.mxu0 0
    %1367 = vmatpush.bf16.msra.mxu0 0
    %1368 = vmatpush.bf16.msra.mxu0 0
    %1369 = vmatpush.bf16.msra.mxu0 0
    %1370 = vmatpush.bf16.msra.mxu0 0
    %1371 = vmatpush.bf16.msra.mxu0 0
    %1372 = vmatpush.bf16.msra.mxu0 %v999
    %1373 = vmatpush.bf16.msra.mxu0 %v997
    %1374 = vmatmul.bf16.gmra.mxu0 %v1351
    %v1375 = vpop.f32.mrf.mxu0
    %v1376 = vadd.f32 0.0, %v1375
    %v1377 = vpop.f32.mrf.mxu0
    %1378 = vdwg.mxu0
    %v1379 = vsel %vm262, %v1363, %v1376
    %v1380 = vadd.f32 %v973, %v1379
    %v1381 = vmul.f32 %v1380, 0.5
    %v1382 = vtanh.pop %v1381
    %v1383 = vmul.f32 %v1382, 0.5
    %v1384 = vadd.f32 %v1383, 0.5
    %v1385 = vtanh.pop %v1380
    %v1386 = vmul.f32 %v1384, %v1339
    %1388 = vrot.lane.b32.xlu0 %v1385, 64
    %v1389 = vpop.permute.xlu0 %1388
    %v1391 = vmul.f32 %v1384, %v1389
    %1393 = vrot.lane.b32.xlu0 %v1391, 32
    %v1394 = vpop.permute.xlu0 %1393
    %v1396 = vadd.f32 %v1386, %v1394
    %v1397 = vtanh.pop %v1396
    %1399 = vrot.lane.b32.xlu0 %v1397, 64
    %v1400 = vpop.permute.xlu0 %1399
    %v1402 = vmul.f32 %v1384, %v1400
    %v1403 = vpack.c.bf16 %v1402, %v1402
    %1405 = vrot.lane.b32.xlu0 %v1403, 32
    %v1406 = vpop.permute.xlu0 %1405
    %v1408 = vsel %vm319, %v1406, 0
    %1410 = vmatpush.bf16.msra.mxu0 0
    %1411 = vmatpush.bf16.msra.mxu0 0
    %1412 = vmatpush.bf16.msra.mxu0 0
    %1413 = vmatpush.bf16.msra.mxu0 0
    %1414 = vmatpush.bf16.msra.mxu0 0
    %1415 = vmatpush.bf16.msra.mxu0 0
    %1416 = vmatpush.bf16.msra.mxu0 %v998
    %1417 = vmatpush.bf16.msra.mxu0 %v996
    %1418 = vmatmul.bf16.gmra.mxu0 %v1408
    %v1419 = vpop.f32.mrf.mxu0
    %v1420 = vadd.f32 0.0, %v1419
    %v1421 = vpop.f32.mrf.mxu0
    %1422 = vdwg.mxu0
    %1423 = vmatpush.bf16.msra.mxu0 0
    %1424 = vmatpush.bf16.msra.mxu0 0
    %1425 = vmatpush.bf16.msra.mxu0 0
    %1426 = vmatpush.bf16.msra.mxu0 0
    %1427 = vmatpush.bf16.msra.mxu0 0
    %1428 = vmatpush.bf16.msra.mxu0 0
    %1429 = vmatpush.bf16.msra.mxu0 %v999
    %1430 = vmatpush.bf16.msra.mxu0 %v997
    %1431 = vmatmul.bf16.gmra.mxu0 %v1408
    %v1432 = vpop.f32.mrf.mxu0
    %v1433 = vadd.f32 0.0, %v1432
    %v1434 = vpop.f32.mrf.mxu0
    %1435 = vdwg.mxu0
    %v1436 = vsel %vm262, %v1420, %v1433
    %v1437 = vadd.f32 %v978, %v1436
    %v1438 = vmul.f32 %v1437, 0.5
    %v1439 = vtanh.pop %v1438
    %v1440 = vmul.f32 %v1439, 0.5
    %v1441 = vadd.f32 %v1440, 0.5
    %v1442 = vtanh.pop %v1437
    %v1443 = vmul.f32 %v1441, %v1396
    %1445 = vrot.lane.b32.xlu0 %v1442, 64
    %v1446 = vpop.permute.xlu0 %1445
    %v1448 = vmul.f32 %v1441, %v1446
    %1450 = vrot.lane.b32.xlu0 %v1448, 32
    %v1451 = vpop.permute.xlu0 %1450
    %v1453 = vadd.f32 %v1443, %v1451
    %v1454 = vtanh.pop %v1453
    %1456 = vrot.lane.b32.xlu0 %v1454, 64
    %v1457 = vpop.permute.xlu0 %1456
    %v1459 = vmul.f32 %v1441, %v1457
    %1461 = vrot.lane.b32.xlu0 %v1459, 32
    %v1462 = vpop.permute.xlu0 %1461
    %v1465 = vrot.slane %v1060, 2
    %1466 = vrot.lane.b32.xlu0 %v1465, 64
    %v1467 = vpop.permute.xlu0 %1466
    %v1469 = vsel %vm319, %v1462, %v1467
    %s1470 = smul.u32 4, 8
    %s1471 = smul.u32 %s1470, 7
    %s1472 = sshll.u32 %s1471, 4
    %1473 = dma.done [#allocation6], %s1472
    %s1474 = smul.u32 4, 112
    %s1475 = smul.u32 %s1474, 4
    %s1476 = sshll.u32 %s1475, 4
    %1477 = dma.done %s174, %s1476
    %s1478 = smul.u32 4, 64
    %s1479 = smul.u32 %s1478, 1
    %s1480 = sshll.u32 %s1479, 4
    %1481 = dma.done %s188, %s1480
    %v1482 = vpack.c.bf16 %v1469, %v1469
    %v1483 = vld [vmem:[#allocation3] sm:$0xff]
    %v1484 = vld [vmem:[#allocation3 + $0x8] sm:$0xff]
    %v1485 = vld [vmem:[#allocation3 + $0x10] sm:$0xff]
    %v1486 = vld [vmem:[#allocation3 + $0x18] sm:$0xf]
    %v1487 = vld [vmem:[#allocation3 + $0x1c] sm:$0xff]
    %v1488 = vld [vmem:[#allocation3 + $0x24] sm:$0xff]
    %v1489 = vld [vmem:[#allocation3 + $0x2c] sm:$0xff]
    %v1490 = vld [vmem:[#allocation3 + $0x34] sm:$0xf]
    %v1491 = vld [vmem:[#allocation3 + $0x38] sm:$0xff]
    %v1492 = vld [vmem:[#allocation3 + $0x40] sm:$0xff]
    %v1493 = vld [vmem:[#allocation3 + $0x48] sm:$0xff]
    %v1494 = vld [vmem:[#allocation3 + $0x50] sm:$0xf]
    %v1495 = vld [vmem:[#allocation3 + $0x54] sm:$0xff]
    %v1496 = vld [vmem:[#allocation3 + $0x5c] sm:$0xff]
    %v1497 = vld [vmem:[#allocation3 + $0x64] sm:$0xff]
    %v1498 = vld [vmem:[#allocation3 + $0x6c] sm:$0xf]
    %v1499 = vld [vmem:[#allocation3 + $0x70] sm:$0xff]
    %v1500 = vld [vmem:[#allocation3 + $0x78] sm:$0xff]
    %v1501 = vld [vmem:[#allocation3 + $0x80] sm:$0xff]
    %v1502 = vld [vmem:[#allocation3 + $0x88] sm:$0xf]
    %v1503 = vld [vmem:[#allocation3 + $0x8c] sm:$0xff]
    %v1504 = vld [vmem:[#allocation3 + $0x94] sm:$0xff]
    %v1505 = vld [vmem:[#allocation3 + $0x9c] sm:$0xff]
    %v1506 = vld [vmem:[#allocation3 + $0xa4] sm:$0xf]
    %v1507 = vld [vmem:[#allocation3 + $0xa8] sm:$0xff]
    %v1508 = vld [vmem:[#allocation3 + $0xb0] sm:$0xff]
    %v1509 = vld [vmem:[#allocation3 + $0xb8] sm:$0xff]
    %v1510 = vld [vmem:[#allocation3 + $0xc0] sm:$0xf]
    %v1511 = vld [vmem:[#allocation3 + $0xc4] sm:$0xff]
    %v1512 = vld [vmem:[#allocation3 + $0xcc] sm:$0xff]
    %v1513 = vld [vmem:[#allocation3 + $0xd4] sm:$0xff]
    %v1514 = vld [vmem:[#allocation3 + $0xdc] sm:$0xf]
    %v1515 = vld [vmem:[#allocation16] sm:$0xff]
    %v1517 = vperm.slane %v1515, 0
    %v1518 = vperm.slane %v1515, 1
    %v1519 = vperm.slane %v1515, 2
    %v1520 = vperm.slane %v1515, 3
    %v1521 = vperm.slane %v1515, 4
    %v1522 = vperm.slane %v1515, 5
    %v1523 = vperm.slane %v1515, 6
    %v1563 = vunpack.c.l.b16 %v1483
    %v1564 = vunpack.c.h.b16 %v1483
    %v1565 = vunpack.c.l.b16 %v1484
    %v1566 = vunpack.c.h.b16 %v1484
    %v1567 = vunpack.c.l.b16 %v1485
    %v1568 = vunpack.c.h.b16 %v1485
    %v1569 = vunpack.c.l.b16 %v1486
    %v1570 = vunpack.c.l.b16 %v1487
    %v1571 = vunpack.c.h.b16 %v1487
    %v1572 = vunpack.c.l.b16 %v1488
    %v1573 = vunpack.c.h.b16 %v1488
    %v1574 = vunpack.c.l.b16 %v1489
    %v1575 = vunpack.c.h.b16 %v1489
    %v1576 = vunpack.c.l.b16 %v1490
    %v1577 = vunpack.c.l.b16 %v1491
    %v1578 = vunpack.c.h.b16 %v1491
    %v1579 = vunpack.c.l.b16 %v1492
    %v1580 = vunpack.c.h.b16 %v1492
    %v1581 = vunpack.c.l.b16 %v1493
    %v1582 = vunpack.c.h.b16 %v1493
    %v1583 = vunpack.c.l.b16 %v1494
    %v1584 = vunpack.c.l.b16 %v1495
    %v1585 = vunpack.c.h.b16 %v1495
    %v1586 = vunpack.c.l.b16 %v1496
    %v1587 = vunpack.c.h.b16 %v1496
    %v1588 = vunpack.c.l.b16 %v1497
    %v1589 = vunpack.c.h.b16 %v1497
    %v1590 = vunpack.c.l.b16 %v1498
    %v1591 = vunpack.c.l.b16 %v1499
    %v1592 = vunpack.c.h.b16 %v1499
    %v1593 = vunpack.c.l.b16 %v1500
    %v1594 = vunpack.c.h.b16 %v1500
    %v1595 = vunpack.c.l.b16 %v1501
    %v1596 = vunpack.c.h.b16 %v1501
    %v1597 = vunpack.c.l.b16 %v1502
    %v1598 = vunpack.c.l.b16 %v1503
    %v1599 = vunpack.c.h.b16 %v1503
    %v1600 = vunpack.c.l.b16 %v1504
    %v1601 = vunpack.c.h.b16 %v1504
    %v1602 = vunpack.c.l.b16 %v1505
    %v1603 = vunpack.c.h.b16 %v1505
    %v1604 = vunpack.c.l.b16 %v1506
    %v1605 = vunpack.c.l.b16 %v1507
    %v1606 = vunpack.c.h.b16 %v1507
    %v1607 = vunpack.c.l.b16 %v1508
    %v1608 = vunpack.c.h.b16 %v1508
    %v1609 = vunpack.c.l.b16 %v1509
    %v1610 = vunpack.c.h.b16 %v1509
    %v1611 = vunpack.c.l.b16 %v1510
    %v1612 = vunpack.c.l.b16 %v1511
    %v1613 = vunpack.c.h.b16 %v1511
    %v1614 = vunpack.c.l.b16 %v1512
    %v1615 = vunpack.c.h.b16 %v1512
    %v1616 = vunpack.c.l.b16 %v1513
    %v1617 = vunpack.c.h.b16 %v1513
    %v1618 = vunpack.c.l.b16 %v1514
    %v1619 = vpack.c.b16 %v1570, %v1563
    %v1620 = vpack.c.b16 %v1571, %v1564
    %v1621 = vpack.c.b16 %v1572, %v1565
    %v1622 = vpack.c.b16 %v1573, %v1566
    %v1623 = vpack.c.b16 %v1574, %v1567
    %v1624 = vpack.c.b16 %v1575, %v1568
    %v1625 = vpack.c.b16 %v1576, %v1569
    %v1626 = vpack.c.b16 %v1584, %v1577
    %v1627 = vpack.c.b16 %v1585, %v1578
    %v1628 = vpack.c.b16 %v1586, %v1579
    %v1629 = vpack.c.b16 %v1587, %v1580
    %v1630 = vpack.c.b16 %v1588, %v1581
    %v1631 = vpack.c.b16 %v1589, %v1582
    %v1632 = vpack.c.b16 %v1590, %v1583
    %v1633 = vpack.c.b16 %v1598, %v1591
    %v1634 = vpack.c.b16 %v1599, %v1592
    %v1635 = vpack.c.b16 %v1600, %v1593
    %v1636 = vpack.c.b16 %v1601, %v1594
    %v1637 = vpack.c.b16 %v1602, %v1595
    %v1638 = vpack.c.b16 %v1603, %v1596
    %v1639 = vpack.c.b16 %v1604, %v1597
    %v1640 = vpack.c.b16 %v1612, %v1605
    %v1641 = vpack.c.b16 %v1613, %v1606
    %v1642 = vpack.c.b16 %v1614, %v1607
    %v1643 = vpack.c.b16 %v1615, %v1608
    %v1644 = vpack.c.b16 %v1616, %v1609
    %v1645 = vpack.c.b16 %v1617, %v1610
    %v1646 = vpack.c.b16 %v1618, %v1611
    %v1676 = vsel %vm907, %v1482, 0
    %1678 = vmatpush.bf16.msra.mxu0 0
    %1679 = vmatpush.bf16.msra.mxu0 0
    %1680 = vmatpush.bf16.msra.mxu0 0
    %1681 = vmatpush.bf16.msra.mxu0 0
    %1682 = vmatpush.bf16.msra.mxu0 %v1640
    %1683 = vmatpush.bf16.msra.mxu0 %v1633
    %1684 = vmatpush.bf16.msra.mxu0 %v1626
    %1685 = vmatpush.bf16.msra.mxu0 %v1619
    %1686 = vmatmul.bf16.gmra.mxu0 %v1676
    %v1687 = vpop.f32.mrf.mxu0
    %v1688 = vadd.f32 %v1517, %v1687
    %v1689 = vpop.f32.mrf.mxu0
    %1690 = vdwg.mxu0
    %1691 = vmatpush.bf16.msra.mxu0 0
    %1692 = vmatpush.bf16.msra.mxu0 0
    %1693 = vmatpush.bf16.msra.mxu0 0
    %1694 = vmatpush.bf16.msra.mxu0 0
    %1695 = vmatpush.bf16.msra.mxu0 %v1641
    %1696 = vmatpush.bf16.msra.mxu0 %v1634
    %1697 = vmatpush.bf16.msra.mxu0 %v1627
    %1698 = vmatpush.bf16.msra.mxu0 %v1620
    %1699 = vmatmul.bf16.gmra.mxu0 %v1676
    %v1700 = vpop.f32.mrf.mxu0
    %v1701 = vadd.f32 %v1518, %v1700
    %v1702 = vpop.f32.mrf.mxu0
    %1703 = vdwg.mxu0
    %1704 = vmatpush.bf16.msra.mxu0 0
    %1705 = vmatpush.bf16.msra.mxu0 0
    %1706 = vmatpush.bf16.msra.mxu0 0
    %1707 = vmatpush.bf16.msra.mxu0 0
    %1708 = vmatpush.bf16.msra.mxu0 %v1642
    %1709 = vmatpush.bf16.msra.mxu0 %v1635
    %1710 = vmatpush.bf16.msra.mxu0 %v1628
    %1711 = vmatpush.bf16.msra.mxu0 %v1621
    %1712 = vmatmul.bf16.gmra.mxu0 %v1676
    %v1713 = vpop.f32.mrf.mxu0
    %v1714 = vadd.f32 %v1519, %v1713
    %v1715 = vpop.f32.mrf.mxu0
    %1716 = vdwg.mxu0
    %1717 = vmatpush.bf16.msra.mxu0 0
    %1718 = vmatpush.bf16.msra.mxu0 0
    %1719 = vmatpush.bf16.msra.mxu0 0
    %1720 = vmatpush.bf16.msra.mxu0 0
    %1721 = vmatpush.bf16.msra.mxu0 %v1643
    %1722 = vmatpush.bf16.msra.mxu0 %v1636
    %1723 = vmatpush.bf16.msra.mxu0 %v1629
    %1724 = vmatpush.bf16.msra.mxu0 %v1622
    %1725 = vmatmul.bf16.gmra.mxu0 %v1676
    %v1726 = vpop.f32.mrf.mxu0
    %v1727 = vadd.f32 %v1520, %v1726
    %v1728 = vpop.f32.mrf.mxu0
    %1729 = vdwg.mxu0
    %1730 = vmatpush.bf16.msra.mxu0 0
    %1731 = vmatpush.bf16.msra.mxu0 0
    %1732 = vmatpush.bf16.msra.mxu0 0
    %1733 = vmatpush.bf16.msra.mxu0 0
    %1734 = vmatpush.bf16.msra.mxu0 %v1644
    %1735 = vmatpush.bf16.msra.mxu0 %v1637
    %1736 = vmatpush.bf16.msra.mxu0 %v1630
    %1737 = vmatpush.bf16.msra.mxu0 %v1623
    %1738 = vmatmul.bf16.gmra.mxu0 %v1676
    %v1739 = vpop.f32.mrf.mxu0
    %v1740 = vadd.f32 %v1521, %v1739
    %v1741 = vpop.f32.mrf.mxu0
    %1742 = vdwg.mxu0
    %1743 = vmatpush.bf16.msra.mxu0 0
    %1744 = vmatpush.bf16.msra.mxu0 0
    %1745 = vmatpush.bf16.msra.mxu0 0
    %1746 = vmatpush.bf16.msra.mxu0 0
    %1747 = vmatpush.bf16.msra.mxu0 %v1645
    %1748 = vmatpush.bf16.msra.mxu0 %v1638
    %1749 = vmatpush.bf16.msra.mxu0 %v1631
    %1750 = vmatpush.bf16.msra.mxu0 %v1624
    %1751 = vmatmul.bf16.gmra.mxu0 %v1676
    %v1752 = vpop.f32.mrf.mxu0
    %v1753 = vadd.f32 %v1522, %v1752
    %v1754 = vpop.f32.mrf.mxu0
    %1755 = vdwg.mxu0
    %1756 = vmatpush.bf16.msra.mxu0 0
    %1757 = vmatpush.bf16.msra.mxu0 0
    %1758 = vmatpush.bf16.msra.mxu0 0
    %1759 = vmatpush.bf16.msra.mxu0 0
    %1760 = vmatpush.bf16.msra.mxu0 %v1646
    %1761 = vmatpush.bf16.msra.mxu0 %v1639
    %1762 = vmatpush.bf16.msra.mxu0 %v1632
    %1763 = vmatpush.bf16.msra.mxu0 %v1625
    %1764 = vmatmul.bf16.gmra.mxu0 %v1676
    %v1765 = vpop.f32.mrf.mxu0
    %v1766 = vadd.f32 %v1523, %v1765
    %v1767 = vpop.f32.mrf.mxu0
    %1768 = vdwg.mxu0
    %v1769 = vmax.f32 %v1688, 0.0
    %v1770 = vmax.f32 %v1701, 0.0
    %v1771 = vmax.f32 %v1714, 0.0
    %v1772 = vmax.f32 %v1727, 0.0
    %v1773 = vmax.f32 %v1740, 0.0
    %v1774 = vmax.f32 %v1753, 0.0
    %v1775 = vmax.f32 %v1766, 0.0
    %v1776 = vpack.c.bf16 %v1769, %v1769
    %v1777 = vpack.c.bf16 %v1770, %v1770
    %v1778 = vpack.c.bf16 %v1771, %v1771
    %v1779 = vpack.c.bf16 %v1772, %v1772
    %v1780 = vpack.c.bf16 %v1773, %v1773
    %v1781 = vpack.c.bf16 %v1774, %v1774
    %v1782 = vpack.c.bf16 %v1775, %v1775
    %v1783 = vld [vmem:[#allocation4] sm:$0xff]
    %v1784 = vld [vmem:[#allocation4 + $0x8] sm:$0xff]
    %v1785 = vld [vmem:[#allocation4 + $0x10] sm:$0xff]
    %v1786 = vld [vmem:[#allocation4 + $0x18] sm:$0xff]
    %v1787 = vld [vmem:[#allocation4 + $0x20] sm:$0xff]
    %v1788 = vld [vmem:[#allocation4 + $0x28] sm:$0xff]
    %v1789 = vld [vmem:[#allocation4 + $0x30] sm:$0xff]
    %v1790 = vld [vmem:[#allocation4 + $0x38] sm:$0xff]
    %v1791 = vld [vmem:[#allocation4 + $0x40] sm:$0xff]
    %v1792 = vld [vmem:[#allocation4 + $0x48] sm:$0xff]
    %v1793 = vld [vmem:[#allocation4 + $0x50] sm:$0xff]
    %v1794 = vld [vmem:[#allocation4 + $0x58] sm:$0xff]
    %v1795 = vld [vmem:[#allocation4 + $0x60] sm:$0xff]
    %v1796 = vld [vmem:[#allocation4 + $0x68] sm:$0xff]
    %v1797 = vld [vmem:[#allocation4 + $0x70] sm:$0xff]
    %v1798 = vld [vmem:[#allocation4 + $0x78] sm:$0xff]
    %v1799 = vld [vmem:[#allocation4 + $0x80] sm:$0xff]
    %v1800 = vld [vmem:[#allocation4 + $0x88] sm:$0xff]
    %v1801 = vld [vmem:[#allocation4 + $0x90] sm:$0xff]
    %v1802 = vld [vmem:[#allocation4 + $0x98] sm:$0xff]
    %v1803 = vld [vmem:[#allocation4 + $0xa0] sm:$0xff]
    %v1804 = vld [vmem:[#allocation4 + $0xa8] sm:$0xff]
    %v1805 = vld [vmem:[#allocation4 + $0xb0] sm:$0xff]
    %v1806 = vld [vmem:[#allocation4 + $0xb8] sm:$0xff]
    %v1807 = vld [vmem:[#allocation4 + $0xc0] sm:$0xff]
    %v1808 = vld [vmem:[#allocation4 + $0xc8] sm:$0xff]
    %v1809 = vld [vmem:[#allocation4 + $0xd0] sm:$0xff]
    %v1810 = vld [vmem:[#allocation4 + $0xd8] sm:$0xff]
    %v1811 = vld [vmem:[#allocation4 + $0xe0] sm:$0xff]
    %v1812 = vld [vmem:[#allocation4 + $0xe8] sm:$0xff]
    %v1813 = vld [vmem:[#allocation4 + $0xf0] sm:$0xff]
    %v1814 = vld [vmem:[#allocation4 + $0xf8] sm:$0xff]
    %v1815 = vld [vmem:[#allocation4 + $0x100] sm:$0xff]
    %v1816 = vld [vmem:[#allocation4 + $0x108] sm:$0xff]
    %v1817 = vld [vmem:[#allocation4 + $0x110] sm:$0xff]
    %v1818 = vld [vmem:[#allocation4 + $0x118] sm:$0xff]
    %v1819 = vld [vmem:[#allocation4 + $0x120] sm:$0xff]
    %v1820 = vld [vmem:[#allocation4 + $0x128] sm:$0xff]
    %v1821 = vld [vmem:[#allocation4 + $0x130] sm:$0xff]
    %v1822 = vld [vmem:[#allocation4 + $0x138] sm:$0xff]
    %v1823 = vld [vmem:[#allocation4 + $0x140] sm:$0xff]
    %v1824 = vld [vmem:[#allocation4 + $0x148] sm:$0xff]
    %v1825 = vld [vmem:[#allocation4 + $0x150] sm:$0xff]
    %v1826 = vld [vmem:[#allocation4 + $0x158] sm:$0xff]
    %v1827 = vld [vmem:[#allocation4 + $0x160] sm:$0xff]
    %v1828 = vld [vmem:[#allocation4 + $0x168] sm:$0xff]
    %v1829 = vld [vmem:[#allocation4 + $0x170] sm:$0xff]
    %v1830 = vld [vmem:[#allocation4 + $0x178] sm:$0xff]
    %v1831 = vld [vmem:[#allocation4 + $0x180] sm:$0xff]
    %v1832 = vld [vmem:[#allocation4 + $0x188] sm:$0xff]
    %v1833 = vld [vmem:[#allocation4 + $0x190] sm:$0xff]
    %v1834 = vld [vmem:[#allocation4 + $0x198] sm:$0xff]
    %v1835 = vld [vmem:[#allocation4 + $0x1a0] sm:$0xff]
    %v1836 = vld [vmem:[#allocation4 + $0x1a8] sm:$0xff]
    %v1837 = vld [vmem:[#allocation4 + $0x1b0] sm:$0xff]
    %v1838 = vld [vmem:[#allocation4 + $0x1b8] sm:$0xff]
    %v1839 = vld [vmem:[#allocation4 + $0x1c0] sm:$0xff]
    %v1840 = vld [vmem:[#allocation4 + $0x1c8] sm:$0xff]
    %v1841 = vld [vmem:[#allocation4 + $0x1d0] sm:$0xff]
    %v1842 = vld [vmem:[#allocation4 + $0x1d8] sm:$0xff]
    %v1843 = vld [vmem:[#allocation4 + $0x1e0] sm:$0xff]
    %v1844 = vld [vmem:[#allocation4 + $0x1e8] sm:$0xff]
    %v1845 = vld [vmem:[#allocation4 + $0x1f0] sm:$0xff]
    %v1846 = vld [vmem:[#allocation4 + $0x1f8] sm:$0xff]
    %v1847 = vld [vmem:[#allocation4 + $0x200] sm:$0xff]
    %v1848 = vld [vmem:[#allocation4 + $0x208] sm:$0xff]
    %v1849 = vld [vmem:[#allocation4 + $0x210] sm:$0xff]
    %v1850 = vld [vmem:[#allocation4 + $0x218] sm:$0xff]
    %v1851 = vld [vmem:[#allocation4 + $0x220] sm:$0xff]
    %v1852 = vld [vmem:[#allocation4 + $0x228] sm:$0xff]
    %v1853 = vld [vmem:[#allocation4 + $0x230] sm:$0xff]
    %v1854 = vld [vmem:[#allocation4 + $0x238] sm:$0xff]
    %v1855 = vld [vmem:[#allocation4 + $0x240] sm:$0xff]
    %v1856 = vld [vmem:[#allocation4 + $0x248] sm:$0xff]
    %v1857 = vld [vmem:[#allocation4 + $0x250] sm:$0xff]
    %v1858 = vld [vmem:[#allocation4 + $0x258] sm:$0xff]
    %v1859 = vld [vmem:[#allocation4 + $0x260] sm:$0xff]
    %v1860 = vld [vmem:[#allocation4 + $0x268] sm:$0xff]
    %v1861 = vld [vmem:[#allocation4 + $0x270] sm:$0xff]
    %v1862 = vld [vmem:[#allocation4 + $0x278] sm:$0xff]
    %v1863 = vld [vmem:[#allocation4 + $0x280] sm:$0xff]
    %v1864 = vld [vmem:[#allocation4 + $0x288] sm:$0xff]
    %v1865 = vld [vmem:[#allocation4 + $0x290] sm:$0xff]
    %v1866 = vld [vmem:[#allocation4 + $0x298] sm:$0xff]
    %v1867 = vld [vmem:[#allocation4 + $0x2a0] sm:$0xff]
    %v1868 = vld [vmem:[#allocation4 + $0x2a8] sm:$0xff]
    %v1869 = vld [vmem:[#allocation4 + $0x2b0] sm:$0xff]
    %v1870 = vld [vmem:[#allocation4 + $0x2b8] sm:$0xff]
    %v1871 = vld [vmem:[#allocation4 + $0x2c0] sm:$0xff]
    %v1872 = vld [vmem:[#allocation4 + $0x2c8] sm:$0xff]
    %v1873 = vld [vmem:[#allocation4 + $0x2d0] sm:$0xff]
    %v1874 = vld [vmem:[#allocation4 + $0x2d8] sm:$0xff]
    %v1875 = vld [vmem:[#allocation4 + $0x2e0] sm:$0xff]
    %v1876 = vld [vmem:[#allocation4 + $0x2e8] sm:$0xff]
    %v1877 = vld [vmem:[#allocation4 + $0x2f0] sm:$0xff]
    %v1878 = vld [vmem:[#allocation4 + $0x2f8] sm:$0xff]
    %v1879 = vld [vmem:[#allocation4 + $0x300] sm:$0xff]
    %v1880 = vld [vmem:[#allocation4 + $0x308] sm:$0xff]
    %v1881 = vld [vmem:[#allocation4 + $0x310] sm:$0xff]
    %v1882 = vld [vmem:[#allocation4 + $0x318] sm:$0xff]
    %v1883 = vld [vmem:[#allocation4 + $0x320] sm:$0xff]
    %v1884 = vld [vmem:[#allocation4 + $0x328] sm:$0xff]
    %v1885 = vld [vmem:[#allocation4 + $0x330] sm:$0xff]
    %v1886 = vld [vmem:[#allocation4 + $0x338] sm:$0xff]
    %v1887 = vld [vmem:[#allocation4 + $0x340] sm:$0xff]
    %v1888 = vld [vmem:[#allocation4 + $0x348] sm:$0xff]
    %v1889 = vld [vmem:[#allocation4 + $0x350] sm:$0xff]
    %v1890 = vld [vmem:[#allocation4 + $0x358] sm:$0xff]
    %v1891 = vld [vmem:[#allocation4 + $0x360] sm:$0xff]
    %v1892 = vld [vmem:[#allocation4 + $0x368] sm:$0xff]
    %v1893 = vld [vmem:[#allocation4 + $0x370] sm:$0xff]
    %v1894 = vld [vmem:[#allocation4 + $0x378] sm:$0xff]
    %v1895 = vld [vmem:[#allocation4 + $0x380] sm:$0xff]
    %v1896 = vld [vmem:[#allocation4 + $0x388] sm:$0xff]
    %v1897 = vld [vmem:[#allocation4 + $0x390] sm:$0xff]
    %v1898 = vld [vmem:[#allocation4 + $0x398] sm:$0xff]
    %v1899 = vld [vmem:[#allocation4 + $0x3a0] sm:$0xff]
    %v1900 = vld [vmem:[#allocation4 + $0x3a8] sm:$0xff]
    %v1901 = vld [vmem:[#allocation4 + $0x3b0] sm:$0xff]
    %v1902 = vld [vmem:[#allocation4 + $0x3b8] sm:$0xff]
    %v1903 = vld [vmem:[#allocation4 + $0x3c0] sm:$0xff]
    %v1904 = vld [vmem:[#allocation4 + $0x3c8] sm:$0xff]
    %v1905 = vld [vmem:[#allocation4 + $0x3d0] sm:$0xff]
    %v1906 = vld [vmem:[#allocation4 + $0x3d8] sm:$0xff]
    %v1907 = vld [vmem:[#allocation4 + $0x3e0] sm:$0xff]
    %v1908 = vld [vmem:[#allocation4 + $0x3e8] sm:$0xff]
    %v1909 = vld [vmem:[#allocation4 + $0x3f0] sm:$0xff]
    %v1910 = vld [vmem:[#allocation4 + $0x3f8] sm:$0xff]
    %v1911 = vld [vmem:[#allocation4 + $0x400] sm:$0xff]
    %v1912 = vld [vmem:[#allocation4 + $0x408] sm:$0xff]
    %v1913 = vld [vmem:[#allocation4 + $0x410] sm:$0xff]
    %v1914 = vld [vmem:[#allocation4 + $0x418] sm:$0xff]
    %v1915 = vld [vmem:[#allocation4 + $0x420] sm:$0xff]
    %v1916 = vld [vmem:[#allocation4 + $0x428] sm:$0xff]
    %v1917 = vld [vmem:[#allocation4 + $0x430] sm:$0xff]
    %v1918 = vld [vmem:[#allocation4 + $0x438] sm:$0xff]
    %v1919 = vld [vmem:[#allocation4 + $0x440] sm:$0xff]
    %v1920 = vld [vmem:[#allocation4 + $0x448] sm:$0xff]
    %v1921 = vld [vmem:[#allocation4 + $0x450] sm:$0xff]
    %v1922 = vld [vmem:[#allocation4 + $0x458] sm:$0xff]
    %v1923 = vld [vmem:[#allocation4 + $0x460] sm:$0xff]
    %v1924 = vld [vmem:[#allocation4 + $0x468] sm:$0xff]
    %v1925 = vld [vmem:[#allocation4 + $0x470] sm:$0xff]
    %v1926 = vld [vmem:[#allocation4 + $0x478] sm:$0xff]
    %v1927 = vld [vmem:[#allocation4 + $0x480] sm:$0xff]
    %v1928 = vld [vmem:[#allocation4 + $0x488] sm:$0xff]
    %v1929 = vld [vmem:[#allocation4 + $0x490] sm:$0xff]
    %v1930 = vld [vmem:[#allocation4 + $0x498] sm:$0xff]
    %v1931 = vld [vmem:[#allocation4 + $0x4a0] sm:$0xff]
    %v1932 = vld [vmem:[#allocation4 + $0x4a8] sm:$0xff]
    %v1933 = vld [vmem:[#allocation4 + $0x4b0] sm:$0xff]
    %v1934 = vld [vmem:[#allocation4 + $0x4b8] sm:$0xff]
    %v1935 = vld [vmem:[#allocation4 + $0x4c0] sm:$0xff]
    %v1936 = vld [vmem:[#allocation4 + $0x4c8] sm:$0xff]
    %v1937 = vld [vmem:[#allocation4 + $0x4d0] sm:$0xff]
    %v1938 = vld [vmem:[#allocation4 + $0x4d8] sm:$0xff]
    %v1939 = vld [vmem:[#allocation4 + $0x4e0] sm:$0xff]
    %v1940 = vld [vmem:[#allocation4 + $0x4e8] sm:$0xff]
    %v1941 = vld [vmem:[#allocation4 + $0x4f0] sm:$0xff]
    %v1942 = vld [vmem:[#allocation4 + $0x4f8] sm:$0xff]
    %v1943 = vld [vmem:[#allocation4 + $0x500] sm:$0xff]
    %v1944 = vld [vmem:[#allocation4 + $0x508] sm:$0xff]
    %v1945 = vld [vmem:[#allocation4 + $0x510] sm:$0xff]
    %v1946 = vld [vmem:[#allocation4 + $0x518] sm:$0xff]
    %v1947 = vld [vmem:[#allocation4 + $0x520] sm:$0xff]
    %v1948 = vld [vmem:[#allocation4 + $0x528] sm:$0xff]
    %v1949 = vld [vmem:[#allocation4 + $0x530] sm:$0xff]
    %v1950 = vld [vmem:[#allocation4 + $0x538] sm:$0xff]
    %v1951 = vld [vmem:[#allocation4 + $0x540] sm:$0xff]
    %v1952 = vld [vmem:[#allocation4 + $0x548] sm:$0xff]
    %v1953 = vld [vmem:[#allocation4 + $0x550] sm:$0xff]
    %v1954 = vld [vmem:[#allocation4 + $0x558] sm:$0xff]
    %v1955 = vld [vmem:[#allocation4 + $0x560] sm:$0xff]
    %v1956 = vld [vmem:[#allocation4 + $0x568] sm:$0xff]
    %v1957 = vld [vmem:[#allocation4 + $0x570] sm:$0xff]
    %v1958 = vld [vmem:[#allocation4 + $0x578] sm:$0xff]
    %v1959 = vld [vmem:[#allocation4 + $0x580] sm:$0xff]
    %v1960 = vld [vmem:[#allocation4 + $0x588] sm:$0xff]
    %v1961 = vld [vmem:[#allocation4 + $0x590] sm:$0xff]
    %v1962 = vld [vmem:[#allocation4 + $0x598] sm:$0xff]
    %v1963 = vld [vmem:[#allocation4 + $0x5a0] sm:$0xff]
    %v1964 = vld [vmem:[#allocation4 + $0x5a8] sm:$0xff]
    %v1965 = vld [vmem:[#allocation4 + $0x5b0] sm:$0xff]
    %v1966 = vld [vmem:[#allocation4 + $0x5b8] sm:$0xff]
    %v1967 = vld [vmem:[#allocation4 + $0x5c0] sm:$0xff]
    %v1968 = vld [vmem:[#allocation4 + $0x5c8] sm:$0xff]
    %v1969 = vld [vmem:[#allocation4 + $0x5d0] sm:$0xff]
    %v1970 = vld [vmem:[#allocation4 + $0x5d8] sm:$0xff]
    %v1971 = vld [vmem:[#allocation4 + $0x5e0] sm:$0xff]
    %v1972 = vld [vmem:[#allocation4 + $0x5e8] sm:$0xff]
    %v1973 = vld [vmem:[#allocation4 + $0x5f0] sm:$0xff]
    %v1974 = vld [vmem:[#allocation4 + $0x5f8] sm:$0xff]
    %v1975 = vld [vmem:[#allocation4 + $0x600] sm:$0xff]
    %v1976 = vld [vmem:[#allocation4 + $0x608] sm:$0xff]
    %v1977 = vld [vmem:[#allocation4 + $0x610] sm:$0xff]
    %v1978 = vld [vmem:[#allocation4 + $0x618] sm:$0xff]
    %v1979 = vld [vmem:[#allocation4 + $0x620] sm:$0xff]
    %v1980 = vld [vmem:[#allocation4 + $0x628] sm:$0xff]
    %v1981 = vld [vmem:[#allocation4 + $0x630] sm:$0xff]
    %v1982 = vld [vmem:[#allocation4 + $0x638] sm:$0xff]
    %v1983 = vld [vmem:[#allocation4 + $0x640] sm:$0xff]
    %v1984 = vld [vmem:[#allocation4 + $0x648] sm:$0xff]
    %v1985 = vld [vmem:[#allocation4 + $0x650] sm:$0xff]
    %v1986 = vld [vmem:[#allocation4 + $0x658] sm:$0xff]
    %v1987 = vld [vmem:[#allocation4 + $0x660] sm:$0xff]
    %v1988 = vld [vmem:[#allocation4 + $0x668] sm:$0xff]
    %v1989 = vld [vmem:[#allocation4 + $0x670] sm:$0xff]
    %v1990 = vld [vmem:[#allocation4 + $0x678] sm:$0xff]
    %v1991 = vld [vmem:[#allocation4 + $0x680] sm:$0xff]
    %v1992 = vld [vmem:[#allocation4 + $0x688] sm:$0xff]
    %v1993 = vld [vmem:[#allocation4 + $0x690] sm:$0xff]
    %v1994 = vld [vmem:[#allocation4 + $0x698] sm:$0xff]
    %v1995 = vld [vmem:[#allocation4 + $0x6a0] sm:$0xff]
    %v1996 = vld [vmem:[#allocation4 + $0x6a8] sm:$0xff]
    %v1997 = vld [vmem:[#allocation4 + $0x6b0] sm:$0xff]
    %v1998 = vld [vmem:[#allocation4 + $0x6b8] sm:$0xff]
    %v1999 = vld [vmem:[#allocation4 + $0x6c0] sm:$0xff]
    %v2000 = vld [vmem:[#allocation4 + $0x6c8] sm:$0xff]
    %v2001 = vld [vmem:[#allocation4 + $0x6d0] sm:$0xff]
    %v2002 = vld [vmem:[#allocation4 + $0x6d8] sm:$0xff]
    %v2003 = vld [vmem:[#allocation4 + $0x6e0] sm:$0xff]
    %v2004 = vld [vmem:[#allocation4 + $0x6e8] sm:$0xff]
    %v2005 = vld [vmem:[#allocation4 + $0x6f0] sm:$0xff]
    %v2006 = vld [vmem:[#allocation4 + $0x6f8] sm:$0xff]
    %v2007 = vld [vmem:[#allocation18] sm:$0xf]
    %v2009 = vperm.slane %v2007, 0
    %v2010 = vperm.slane %v2007, 1
    %v2011 = vperm.slane %v2007, 2
    %v2012 = vperm.slane %v2007, 3
    %v2241 = vunpack.c.l.b16 %v1783
    %v2242 = vunpack.c.h.b16 %v1783
    %v2243 = vunpack.c.l.b16 %v1784
    %v2244 = vunpack.c.h.b16 %v1784
    %v2245 = vunpack.c.l.b16 %v1785
    %v2246 = vunpack.c.h.b16 %v1785
    %v2247 = vunpack.c.l.b16 %v1786
    %v2248 = vunpack.c.h.b16 %v1786
    %v2249 = vunpack.c.l.b16 %v1787
    %v2250 = vunpack.c.h.b16 %v1787
    %v2251 = vunpack.c.l.b16 %v1788
    %v2252 = vunpack.c.h.b16 %v1788
    %v2253 = vunpack.c.l.b16 %v1789
    %v2254 = vunpack.c.h.b16 %v1789
    %v2255 = vunpack.c.l.b16 %v1790
    %v2256 = vunpack.c.h.b16 %v1790
    %v2257 = vunpack.c.l.b16 %v1791
    %v2258 = vunpack.c.h.b16 %v1791
    %v2259 = vunpack.c.l.b16 %v1792
    %v2260 = vunpack.c.h.b16 %v1792
    %v2261 = vunpack.c.l.b16 %v1793
    %v2262 = vunpack.c.h.b16 %v1793
    %v2263 = vunpack.c.l.b16 %v1794
    %v2264 = vunpack.c.h.b16 %v1794
    %v2265 = vunpack.c.l.b16 %v1795
    %v2266 = vunpack.c.h.b16 %v1795
    %v2267 = vunpack.c.l.b16 %v1796
    %v2268 = vunpack.c.h.b16 %v1796
    %v2269 = vunpack.c.l.b16 %v1797
    %v2270 = vunpack.c.h.b16 %v1797
    %v2271 = vunpack.c.l.b16 %v1798
    %v2272 = vunpack.c.h.b16 %v1798
    %v2273 = vunpack.c.l.b16 %v1799
    %v2274 = vunpack.c.h.b16 %v1799
    %v2275 = vunpack.c.l.b16 %v1800
    %v2276 = vunpack.c.h.b16 %v1800
    %v2277 = vunpack.c.l.b16 %v1801
    %v2278 = vunpack.c.h.b16 %v1801
    %v2279 = vunpack.c.l.b16 %v1802
    %v2280 = vunpack.c.h.b16 %v1802
    %v2281 = vunpack.c.l.b16 %v1803
    %v2282 = vunpack.c.h.b16 %v1803
    %v2283 = vunpack.c.l.b16 %v1804
    %v2284 = vunpack.c.h.b16 %v1804
    %v2285 = vunpack.c.l.b16 %v1805
    %v2286 = vunpack.c.h.b16 %v1805
    %v2287 = vunpack.c.l.b16 %v1806
    %v2288 = vunpack.c.h.b16 %v1806
    %v2289 = vunpack.c.l.b16 %v1807
    %v2290 = vunpack.c.h.b16 %v1807
    %v2291 = vunpack.c.l.b16 %v1808
    %v2292 = vunpack.c.h.b16 %v1808
    %v2293 = vunpack.c.l.b16 %v1809
    %v2294 = vunpack.c.h.b16 %v1809
    %v2295 = vunpack.c.l.b16 %v1810
    %v2296 = vunpack.c.h.b16 %v1810
    %v2297 = vunpack.c.l.b16 %v1811
    %v2298 = vunpack.c.h.b16 %v1811
    %v2299 = vunpack.c.l.b16 %v1812
    %v2300 = vunpack.c.h.b16 %v1812
    %v2301 = vunpack.c.l.b16 %v1813
    %v2302 = vunpack.c.h.b16 %v1813
    %v2303 = vunpack.c.l.b16 %v1814
    %v2304 = vunpack.c.h.b16 %v1814
    %v2305 = vunpack.c.l.b16 %v1815
    %v2306 = vunpack.c.h.b16 %v1815
    %v2307 = vunpack.c.l.b16 %v1816
    %v2308 = vunpack.c.h.b16 %v1816
    %v2309 = vunpack.c.l.b16 %v1817
    %v2310 = vunpack.c.h.b16 %v1817
    %v2311 = vunpack.c.l.b16 %v1818
    %v2312 = vunpack.c.h.b16 %v1818
    %v2313 = vunpack.c.l.b16 %v1819
    %v2314 = vunpack.c.h.b16 %v1819
    %v2315 = vunpack.c.l.b16 %v1820
    %v2316 = vunpack.c.h.b16 %v1820
    %v2317 = vunpack.c.l.b16 %v1821
    %v2318 = vunpack.c.h.b16 %v1821
    %v2319 = vunpack.c.l.b16 %v1822
    %v2320 = vunpack.c.h.b16 %v1822
    %v2321 = vunpack.c.l.b16 %v1823
    %v2322 = vunpack.c.h.b16 %v1823
    %v2323 = vunpack.c.l.b16 %v1824
    %v2324 = vunpack.c.h.b16 %v1824
    %v2325 = vunpack.c.l.b16 %v1825
    %v2326 = vunpack.c.h.b16 %v1825
    %v2327 = vunpack.c.l.b16 %v1826
    %v2328 = vunpack.c.h.b16 %v1826
    %v2329 = vunpack.c.l.b16 %v1827
    %v2330 = vunpack.c.h.b16 %v1827
    %v2331 = vunpack.c.l.b16 %v1828
    %v2332 = vunpack.c.h.b16 %v1828
    %v2333 = vunpack.c.l.b16 %v1829
    %v2334 = vunpack.c.h.b16 %v1829
    %v2335 = vunpack.c.l.b16 %v1830
    %v2336 = vunpack.c.h.b16 %v1830
    %v2337 = vunpack.c.l.b16 %v1831
    %v2338 = vunpack.c.h.b16 %v1831
    %v2339 = vunpack.c.l.b16 %v1832
    %v2340 = vunpack.c.h.b16 %v1832
    %v2341 = vunpack.c.l.b16 %v1833
    %v2342 = vunpack.c.h.b16 %v1833
    %v2343 = vunpack.c.l.b16 %v1834
    %v2344 = vunpack.c.h.b16 %v1834
    %v2345 = vunpack.c.l.b16 %v1835
    %v2346 = vunpack.c.h.b16 %v1835
    %v2347 = vunpack.c.l.b16 %v1836
    %v2348 = vunpack.c.h.b16 %v1836
    %v2349 = vunpack.c.l.b16 %v1837
    %v2350 = vunpack.c.h.b16 %v1837
    %v2351 = vunpack.c.l.b16 %v1838
    %v2352 = vunpack.c.h.b16 %v1838
    %v2353 = vunpack.c.l.b16 %v1839
    %v2354 = vunpack.c.h.b16 %v1839
    %v2355 = vunpack.c.l.b16 %v1840
    %v2356 = vunpack.c.h.b16 %v1840
    %v2357 = vunpack.c.l.b16 %v1841
    %v2358 = vunpack.c.h.b16 %v1841
    %v2359 = vunpack.c.l.b16 %v1842
    %v2360 = vunpack.c.h.b16 %v1842
    %v2361 = vunpack.c.l.b16 %v1843
    %v2362 = vunpack.c.h.b16 %v1843
    %v2363 = vunpack.c.l.b16 %v1844
    %v2364 = vunpack.c.h.b16 %v1844
    %v2365 = vunpack.c.l.b16 %v1845
    %v2366 = vunpack.c.h.b16 %v1845
    %v2367 = vunpack.c.l.b16 %v1846
    %v2368 = vunpack.c.h.b16 %v1846
    %v2369 = vunpack.c.l.b16 %v1847
    %v2370 = vunpack.c.h.b16 %v1847
    %v2371 = vunpack.c.l.b16 %v1848
    %v2372 = vunpack.c.h.b16 %v1848
    %v2373 = vunpack.c.l.b16 %v1849
    %v2374 = vunpack.c.h.b16 %v1849
    %v2375 = vunpack.c.l.b16 %v1850
    %v2376 = vunpack.c.h.b16 %v1850
    %v2377 = vunpack.c.l.b16 %v1851
    %v2378 = vunpack.c.h.b16 %v1851
    %v2379 = vunpack.c.l.b16 %v1852
    %v2380 = vunpack.c.h.b16 %v1852
    %v2381 = vunpack.c.l.b16 %v1853
    %v2382 = vunpack.c.h.b16 %v1853
    %v2383 = vunpack.c.l.b16 %v1854
    %v2384 = vunpack.c.h.b16 %v1854
    %v2385 = vunpack.c.l.b16 %v1855
    %v2386 = vunpack.c.h.b16 %v1855
    %v2387 = vunpack.c.l.b16 %v1856
    %v2388 = vunpack.c.h.b16 %v1856
    %v2389 = vunpack.c.l.b16 %v1857
    %v2390 = vunpack.c.h.b16 %v1857
    %v2391 = vunpack.c.l.b16 %v1858
    %v2392 = vunpack.c.h.b16 %v1858
    %v2393 = vunpack.c.l.b16 %v1859
    %v2394 = vunpack.c.h.b16 %v1859
    %v2395 = vunpack.c.l.b16 %v1860
    %v2396 = vunpack.c.h.b16 %v1860
    %v2397 = vunpack.c.l.b16 %v1861
    %v2398 = vunpack.c.h.b16 %v1861
    %v2399 = vunpack.c.l.b16 %v1862
    %v2400 = vunpack.c.h.b16 %v1862
    %v2401 = vunpack.c.l.b16 %v1863
    %v2402 = vunpack.c.h.b16 %v1863
    %v2403 = vunpack.c.l.b16 %v1864
    %v2404 = vunpack.c.h.b16 %v1864
    %v2405 = vunpack.c.l.b16 %v1865
    %v2406 = vunpack.c.h.b16 %v1865
    %v2407 = vunpack.c.l.b16 %v1866
    %v2408 = vunpack.c.h.b16 %v1866
    %v2409 = vunpack.c.l.b16 %v1867
    %v2410 = vunpack.c.h.b16 %v1867
    %v2411 = vunpack.c.l.b16 %v1868
    %v2412 = vunpack.c.h.b16 %v1868
    %v2413 = vunpack.c.l.b16 %v1869
    %v2414 = vunpack.c.h.b16 %v1869
    %v2415 = vunpack.c.l.b16 %v1870
    %v2416 = vunpack.c.h.b16 %v1870
    %v2417 = vunpack.c.l.b16 %v1871
    %v2418 = vunpack.c.h.b16 %v1871
    %v2419 = vunpack.c.l.b16 %v1872
    %v2420 = vunpack.c.h.b16 %v1872
    %v2421 = vunpack.c.l.b16 %v1873
    %v2422 = vunpack.c.h.b16 %v1873
    %v2423 = vunpack.c.l.b16 %v1874
    %v2424 = vunpack.c.h.b16 %v1874
    %v2425 = vunpack.c.l.b16 %v1875
    %v2426 = vunpack.c.h.b16 %v1875
    %v2427 = vunpack.c.l.b16 %v1876
    %v2428 = vunpack.c.h.b16 %v1876
    %v2429 = vunpack.c.l.b16 %v1877
    %v2430 = vunpack.c.h.b16 %v1877
    %v2431 = vunpack.c.l.b16 %v1878
    %v2432 = vunpack.c.h.b16 %v1878
    %v2433 = vunpack.c.l.b16 %v1879
    %v2434 = vunpack.c.h.b16 %v1879
    %v2435 = vunpack.c.l.b16 %v1880
    %v2436 = vunpack.c.h.b16 %v1880
    %v2437 = vunpack.c.l.b16 %v1881
    %v2438 = vunpack.c.h.b16 %v1881
    %v2439 = vunpack.c.l.b16 %v1882
    %v2440 = vunpack.c.h.b16 %v1882
    %v2441 = vunpack.c.l.b16 %v1883
    %v2442 = vunpack.c.h.b16 %v1883
    %v2443 = vunpack.c.l.b16 %v1884
    %v2444 = vunpack.c.h.b16 %v1884
    %v2445 = vunpack.c.l.b16 %v1885
    %v2446 = vunpack.c.h.b16 %v1885
    %v2447 = vunpack.c.l.b16 %v1886
    %v2448 = vunpack.c.h.b16 %v1886
    %v2449 = vunpack.c.l.b16 %v1887
    %v2450 = vunpack.c.h.b16 %v1887
    %v2451 = vunpack.c.l.b16 %v1888
    %v2452 = vunpack.c.h.b16 %v1888
    %v2453 = vunpack.c.l.b16 %v1889
    %v2454 = vunpack.c.h.b16 %v1889
    %v2455 = vunpack.c.l.b16 %v1890
    %v2456 = vunpack.c.h.b16 %v1890
    %v2457 = vunpack.c.l.b16 %v1891
    %v2458 = vunpack.c.h.b16 %v1891
    %v2459 = vunpack.c.l.b16 %v1892
    %v2460 = vunpack.c.h.b16 %v1892
    %v2461 = vunpack.c.l.b16 %v1893
    %v2462 = vunpack.c.h.b16 %v1893
    %v2463 = vunpack.c.l.b16 %v1894
    %v2464 = vunpack.c.h.b16 %v1894
    %v2465 = vunpack.c.l.b16 %v1895
    %v2466 = vunpack.c.h.b16 %v1895
    %v2467 = vunpack.c.l.b16 %v1896
    %v2468 = vunpack.c.h.b16 %v1896
    %v2469 = vunpack.c.l.b16 %v1897
    %v2470 = vunpack.c.h.b16 %v1897
    %v2471 = vunpack.c.l.b16 %v1898
    %v2472 = vunpack.c.h.b16 %v1898
    %v2473 = vunpack.c.l.b16 %v1899
    %v2474 = vunpack.c.h.b16 %v1899
    %v2475 = vunpack.c.l.b16 %v1900
    %v2476 = vunpack.c.h.b16 %v1900
    %v2477 = vunpack.c.l.b16 %v1901
    %v2478 = vunpack.c.h.b16 %v1901
    %v2479 = vunpack.c.l.b16 %v1902
    %v2480 = vunpack.c.h.b16 %v1902
    %v2481 = vunpack.c.l.b16 %v1903
    %v2482 = vunpack.c.h.b16 %v1903
    %v2483 = vunpack.c.l.b16 %v1904
    %v2484 = vunpack.c.h.b16 %v1904
    %v2485 = vunpack.c.l.b16 %v1905
    %v2486 = vunpack.c.h.b16 %v1905
    %v2487 = vunpack.c.l.b16 %v1906
    %v2488 = vunpack.c.h.b16 %v1906
    %v2489 = vunpack.c.l.b16 %v1907
    %v2490 = vunpack.c.h.b16 %v1907
    %v2491 = vunpack.c.l.b16 %v1908
    %v2492 = vunpack.c.h.b16 %v1908
    %v2493 = vunpack.c.l.b16 %v1909
    %v2494 = vunpack.c.h.b16 %v1909
    %v2495 = vunpack.c.l.b16 %v1910
    %v2496 = vunpack.c.h.b16 %v1910
    %v2497 = vunpack.c.l.b16 %v1911
    %v2498 = vunpack.c.h.b16 %v1911
    %v2499 = vunpack.c.l.b16 %v1912
    %v2500 = vunpack.c.h.b16 %v1912
    %v2501 = vunpack.c.l.b16 %v1913
    %v2502 = vunpack.c.h.b16 %v1913
    %v2503 = vunpack.c.l.b16 %v1914
    %v2504 = vunpack.c.h.b16 %v1914
    %v2505 = vunpack.c.l.b16 %v1915
    %v2506 = vunpack.c.h.b16 %v1915
    %v2507 = vunpack.c.l.b16 %v1916
    %v2508 = vunpack.c.h.b16 %v1916
    %v2509 = vunpack.c.l.b16 %v1917
    %v2510 = vunpack.c.h.b16 %v1917
    %v2511 = vunpack.c.l.b16 %v1918
    %v2512 = vunpack.c.h.b16 %v1918
    %v2513 = vunpack.c.l.b16 %v1919
    %v2514 = vunpack.c.h.b16 %v1919
    %v2515 = vunpack.c.l.b16 %v1920
    %v2516 = vunpack.c.h.b16 %v1920
    %v2517 = vunpack.c.l.b16 %v1921
    %v2518 = vunpack.c.h.b16 %v1921
    %v2519 = vunpack.c.l.b16 %v1922
    %v2520 = vunpack.c.h.b16 %v1922
    %v2521 = vunpack.c.l.b16 %v1923
    %v2522 = vunpack.c.h.b16 %v1923
    %v2523 = vunpack.c.l.b16 %v1924
    %v2524 = vunpack.c.h.b16 %v1924
    %v2525 = vunpack.c.l.b16 %v1925
    %v2526 = vunpack.c.h.b16 %v1925
    %v2527 = vunpack.c.l.b16 %v1926
    %v2528 = vunpack.c.h.b16 %v1926
    %v2529 = vunpack.c.l.b16 %v1927
    %v2530 = vunpack.c.h.b16 %v1927
    %v2531 = vunpack.c.l.b16 %v1928
    %v2532 = vunpack.c.h.b16 %v1928
    %v2533 = vunpack.c.l.b16 %v1929
    %v2534 = vunpack.c.h.b16 %v1929
    %v2535 = vunpack.c.l.b16 %v1930
    %v2536 = vunpack.c.h.b16 %v1930
    %v2537 = vunpack.c.l.b16 %v1931
    %v2538 = vunpack.c.h.b16 %v1931
    %v2539 = vunpack.c.l.b16 %v1932
    %v2540 = vunpack.c.h.b16 %v1932
    %v2541 = vunpack.c.l.b16 %v1933
    %v2542 = vunpack.c.h.b16 %v1933
    %v2543 = vunpack.c.l.b16 %v1934
    %v2544 = vunpack.c.h.b16 %v1934
    %v2545 = vunpack.c.l.b16 %v1935
    %v2546 = vunpack.c.h.b16 %v1935
    %v2547 = vunpack.c.l.b16 %v1936
    %v2548 = vunpack.c.h.b16 %v1936
    %v2549 = vunpack.c.l.b16 %v1937
    %v2550 = vunpack.c.h.b16 %v1937
    %v2551 = vunpack.c.l.b16 %v1938
    %v2552 = vunpack.c.h.b16 %v1938
    %v2553 = vunpack.c.l.b16 %v1939
    %v2554 = vunpack.c.h.b16 %v1939
    %v2555 = vunpack.c.l.b16 %v1940
    %v2556 = vunpack.c.h.b16 %v1940
    %v2557 = vunpack.c.l.b16 %v1941
    %v2558 = vunpack.c.h.b16 %v1941
    %v2559 = vunpack.c.l.b16 %v1942
    %v2560 = vunpack.c.h.b16 %v1942
    %v2561 = vunpack.c.l.b16 %v1943
    %v2562 = vunpack.c.h.b16 %v1943
    %v2563 = vunpack.c.l.b16 %v1944
    %v2564 = vunpack.c.h.b16 %v1944
    %v2565 = vunpack.c.l.b16 %v1945
    %v2566 = vunpack.c.h.b16 %v1945
    %v2567 = vunpack.c.l.b16 %v1946
    %v2568 = vunpack.c.h.b16 %v1946
    %v2569 = vunpack.c.l.b16 %v1947
    %v2570 = vunpack.c.h.b16 %v1947
    %v2571 = vunpack.c.l.b16 %v1948
    %v2572 = vunpack.c.h.b16 %v1948
    %v2573 = vunpack.c.l.b16 %v1949
    %v2574 = vunpack.c.h.b16 %v1949
    %v2575 = vunpack.c.l.b16 %v1950
    %v2576 = vunpack.c.h.b16 %v1950
    %v2577 = vunpack.c.l.b16 %v1951
    %v2578 = vunpack.c.h.b16 %v1951
    %v2579 = vunpack.c.l.b16 %v1952
    %v2580 = vunpack.c.h.b16 %v1952
    %v2581 = vunpack.c.l.b16 %v1953
    %v2582 = vunpack.c.h.b16 %v1953
    %v2583 = vunpack.c.l.b16 %v1954
    %v2584 = vunpack.c.h.b16 %v1954
    %v2585 = vunpack.c.l.b16 %v1955
    %v2586 = vunpack.c.h.b16 %v1955
    %v2587 = vunpack.c.l.b16 %v1956
    %v2588 = vunpack.c.h.b16 %v1956
    %v2589 = vunpack.c.l.b16 %v1957
    %v2590 = vunpack.c.h.b16 %v1957
    %v2591 = vunpack.c.l.b16 %v1958
    %v2592 = vunpack.c.h.b16 %v1958
    %v2593 = vunpack.c.l.b16 %v1959
    %v2594 = vunpack.c.h.b16 %v1959
    %v2595 = vunpack.c.l.b16 %v1960
    %v2596 = vunpack.c.h.b16 %v1960
    %v2597 = vunpack.c.l.b16 %v1961
    %v2598 = vunpack.c.h.b16 %v1961
    %v2599 = vunpack.c.l.b16 %v1962
    %v2600 = vunpack.c.h.b16 %v1962
    %v2601 = vunpack.c.l.b16 %v1963
    %v2602 = vunpack.c.h.b16 %v1963
    %v2603 = vunpack.c.l.b16 %v1964
    %v2604 = vunpack.c.h.b16 %v1964
    %v2605 = vunpack.c.l.b16 %v1965
    %v2606 = vunpack.c.h.b16 %v1965
    %v2607 = vunpack.c.l.b16 %v1966
    %v2608 = vunpack.c.h.b16 %v1966
    %v2609 = vunpack.c.l.b16 %v1967
    %v2610 = vunpack.c.h.b16 %v1967
    %v2611 = vunpack.c.l.b16 %v1968
    %v2612 = vunpack.c.h.b16 %v1968
    %v2613 = vunpack.c.l.b16 %v1969
    %v2614 = vunpack.c.h.b16 %v1969
    %v2615 = vunpack.c.l.b16 %v1970
    %v2616 = vunpack.c.h.b16 %v1970
    %v2617 = vunpack.c.l.b16 %v1971
    %v2618 = vunpack.c.h.b16 %v1971
    %v2619 = vunpack.c.l.b16 %v1972
    %v2620 = vunpack.c.h.b16 %v1972
    %v2621 = vunpack.c.l.b16 %v1973
    %v2622 = vunpack.c.h.b16 %v1973
    %v2623 = vunpack.c.l.b16 %v1974
    %v2624 = vunpack.c.h.b16 %v1974
    %v2625 = vunpack.c.l.b16 %v1975
    %v2626 = vunpack.c.h.b16 %v1975
    %v2627 = vunpack.c.l.b16 %v1976
    %v2628 = vunpack.c.h.b16 %v1976
    %v2629 = vunpack.c.l.b16 %v1977
    %v2630 = vunpack.c.h.b16 %v1977
    %v2631 = vunpack.c.l.b16 %v1978
    %v2632 = vunpack.c.h.b16 %v1978
    %v2633 = vunpack.c.l.b16 %v1979
    %v2634 = vunpack.c.h.b16 %v1979
    %v2635 = vunpack.c.l.b16 %v1980
    %v2636 = vunpack.c.h.b16 %v1980
    %v2637 = vunpack.c.l.b16 %v1981
    %v2638 = vunpack.c.h.b16 %v1981
    %v2639 = vunpack.c.l.b16 %v1982
    %v2640 = vunpack.c.h.b16 %v1982
    %v2641 = vunpack.c.l.b16 %v1983
    %v2642 = vunpack.c.h.b16 %v1983
    %v2643 = vunpack.c.l.b16 %v1984
    %v2644 = vunpack.c.h.b16 %v1984
    %v2645 = vunpack.c.l.b16 %v1985
    %v2646 = vunpack.c.h.b16 %v1985
    %v2647 = vunpack.c.l.b16 %v1986
    %v2648 = vunpack.c.h.b16 %v1986
    %v2649 = vunpack.c.l.b16 %v1987
    %v2650 = vunpack.c.h.b16 %v1987
    %v2651 = vunpack.c.l.b16 %v1988
    %v2652 = vunpack.c.h.b16 %v1988
    %v2653 = vunpack.c.l.b16 %v1989
    %v2654 = vunpack.c.h.b16 %v1989
    %v2655 = vunpack.c.l.b16 %v1990
    %v2656 = vunpack.c.h.b16 %v1990
    %v2657 = vunpack.c.l.b16 %v1991
    %v2658 = vunpack.c.h.b16 %v1991
    %v2659 = vunpack.c.l.b16 %v1992
    %v2660 = vunpack.c.h.b16 %v1992
    %v2661 = vunpack.c.l.b16 %v1993
    %v2662 = vunpack.c.h.b16 %v1993
    %v2663 = vunpack.c.l.b16 %v1994
    %v2664 = vunpack.c.h.b16 %v1994
    %v2665 = vunpack.c.l.b16 %v1995
    %v2666 = vunpack.c.h.b16 %v1995
    %v2667 = vunpack.c.l.b16 %v1996
    %v2668 = vunpack.c.h.b16 %v1996
    %v2669 = vunpack.c.l.b16 %v1997
    %v2670 = vunpack.c.h.b16 %v1997
    %v2671 = vunpack.c.l.b16 %v1998
    %v2672 = vunpack.c.h.b16 %v1998
    %v2673 = vunpack.c.l.b16 %v1999
    %v2674 = vunpack.c.h.b16 %v1999
    %v2675 = vunpack.c.l.b16 %v2000
    %v2676 = vunpack.c.h.b16 %v2000
    %v2677 = vunpack.c.l.b16 %v2001
    %v2678 = vunpack.c.h.b16 %v2001
    %v2679 = vunpack.c.l.b16 %v2002
    %v2680 = vunpack.c.h.b16 %v2002
    %v2681 = vunpack.c.l.b16 %v2003
    %v2682 = vunpack.c.h.b16 %v2003
    %v2683 = vunpack.c.l.b16 %v2004
    %v2684 = vunpack.c.h.b16 %v2004
    %v2685 = vunpack.c.l.b16 %v2005
    %v2686 = vunpack.c.h.b16 %v2005
    %v2687 = vunpack.c.l.b16 %v2006
    %v2688 = vunpack.c.h.b16 %v2006
    %v2689 = vpack.c.b16 %v2245, %v2241
    %v2690 = vpack.c.b16 %v2246, %v2242
    %v2691 = vpack.c.b16 %v2247, %v2243
    %v2692 = vpack.c.b16 %v2248, %v2244
    %v2693 = vpack.c.b16 %v2253, %v2249
    %v2694 = vpack.c.b16 %v2254, %v2250
    %v2695 = vpack.c.b16 %v2255, %v2251
    %v2696 = vpack.c.b16 %v2256, %v2252
    %v2697 = vpack.c.b16 %v2261, %v2257
    %v2698 = vpack.c.b16 %v2262, %v2258
    %v2699 = vpack.c.b16 %v2263, %v2259
    %v2700 = vpack.c.b16 %v2264, %v2260
    %v2701 = vpack.c.b16 %v2269, %v2265
    %v2702 = vpack.c.b16 %v2270, %v2266
    %v2703 = vpack.c.b16 %v2271, %v2267
    %v2704 = vpack.c.b16 %v2272, %v2268
    %v2705 = vpack.c.b16 %v2277, %v2273
    %v2706 = vpack.c.b16 %v2278, %v2274
    %v2707 = vpack.c.b16 %v2279, %v2275
    %v2708 = vpack.c.b16 %v2280, %v2276
    %v2709 = vpack.c.b16 %v2285, %v2281
    %v2710 = vpack.c.b16 %v2286, %v2282
    %v2711 = vpack.c.b16 %v2287, %v2283
    %v2712 = vpack.c.b16 %v2288, %v2284
    %v2713 = vpack.c.b16 %v2293, %v2289
    %v2714 = vpack.c.b16 %v2294, %v2290
    %v2715 = vpack.c.b16 %v2295, %v2291
    %v2716 = vpack.c.b16 %v2296, %v2292
    %v2717 = vpack.c.b16 %v2301, %v2297
    %v2718 = vpack.c.b16 %v2302, %v2298
    %v2719 = vpack.c.b16 %v2303, %v2299
    %v2720 = vpack.c.b16 %v2304, %v2300
    %v2721 = vpack.c.b16 %v2309, %v2305
    %v2722 = vpack.c.b16 %v2310, %v2306
    %v2723 = vpack.c.b16 %v2311, %v2307
    %v2724 = vpack.c.b16 %v2312, %v2308
    %v2725 = vpack.c.b16 %v2317, %v2313
    %v2726 = vpack.c.b16 %v2318, %v2314
    %v2727 = vpack.c.b16 %v2319, %v2315
    %v2728 = vpack.c.b16 %v2320, %v2316
    %v2729 = vpack.c.b16 %v2325, %v2321
    %v2730 = vpack.c.b16 %v2326, %v2322
    %v2731 = vpack.c.b16 %v2327, %v2323
    %v2732 = vpack.c.b16 %v2328, %v2324
    %v2733 = vpack.c.b16 %v2333, %v2329
    %v2734 = vpack.c.b16 %v2334, %v2330
    %v2735 = vpack.c.b16 %v2335, %v2331
    %v2736 = vpack.c.b16 %v2336, %v2332
    %v2737 = vpack.c.b16 %v2341, %v2337
    %v2738 = vpack.c.b16 %v2342, %v2338
    %v2739 = vpack.c.b16 %v2343, %v2339
    %v2740 = vpack.c.b16 %v2344, %v2340
    %v2741 = vpack.c.b16 %v2349, %v2345
    %v2742 = vpack.c.b16 %v2350, %v2346
    %v2743 = vpack.c.b16 %v2351, %v2347
    %v2744 = vpack.c.b16 %v2352, %v2348
    %v2745 = vpack.c.b16 %v2357, %v2353
    %v2746 = vpack.c.b16 %v2358, %v2354
    %v2747 = vpack.c.b16 %v2359, %v2355
    %v2748 = vpack.c.b16 %v2360, %v2356
    %v2749 = vpack.c.b16 %v2365, %v2361
    %v2750 = vpack.c.b16 %v2366, %v2362
    %v2751 = vpack.c.b16 %v2367, %v2363
    %v2752 = vpack.c.b16 %v2368, %v2364
    %v2753 = vpack.c.b16 %v2373, %v2369
    %v2754 = vpack.c.b16 %v2374, %v2370
    %v2755 = vpack.c.b16 %v2375, %v2371
    %v2756 = vpack.c.b16 %v2376, %v2372
    %v2757 = vpack.c.b16 %v2381, %v2377
    %v2758 = vpack.c.b16 %v2382, %v2378
    %v2759 = vpack.c.b16 %v2383, %v2379
    %v2760 = vpack.c.b16 %v2384, %v2380
    %v2761 = vpack.c.b16 %v2389, %v2385
    %v2762 = vpack.c.b16 %v2390, %v2386
    %v2763 = vpack.c.b16 %v2391, %v2387
    %v2764 = vpack.c.b16 %v2392, %v2388
    %v2765 = vpack.c.b16 %v2397, %v2393
    %v2766 = vpack.c.b16 %v2398, %v2394
    %v2767 = vpack.c.b16 %v2399, %v2395
    %v2768 = vpack.c.b16 %v2400, %v2396
    %v2769 = vpack.c.b16 %v2405, %v2401
    %v2770 = vpack.c.b16 %v2406, %v2402
    %v2771 = vpack.c.b16 %v2407, %v2403
    %v2772 = vpack.c.b16 %v2408, %v2404
    %v2773 = vpack.c.b16 %v2413, %v2409
    %v2774 = vpack.c.b16 %v2414, %v2410
    %v2775 = vpack.c.b16 %v2415, %v2411
    %v2776 = vpack.c.b16 %v2416, %v2412
    %v2777 = vpack.c.b16 %v2421, %v2417
    %v2778 = vpack.c.b16 %v2422, %v2418
    %v2779 = vpack.c.b16 %v2423, %v2419
    %v2780 = vpack.c.b16 %v2424, %v2420
    %v2781 = vpack.c.b16 %v2429, %v2425
    %v2782 = vpack.c.b16 %v2430, %v2426
    %v2783 = vpack.c.b16 %v2431, %v2427
    %v2784 = vpack.c.b16 %v2432, %v2428
    %v2785 = vpack.c.b16 %v2437, %v2433
    %v2786 = vpack.c.b16 %v2438, %v2434
    %v2787 = vpack.c.b16 %v2439, %v2435
    %v2788 = vpack.c.b16 %v2440, %v2436
    %v2789 = vpack.c.b16 %v2445, %v2441
    %v2790 = vpack.c.b16 %v2446, %v2442
    %v2791 = vpack.c.b16 %v2447, %v2443
    %v2792 = vpack.c.b16 %v2448, %v2444
    %v2793 = vpack.c.b16 %v2453, %v2449
    %v2794 = vpack.c.b16 %v2454, %v2450
    %v2795 = vpack.c.b16 %v2455, %v2451
    %v2796 = vpack.c.b16 %v2456, %v2452
    %v2797 = vpack.c.b16 %v2461, %v2457
    %v2798 = vpack.c.b16 %v2462, %v2458
    %v2799 = vpack.c.b16 %v2463, %v2459
    %v2800 = vpack.c.b16 %v2464, %v2460
    %v2801 = vpack.c.b16 %v2469, %v2465
    %v2802 = vpack.c.b16 %v2470, %v2466
    %v2803 = vpack.c.b16 %v2471, %v2467
    %v2804 = vpack.c.b16 %v2472, %v2468
    %v2805 = vpack.c.b16 %v2477, %v2473
    %v2806 = vpack.c.b16 %v2478, %v2474
    %v2807 = vpack.c.b16 %v2479, %v2475
    %v2808 = vpack.c.b16 %v2480, %v2476
    %v2809 = vpack.c.b16 %v2485, %v2481
    %v2810 = vpack.c.b16 %v2486, %v2482
    %v2811 = vpack.c.b16 %v2487, %v2483
    %v2812 = vpack.c.b16 %v2488, %v2484
    %v2813 = vpack.c.b16 %v2493, %v2489
    %v2814 = vpack.c.b16 %v2494, %v2490
    %v2815 = vpack.c.b16 %v2495, %v2491
    %v2816 = vpack.c.b16 %v2496, %v2492
    %v2817 = vpack.c.b16 %v2501, %v2497
    %v2818 = vpack.c.b16 %v2502, %v2498
    %v2819 = vpack.c.b16 %v2503, %v2499
    %v2820 = vpack.c.b16 %v2504, %v2500
    %v2821 = vpack.c.b16 %v2509, %v2505
    %v2822 = vpack.c.b16 %v2510, %v2506
    %v2823 = vpack.c.b16 %v2511, %v2507
    %v2824 = vpack.c.b16 %v2512, %v2508
    %v2825 = vpack.c.b16 %v2517, %v2513
    %v2826 = vpack.c.b16 %v2518, %v2514
    %v2827 = vpack.c.b16 %v2519, %v2515
    %v2828 = vpack.c.b16 %v2520, %v2516
    %v2829 = vpack.c.b16 %v2525, %v2521
    %v2830 = vpack.c.b16 %v2526, %v2522
    %v2831 = vpack.c.b16 %v2527, %v2523
    %v2832 = vpack.c.b16 %v2528, %v2524
    %v2833 = vpack.c.b16 %v2533, %v2529
    %v2834 = vpack.c.b16 %v2534, %v2530
    %v2835 = vpack.c.b16 %v2535, %v2531
    %v2836 = vpack.c.b16 %v2536, %v2532
    %v2837 = vpack.c.b16 %v2541, %v2537
    %v2838 = vpack.c.b16 %v2542, %v2538
    %v2839 = vpack.c.b16 %v2543, %v2539
    %v2840 = vpack.c.b16 %v2544, %v2540
    %v2841 = vpack.c.b16 %v2549, %v2545
    %v2842 = vpack.c.b16 %v2550, %v2546
    %v2843 = vpack.c.b16 %v2551, %v2547
    %v2844 = vpack.c.b16 %v2552, %v2548
    %v2845 = vpack.c.b16 %v2557, %v2553
    %v2846 = vpack.c.b16 %v2558, %v2554
    %v2847 = vpack.c.b16 %v2559, %v2555
    %v2848 = vpack.c.b16 %v2560, %v2556
    %v2849 = vpack.c.b16 %v2565, %v2561
    %v2850 = vpack.c.b16 %v2566, %v2562
    %v2851 = vpack.c.b16 %v2567, %v2563
    %v2852 = vpack.c.b16 %v2568, %v2564
    %v2853 = vpack.c.b16 %v2573, %v2569
    %v2854 = vpack.c.b16 %v2574, %v2570
    %v2855 = vpack.c.b16 %v2575, %v2571
    %v2856 = vpack.c.b16 %v2576, %v2572
    %v2857 = vpack.c.b16 %v2581, %v2577
    %v2858 = vpack.c.b16 %v2582, %v2578
    %v2859 = vpack.c.b16 %v2583, %v2579
    %v2860 = vpack.c.b16 %v2584, %v2580
    %v2861 = vpack.c.b16 %v2589, %v2585
    %v2862 = vpack.c.b16 %v2590, %v2586
    %v2863 = vpack.c.b16 %v2591, %v2587
    %v2864 = vpack.c.b16 %v2592, %v2588
    %v2865 = vpack.c.b16 %v2597, %v2593
    %v2866 = vpack.c.b16 %v2598, %v2594
    %v2867 = vpack.c.b16 %v2599, %v2595
    %v2868 = vpack.c.b16 %v2600, %v2596
    %v2869 = vpack.c.b16 %v2605, %v2601
    %v2870 = vpack.c.b16 %v2606, %v2602
    %v2871 = vpack.c.b16 %v2607, %v2603
    %v2872 = vpack.c.b16 %v2608, %v2604
    %v2873 = vpack.c.b16 %v2613, %v2609
    %v2874 = vpack.c.b16 %v2614, %v2610
    %v2875 = vpack.c.b16 %v2615, %v2611
    %v2876 = vpack.c.b16 %v2616, %v2612
    %v2877 = vpack.c.b16 %v2621, %v2617
    %v2878 = vpack.c.b16 %v2622, %v2618
    %v2879 = vpack.c.b16 %v2623, %v2619
    %v2880 = vpack.c.b16 %v2624, %v2620
    %v2881 = vpack.c.b16 %v2629, %v2625
    %v2882 = vpack.c.b16 %v2630, %v2626
    %v2883 = vpack.c.b16 %v2631, %v2627
    %v2884 = vpack.c.b16 %v2632, %v2628
    %v2885 = vpack.c.b16 %v2637, %v2633
    %v2886 = vpack.c.b16 %v2638, %v2634
    %v2887 = vpack.c.b16 %v2639, %v2635
    %v2888 = vpack.c.b16 %v2640, %v2636
    %v2889 = vpack.c.b16 %v2645, %v2641
    %v2890 = vpack.c.b16 %v2646, %v2642
    %v2891 = vpack.c.b16 %v2647, %v2643
    %v2892 = vpack.c.b16 %v2648, %v2644
    %v2893 = vpack.c.b16 %v2653, %v2649
    %v2894 = vpack.c.b16 %v2654, %v2650
    %v2895 = vpack.c.b16 %v2655, %v2651
    %v2896 = vpack.c.b16 %v2656, %v2652
    %v2897 = vpack.c.b16 %v2661, %v2657
    %v2898 = vpack.c.b16 %v2662, %v2658
    %v2899 = vpack.c.b16 %v2663, %v2659
    %v2900 = vpack.c.b16 %v2664, %v2660
    %v2901 = vpack.c.b16 %v2669, %v2665
    %v2902 = vpack.c.b16 %v2670, %v2666
    %v2903 = vpack.c.b16 %v2671, %v2667
    %v2904 = vpack.c.b16 %v2672, %v2668
    %v2905 = vpack.c.b16 %v2677, %v2673
    %v2906 = vpack.c.b16 %v2678, %v2674
    %v2907 = vpack.c.b16 %v2679, %v2675
    %v2908 = vpack.c.b16 %v2680, %v2676
    %v2909 = vpack.c.b16 %v2685, %v2681
    %v2910 = vpack.c.b16 %v2686, %v2682
    %v2911 = vpack.c.b16 %v2687, %v2683
    %v2912 = vpack.c.b16 %v2688, %v2684
    %3137 = vmatpush.bf16.msra.mxu0 %v2717
    %3138 = vmatpush.bf16.msra.mxu0 %v2713
    %3139 = vmatpush.bf16.msra.mxu0 %v2709
    %3140 = vmatpush.bf16.msra.mxu0 %v2705
    %3141 = vmatpush.bf16.msra.mxu0 %v2701
    %3142 = vmatpush.bf16.msra.mxu0 %v2697
    %3143 = vmatpush.bf16.msra.mxu0 %v2693
    %3144 = vmatpush.bf16.msra.mxu0 %v2689
    %3145 = vmatmul.bf16.gmra.mxu0 %v1776
    %v3146 = vpop.f32.mrf.mxu0
    %v3147 = vadd.f32 %v2009, %v3146
    %v3148 = vpop.f32.mrf.mxu0
    %3149 = vdwg.mxu0
    %3150 = vmatpush.bf16.msra.mxu0 %v2749
    %3151 = vmatpush.bf16.msra.mxu0 %v2745
    %3152 = vmatpush.bf16.msra.mxu0 %v2741
    %3153 = vmatpush.bf16.msra.mxu0 %v2737
    %3154 = vmatpush.bf16.msra.mxu0 %v2733
    %3155 = vmatpush.bf16.msra.mxu0 %v2729
    %3156 = vmatpush.bf16.msra.mxu0 %v2725
    %3157 = vmatpush.bf16.msra.mxu0 %v2721
    %3158 = vmatmul.bf16.gmra.mxu0 %v1777
    %v3159 = vpop.f32.mrf.mxu0
    %v3160 = vadd.f32 %v3147, %v3159
    %v3161 = vpop.f32.mrf.mxu0
    %3162 = vdwg.mxu0
    %3163 = vmatpush.bf16.msra.mxu0 %v2781
    %3164 = vmatpush.bf16.msra.mxu0 %v2777
    %3165 = vmatpush.bf16.msra.mxu0 %v2773
    %3166 = vmatpush.bf16.msra.mxu0 %v2769
    %3167 = vmatpush.bf16.msra.mxu0 %v2765
    %3168 = vmatpush.bf16.msra.mxu0 %v2761
    %3169 = vmatpush.bf16.msra.mxu0 %v2757
    %3170 = vmatpush.bf16.msra.mxu0 %v2753
    %3171 = vmatmul.bf16.gmra.mxu0 %v1778
    %v3172 = vpop.f32.mrf.mxu0
    %v3173 = vadd.f32 %v3160, %v3172
    %v3174 = vpop.f32.mrf.mxu0
    %3175 = vdwg.mxu0
    %3176 = vmatpush.bf16.msra.mxu0 %v2813
    %3177 = vmatpush.bf16.msra.mxu0 %v2809
    %3178 = vmatpush.bf16.msra.mxu0 %v2805
    %3179 = vmatpush.bf16.msra.mxu0 %v2801
    %3180 = vmatpush.bf16.msra.mxu0 %v2797
    %3181 = vmatpush.bf16.msra.mxu0 %v2793
    %3182 = vmatpush.bf16.msra.mxu0 %v2789
    %3183 = vmatpush.bf16.msra.mxu0 %v2785
    %3184 = vmatmul.bf16.gmra.mxu0 %v1779
    %v3185 = vpop.f32.mrf.mxu0
    %v3186 = vadd.f32 %v3173, %v3185
    %v3187 = vpop.f32.mrf.mxu0
    %3188 = vdwg.mxu0
    %3189 = vmatpush.bf16.msra.mxu0 %v2845
    %3190 = vmatpush.bf16.msra.mxu0 %v2841
    %3191 = vmatpush.bf16.msra.mxu0 %v2837
    %3192 = vmatpush.bf16.msra.mxu0 %v2833
    %3193 = vmatpush.bf16.msra.mxu0 %v2829
    %3194 = vmatpush.bf16.msra.mxu0 %v2825
    %3195 = vmatpush.bf16.msra.mxu0 %v2821
    %3196 = vmatpush.bf16.msra.mxu0 %v2817
    %3197 = vmatmul.bf16.gmra.mxu0 %v1780
    %v3198 = vpop.f32.mrf.mxu0
    %v3199 = vadd.f32 %v3186, %v3198
    %v3200 = vpop.f32.mrf.mxu0
    %3201 = vdwg.mxu0
    %3202 = vmatpush.bf16.msra.mxu0 %v2877
    %3203 = vmatpush.bf16.msra.mxu0 %v2873
    %3204 = vmatpush.bf16.msra.mxu0 %v2869
    %3205 = vmatpush.bf16.msra.mxu0 %v2865
    %3206 = vmatpush.bf16.msra.mxu0 %v2861
    %3207 = vmatpush.bf16.msra.mxu0 %v2857
    %3208 = vmatpush.bf16.msra.mxu0 %v2853
    %3209 = vmatpush.bf16.msra.mxu0 %v2849
    %3210 = vmatmul.bf16.gmra.mxu0 %v1781
    %v3211 = vpop.f32.mrf.mxu0
    %v3212 = vadd.f32 %v3199, %v3211
    %v3213 = vpop.f32.mrf.mxu0
    %3214 = vdwg.mxu0
    %3215 = vmatpush.bf16.msra.mxu0 %v2909
    %3216 = vmatpush.bf16.msra.mxu0 %v2905
    %3217 = vmatpush.bf16.msra.mxu0 %v2901
    %3218 = vmatpush.bf16.msra.mxu0 %v2897
    %3219 = vmatpush.bf16.msra.mxu0 %v2893
    %3220 = vmatpush.bf16.msra.mxu0 %v2889
    %3221 = vmatpush.bf16.msra.mxu0 %v2885
    %3222 = vmatpush.bf16.msra.mxu0 %v2881
    %3223 = vmatmul.bf16.gmra.mxu0 %v1782
    %v3224 = vpop.f32.mrf.mxu0
    %v3225 = vadd.f32 %v3212, %v3224
    %v3226 = vpop.f32.mrf.mxu0
    %3227 = vdwg.mxu0
    %3228 = vmatpush.bf16.msra.mxu0 %v2718
    %3229 = vmatpush.bf16.msra.mxu0 %v2714
    %3230 = vmatpush.bf16.msra.mxu0 %v2710
    %3231 = vmatpush.bf16.msra.mxu0 %v2706
    %3232 = vmatpush.bf16.msra.mxu0 %v2702
    %3233 = vmatpush.bf16.msra.mxu0 %v2698
    %3234 = vmatpush.bf16.msra.mxu0 %v2694
    %3235 = vmatpush.bf16.msra.mxu0 %v2690
    %3236 = vmatmul.bf16.gmra.mxu0 %v1776
    %v3237 = vpop.f32.mrf.mxu0
    %v3238 = vadd.f32 %v2010, %v3237
    %v3239 = vpop.f32.mrf.mxu0
    %3240 = vdwg.mxu0
    %3241 = vmatpush.bf16.msra.mxu0 %v2750
    %3242 = vmatpush.bf16.msra.mxu0 %v2746
    %3243 = vmatpush.bf16.msra.mxu0 %v2742
    %3244 = vmatpush.bf16.msra.mxu0 %v2738
    %3245 = vmatpush.bf16.msra.mxu0 %v2734
    %3246 = vmatpush.bf16.msra.mxu0 %v2730
    %3247 = vmatpush.bf16.msra.mxu0 %v2726
    %3248 = vmatpush.bf16.msra.mxu0 %v2722
    %3249 = vmatmul.bf16.gmra.mxu0 %v1777
    %v3250 = vpop.f32.mrf.mxu0
    %v3251 = vadd.f32 %v3238, %v3250
    %v3252 = vpop.f32.mrf.mxu0
    %3253 = vdwg.mxu0
    %3254 = vmatpush.bf16.msra.mxu0 %v2782
    %3255 = vmatpush.bf16.msra.mxu0 %v2778
    %3256 = vmatpush.bf16.msra.mxu0 %v2774
    %3257 = vmatpush.bf16.msra.mxu0 %v2770
    %3258 = vmatpush.bf16.msra.mxu0 %v2766
    %3259 = vmatpush.bf16.msra.mxu0 %v2762
    %3260 = vmatpush.bf16.msra.mxu0 %v2758
    %3261 = vmatpush.bf16.msra.mxu0 %v2754
    %3262 = vmatmul.bf16.gmra.mxu0 %v1778
    %v3263 = vpop.f32.mrf.mxu0
    %v3264 = vadd.f32 %v3251, %v3263
    %v3265 = vpop.f32.mrf.mxu0
    %3266 = vdwg.mxu0
    %3267 = vmatpush.bf16.msra.mxu0 %v2814
    %3268 = vmatpush.bf16.msra.mxu0 %v2810
    %3269 = vmatpush.bf16.msra.mxu0 %v2806
    %3270 = vmatpush.bf16.msra.mxu0 %v2802
    %3271 = vmatpush.bf16.msra.mxu0 %v2798
    %3272 = vmatpush.bf16.msra.mxu0 %v2794
    %3273 = vmatpush.bf16.msra.mxu0 %v2790
    %3274 = vmatpush.bf16.msra.mxu0 %v2786
    %3275 = vmatmul.bf16.gmra.mxu0 %v1779
    %v3276 = vpop.f32.mrf.mxu0
    %v3277 = vadd.f32 %v3264, %v3276
    %v3278 = vpop.f32.mrf.mxu0
    %3279 = vdwg.mxu0
    %3280 = vmatpush.bf16.msra.mxu0 %v2846
    %3281 = vmatpush.bf16.msra.mxu0 %v2842
    %3282 = vmatpush.bf16.msra.mxu0 %v2838
    %3283 = vmatpush.bf16.msra.mxu0 %v2834
    %3284 = vmatpush.bf16.msra.mxu0 %v2830
    %3285 = vmatpush.bf16.msra.mxu0 %v2826
    %3286 = vmatpush.bf16.msra.mxu0 %v2822
    %3287 = vmatpush.bf16.msra.mxu0 %v2818
    %3288 = vmatmul.bf16.gmra.mxu0 %v1780
    %v3289 = vpop.f32.mrf.mxu0
    %v3290 = vadd.f32 %v3277, %v3289
    %v3291 = vpop.f32.mrf.mxu0
    %3292 = vdwg.mxu0
    %3293 = vmatpush.bf16.msra.mxu0 %v2878
    %3294 = vmatpush.bf16.msra.mxu0 %v2874
    %3295 = vmatpush.bf16.msra.mxu0 %v2870
    %3296 = vmatpush.bf16.msra.mxu0 %v2866
    %3297 = vmatpush.bf16.msra.mxu0 %v2862
    %3298 = vmatpush.bf16.msra.mxu0 %v2858
    %3299 = vmatpush.bf16.msra.mxu0 %v2854
    %3300 = vmatpush.bf16.msra.mxu0 %v2850
    %3301 = vmatmul.bf16.gmra.mxu0 %v1781
    %v3302 = vpop.f32.mrf.mxu0
    %v3303 = vadd.f32 %v3290, %v3302
    %v3304 = vpop.f32.mrf.mxu0
    %3305 = vdwg.mxu0
    %3306 = vmatpush.bf16.msra.mxu0 %v2910
    %3307 = vmatpush.bf16.msra.mxu0 %v2906
    %3308 = vmatpush.bf16.msra.mxu0 %v2902
    %3309 = vmatpush.bf16.msra.mxu0 %v2898
    %3310 = vmatpush.bf16.msra.mxu0 %v2894
    %3311 = vmatpush.bf16.msra.mxu0 %v2890
    %3312 = vmatpush.bf16.msra.mxu0 %v2886
    %3313 = vmatpush.bf16.msra.mxu0 %v2882
    %3314 = vmatmul.bf16.gmra.mxu0 %v1782
    %v3315 = vpop.f32.mrf.mxu0
    %v3316 = vadd.f32 %v3303, %v3315
    %v3317 = vpop.f32.mrf.mxu0
    %3318 = vdwg.mxu0
    %3319 = vmatpush.bf16.msra.mxu0 %v2719
    %3320 = vmatpush.bf16.msra.mxu0 %v2715
    %3321 = vmatpush.bf16.msra.mxu0 %v2711
    %3322 = vmatpush.bf16.msra.mxu0 %v2707
    %3323 = vmatpush.bf16.msra.mxu0 %v2703
    %3324 = vmatpush.bf16.msra.mxu0 %v2699
    %3325 = vmatpush.bf16.msra.mxu0 %v2695
    %3326 = vmatpush.bf16.msra.mxu0 %v2691
    %3327 = vmatmul.bf16.gmra.mxu0 %v1776
    %v3328 = vpop.f32.mrf.mxu0
    %v3329 = vadd.f32 %v2011, %v3328
    %v3330 = vpop.f32.mrf.mxu0
    %3331 = vdwg.mxu0
    %3332 = vmatpush.bf16.msra.mxu0 %v2751
    %3333 = vmatpush.bf16.msra.mxu0 %v2747
    %3334 = vmatpush.bf16.msra.mxu0 %v2743
    %3335 = vmatpush.bf16.msra.mxu0 %v2739
    %3336 = vmatpush.bf16.msra.mxu0 %v2735
    %3337 = vmatpush.bf16.msra.mxu0 %v2731
    %3338 = vmatpush.bf16.msra.mxu0 %v2727
    %3339 = vmatpush.bf16.msra.mxu0 %v2723
    %3340 = vmatmul.bf16.gmra.mxu0 %v1777
    %v3341 = vpop.f32.mrf.mxu0
    %v3342 = vadd.f32 %v3329, %v3341
    %v3343 = vpop.f32.mrf.mxu0
    %3344 = vdwg.mxu0
    %3345 = vmatpush.bf16.msra.mxu0 %v2783
    %3346 = vmatpush.bf16.msra.mxu0 %v2779
    %3347 = vmatpush.bf16.msra.mxu0 %v2775
    %3348 = vmatpush.bf16.msra.mxu0 %v2771
    %3349 = vmatpush.bf16.msra.mxu0 %v2767
    %3350 = vmatpush.bf16.msra.mxu0 %v2763
    %3351 = vmatpush.bf16.msra.mxu0 %v2759
    %3352 = vmatpush.bf16.msra.mxu0 %v2755
    %3353 = vmatmul.bf16.gmra.mxu0 %v1778
    %v3354 = vpop.f32.mrf.mxu0
    %v3355 = vadd.f32 %v3342, %v3354
    %v3356 = vpop.f32.mrf.mxu0
    %3357 = vdwg.mxu0
    %3358 = vmatpush.bf16.msra.mxu0 %v2815
    %3359 = vmatpush.bf16.msra.mxu0 %v2811
    %3360 = vmatpush.bf16.msra.mxu0 %v2807
    %3361 = vmatpush.bf16.msra.mxu0 %v2803
    %3362 = vmatpush.bf16.msra.mxu0 %v2799
    %3363 = vmatpush.bf16.msra.mxu0 %v2795
    %3364 = vmatpush.bf16.msra.mxu0 %v2791
    %3365 = vmatpush.bf16.msra.mxu0 %v2787
    %3366 = vmatmul.bf16.gmra.mxu0 %v1779
    %v3367 = vpop.f32.mrf.mxu0
    %v3368 = vadd.f32 %v3355, %v3367
    %v3369 = vpop.f32.mrf.mxu0
    %3370 = vdwg.mxu0
    %3371 = vmatpush.bf16.msra.mxu0 %v2847
    %3372 = vmatpush.bf16.msra.mxu0 %v2843
    %3373 = vmatpush.bf16.msra.mxu0 %v2839
    %3374 = vmatpush.bf16.msra.mxu0 %v2835
    %3375 = vmatpush.bf16.msra.mxu0 %v2831
    %3376 = vmatpush.bf16.msra.mxu0 %v2827
    %3377 = vmatpush.bf16.msra.mxu0 %v2823
    %3378 = vmatpush.bf16.msra.mxu0 %v2819
    %3379 = vmatmul.bf16.gmra.mxu0 %v1780
    %v3380 = vpop.f32.mrf.mxu0
    %v3381 = vadd.f32 %v3368, %v3380
    %v3382 = vpop.f32.mrf.mxu0
    %3383 = vdwg.mxu0
    %3384 = vmatpush.bf16.msra.mxu0 %v2879
    %3385 = vmatpush.bf16.msra.mxu0 %v2875
    %3386 = vmatpush.bf16.msra.mxu0 %v2871
    %3387 = vmatpush.bf16.msra.mxu0 %v2867
    %3388 = vmatpush.bf16.msra.mxu0 %v2863
    %3389 = vmatpush.bf16.msra.mxu0 %v2859
    %3390 = vmatpush.bf16.msra.mxu0 %v2855
    %3391 = vmatpush.bf16.msra.mxu0 %v2851
    %3392 = vmatmul.bf16.gmra.mxu0 %v1781
    %v3393 = vpop.f32.mrf.mxu0
    %v3394 = vadd.f32 %v3381, %v3393
    %v3395 = vpop.f32.mrf.mxu0
    %3396 = vdwg.mxu0
    %3397 = vmatpush.bf16.msra.mxu0 %v2911
    %3398 = vmatpush.bf16.msra.mxu0 %v2907
    %3399 = vmatpush.bf16.msra.mxu0 %v2903
    %3400 = vmatpush.bf16.msra.mxu0 %v2899
    %3401 = vmatpush.bf16.msra.mxu0 %v2895
    %3402 = vmatpush.bf16.msra.mxu0 %v2891
    %3403 = vmatpush.bf16.msra.mxu0 %v2887
    %3404 = vmatpush.bf16.msra.mxu0 %v2883
    %3405 = vmatmul.bf16.gmra.mxu0 %v1782
    %v3406 = vpop.f32.mrf.mxu0
    %v3407 = vadd.f32 %v3394, %v3406
    %v3408 = vpop.f32.mrf.mxu0
    %3409 = vdwg.mxu0
    %3410 = vmatpush.bf16.msra.mxu0 %v2720
    %3411 = vmatpush.bf16.msra.mxu0 %v2716
    %3412 = vmatpush.bf16.msra.mxu0 %v2712
    %3413 = vmatpush.bf16.msra.mxu0 %v2708
    %3414 = vmatpush.bf16.msra.mxu0 %v2704
    %3415 = vmatpush.bf16.msra.mxu0 %v2700
    %3416 = vmatpush.bf16.msra.mxu0 %v2696
    %3417 = vmatpush.bf16.msra.mxu0 %v2692
    %3418 = vmatmul.bf16.gmra.mxu0 %v1776
    %v3419 = vpop.f32.mrf.mxu0
    %v3420 = vadd.f32 %v2012, %v3419
    %v3421 = vpop.f32.mrf.mxu0
    %3422 = vdwg.mxu0
    %3423 = vmatpush.bf16.msra.mxu0 %v2752
    %3424 = vmatpush.bf16.msra.mxu0 %v2748
    %3425 = vmatpush.bf16.msra.mxu0 %v2744
    %3426 = vmatpush.bf16.msra.mxu0 %v2740
    %3427 = vmatpush.bf16.msra.mxu0 %v2736
    %3428 = vmatpush.bf16.msra.mxu0 %v2732
    %3429 = vmatpush.bf16.msra.mxu0 %v2728
    %3430 = vmatpush.bf16.msra.mxu0 %v2724
    %3431 = vmatmul.bf16.gmra.mxu0 %v1777
    %v3432 = vpop.f32.mrf.mxu0
    %v3433 = vadd.f32 %v3420, %v3432
    %v3434 = vpop.f32.mrf.mxu0
    %3435 = vdwg.mxu0
    %3436 = vmatpush.bf16.msra.mxu0 %v2784
    %3437 = vmatpush.bf16.msra.mxu0 %v2780
    %3438 = vmatpush.bf16.msra.mxu0 %v2776
    %3439 = vmatpush.bf16.msra.mxu0 %v2772
    %3440 = vmatpush.bf16.msra.mxu0 %v2768
    %3441 = vmatpush.bf16.msra.mxu0 %v2764
    %3442 = vmatpush.bf16.msra.mxu0 %v2760
    %3443 = vmatpush.bf16.msra.mxu0 %v2756
    %3444 = vmatmul.bf16.gmra.mxu0 %v1778
    %v3445 = vpop.f32.mrf.mxu0
    %v3446 = vadd.f32 %v3433, %v3445
    %v3447 = vpop.f32.mrf.mxu0
    %3448 = vdwg.mxu0
    %3449 = vmatpush.bf16.msra.mxu0 %v2816
    %3450 = vmatpush.bf16.msra.mxu0 %v2812
    %3451 = vmatpush.bf16.msra.mxu0 %v2808
    %3452 = vmatpush.bf16.msra.mxu0 %v2804
    %3453 = vmatpush.bf16.msra.mxu0 %v2800
    %3454 = vmatpush.bf16.msra.mxu0 %v2796
    %3455 = vmatpush.bf16.msra.mxu0 %v2792
    %3456 = vmatpush.bf16.msra.mxu0 %v2788
    %3457 = vmatmul.bf16.gmra.mxu0 %v1779
    %v3458 = vpop.f32.mrf.mxu0
    %v3459 = vadd.f32 %v3446, %v3458
    %v3460 = vpop.f32.mrf.mxu0
    %3461 = vdwg.mxu0
    %3462 = vmatpush.bf16.msra.mxu0 %v2848
    %3463 = vmatpush.bf16.msra.mxu0 %v2844
    %3464 = vmatpush.bf16.msra.mxu0 %v2840
    %3465 = vmatpush.bf16.msra.mxu0 %v2836
    %3466 = vmatpush.bf16.msra.mxu0 %v2832
    %3467 = vmatpush.bf16.msra.mxu0 %v2828
    %3468 = vmatpush.bf16.msra.mxu0 %v2824
    %3469 = vmatpush.bf16.msra.mxu0 %v2820
    %3470 = vmatmul.bf16.gmra.mxu0 %v1780
    %v3471 = vpop.f32.mrf.mxu0
    %v3472 = vadd.f32 %v3459, %v3471
    %v3473 = vpop.f32.mrf.mxu0
    %3474 = vdwg.mxu0
    %3475 = vmatpush.bf16.msra.mxu0 %v2880
    %3476 = vmatpush.bf16.msra.mxu0 %v2876
    %3477 = vmatpush.bf16.msra.mxu0 %v2872
    %3478 = vmatpush.bf16.msra.mxu0 %v2868
    %3479 = vmatpush.bf16.msra.mxu0 %v2864
    %3480 = vmatpush.bf16.msra.mxu0 %v2860
    %3481 = vmatpush.bf16.msra.mxu0 %v2856
    %3482 = vmatpush.bf16.msra.mxu0 %v2852
    %3483 = vmatmul.bf16.gmra.mxu0 %v1781
    %v3484 = vpop.f32.mrf.mxu0
    %v3485 = vadd.f32 %v3472, %v3484
    %v3486 = vpop.f32.mrf.mxu0
    %3487 = vdwg.mxu0
    %3488 = vmatpush.bf16.msra.mxu0 %v2912
    %3489 = vmatpush.bf16.msra.mxu0 %v2908
    %3490 = vmatpush.bf16.msra.mxu0 %v2904
    %3491 = vmatpush.bf16.msra.mxu0 %v2900
    %3492 = vmatpush.bf16.msra.mxu0 %v2896
    %3493 = vmatpush.bf16.msra.mxu0 %v2892
    %3494 = vmatpush.bf16.msra.mxu0 %v2888
    %3495 = vmatpush.bf16.msra.mxu0 %v2884
    %3496 = vmatmul.bf16.gmra.mxu0 %v1782
    %v3497 = vpop.f32.mrf.mxu0
    %v3498 = vadd.f32 %v3485, %v3497
    %v3499 = vpop.f32.mrf.mxu0
    %3500 = vdwg.mxu0
    %v3501 = vmax.f32 %v3225, 0.0
    %v3502 = vmax.f32 %v3316, 0.0
    %v3503 = vmax.f32 %v3407, 0.0
    %v3504 = vmax.f32 %v3498, 0.0
    %v3505 = vpack.c.bf16 %v3501, %v3501
    %v3506 = vpack.c.bf16 %v3502, %v3502
    %v3507 = vpack.c.bf16 %v3503, %v3503
    %v3508 = vpack.c.bf16 %v3504, %v3504
    %v3509 = vld [vmem:[#allocation5] sm:$0xf]
    %v3510 = vld [vmem:[#allocation5 + $0x4] sm:$0xf]
    %v3511 = vld [vmem:[#allocation5 + $0x8] sm:$0xf]
    %v3512 = vld [vmem:[#allocation5 + $0xc] sm:$0xf]
    %v3513 = vld [vmem:[#allocation5 + $0x10] sm:$0xf]
    %v3514 = vld [vmem:[#allocation5 + $0x14] sm:$0xf]
    %v3515 = vld [vmem:[#allocation5 + $0x18] sm:$0xf]
    %v3516 = vld [vmem:[#allocation5 + $0x1c] sm:$0xf]
    %v3517 = vld [vmem:[#allocation5 + $0x20] sm:$0xf]
    %v3518 = vld [vmem:[#allocation5 + $0x24] sm:$0xf]
    %v3519 = vld [vmem:[#allocation5 + $0x28] sm:$0xf]
    %v3520 = vld [vmem:[#allocation5 + $0x2c] sm:$0xf]
    %v3521 = vld [vmem:[#allocation5 + $0x30] sm:$0xf]
    %v3522 = vld [vmem:[#allocation5 + $0x34] sm:$0xf]
    %v3523 = vld [vmem:[#allocation5 + $0x38] sm:$0xf]
    %v3524 = vld [vmem:[#allocation5 + $0x3c] sm:$0xf]
    %v3525 = vld [vmem:[#allocation5 + $0x40] sm:$0xf]
    %v3526 = vld [vmem:[#allocation5 + $0x44] sm:$0xf]
    %v3527 = vld [vmem:[#allocation5 + $0x48] sm:$0xf]
    %v3528 = vld [vmem:[#allocation5 + $0x4c] sm:$0xf]
    %v3529 = vld [vmem:[#allocation5 + $0x50] sm:$0xf]
    %v3530 = vld [vmem:[#allocation5 + $0x54] sm:$0xf]
    %v3531 = vld [vmem:[#allocation5 + $0x58] sm:$0xf]
    %v3532 = vld [vmem:[#allocation5 + $0x5c] sm:$0xf]
    %v3533 = vld [vmem:[#allocation5 + $0x60] sm:$0xf]
    %v3534 = vld [vmem:[#allocation5 + $0x64] sm:$0xf]
    %v3535 = vld [vmem:[#allocation5 + $0x68] sm:$0xf]
    %v3536 = vld [vmem:[#allocation5 + $0x6c] sm:$0xf]
    %v3537 = vld [vmem:[#allocation5 + $0x70] sm:$0xf]
    %v3538 = vld [vmem:[#allocation5 + $0x74] sm:$0xf]
    %v3539 = vld [vmem:[#allocation5 + $0x78] sm:$0xf]
    %v3540 = vld [vmem:[#allocation5 + $0x7c] sm:$0xf]
    %v3541 = vld [vmem:[#allocation5 + $0x80] sm:$0xf]
    %v3542 = vld [vmem:[#allocation5 + $0x84] sm:$0xf]
    %v3543 = vld [vmem:[#allocation5 + $0x88] sm:$0xf]
    %v3544 = vld [vmem:[#allocation5 + $0x8c] sm:$0xf]
    %v3545 = vld [vmem:[#allocation5 + $0x90] sm:$0xf]
    %v3546 = vld [vmem:[#allocation5 + $0x94] sm:$0xf]
    %v3547 = vld [vmem:[#allocation5 + $0x98] sm:$0xf]
    %v3548 = vld [vmem:[#allocation5 + $0x9c] sm:$0xf]
    %v3549 = vld [vmem:[#allocation5 + $0xa0] sm:$0xf]
    %v3550 = vld [vmem:[#allocation5 + $0xa4] sm:$0xf]
    %v3551 = vld [vmem:[#allocation5 + $0xa8] sm:$0xf]
    %v3552 = vld [vmem:[#allocation5 + $0xac] sm:$0xf]
    %v3553 = vld [vmem:[#allocation5 + $0xb0] sm:$0xf]
    %v3554 = vld [vmem:[#allocation5 + $0xb4] sm:$0xf]
    %v3555 = vld [vmem:[#allocation5 + $0xb8] sm:$0xf]
    %v3556 = vld [vmem:[#allocation5 + $0xbc] sm:$0xf]
    %v3557 = vld [vmem:[#allocation5 + $0xc0] sm:$0xf]
    %v3558 = vld [vmem:[#allocation5 + $0xc4] sm:$0xf]
    %v3559 = vld [vmem:[#allocation5 + $0xc8] sm:$0xf]
    %v3560 = vld [vmem:[#allocation5 + $0xcc] sm:$0xf]
    %v3561 = vld [vmem:[#allocation5 + $0xd0] sm:$0xf]
    %v3562 = vld [vmem:[#allocation5 + $0xd4] sm:$0xf]
    %v3563 = vld [vmem:[#allocation5 + $0xd8] sm:$0xf]
    %v3564 = vld [vmem:[#allocation5 + $0xdc] sm:$0xf]
    %v3565 = vld [vmem:[#allocation5 + $0xe0] sm:$0xf]
    %v3566 = vld [vmem:[#allocation5 + $0xe4] sm:$0xf]
    %v3567 = vld [vmem:[#allocation5 + $0xe8] sm:$0xf]
    %v3568 = vld [vmem:[#allocation5 + $0xec] sm:$0xf]
    %v3569 = vld [vmem:[#allocation5 + $0xf0] sm:$0xf]
    %v3570 = vld [vmem:[#allocation5 + $0xf4] sm:$0xf]
    %v3571 = vld [vmem:[#allocation5 + $0xf8] sm:$0xf]
    %v3572 = vld [vmem:[#allocation5 + $0xfc] sm:$0xf]
    %v3573 = vld [vmem:[#allocation19] sm:$0x1]
    %v3575 = vperm.slane %v3573, 0
    %v3641 = vunpack.c.l.b16 %v3509
    %v3642 = vunpack.c.l.b16 %v3510
    %v3643 = vunpack.c.l.b16 %v3511
    %v3644 = vunpack.c.l.b16 %v3512
    %v3645 = vunpack.c.l.b16 %v3513
    %v3646 = vunpack.c.l.b16 %v3514
    %v3647 = vunpack.c.l.b16 %v3515
    %v3648 = vunpack.c.l.b16 %v3516
    %v3649 = vunpack.c.l.b16 %v3517
    %v3650 = vunpack.c.l.b16 %v3518
    %v3651 = vunpack.c.l.b16 %v3519
    %v3652 = vunpack.c.l.b16 %v3520
    %v3653 = vunpack.c.l.b16 %v3521
    %v3654 = vunpack.c.l.b16 %v3522
    %v3655 = vunpack.c.l.b16 %v3523
    %v3656 = vunpack.c.l.b16 %v3524
    %v3657 = vunpack.c.l.b16 %v3525
    %v3658 = vunpack.c.l.b16 %v3526
    %v3659 = vunpack.c.l.b16 %v3527
    %v3660 = vunpack.c.l.b16 %v3528
    %v3661 = vunpack.c.l.b16 %v3529
    %v3662 = vunpack.c.l.b16 %v3530
    %v3663 = vunpack.c.l.b16 %v3531
    %v3664 = vunpack.c.l.b16 %v3532
    %v3665 = vunpack.c.l.b16 %v3533
    %v3666 = vunpack.c.l.b16 %v3534
    %v3667 = vunpack.c.l.b16 %v3535
    %v3668 = vunpack.c.l.b16 %v3536
    %v3669 = vunpack.c.l.b16 %v3537
    %v3670 = vunpack.c.l.b16 %v3538
    %v3671 = vunpack.c.l.b16 %v3539
    %v3672 = vunpack.c.l.b16 %v3540
    %v3673 = vunpack.c.l.b16 %v3541
    %v3674 = vunpack.c.l.b16 %v3542
    %v3675 = vunpack.c.l.b16 %v3543
    %v3676 = vunpack.c.l.b16 %v3544
    %v3677 = vunpack.c.l.b16 %v3545
    %v3678 = vunpack.c.l.b16 %v3546
    %v3679 = vunpack.c.l.b16 %v3547
    %v3680 = vunpack.c.l.b16 %v3548
    %v3681 = vunpack.c.l.b16 %v3549
    %v3682 = vunpack.c.l.b16 %v3550
    %v3683 = vunpack.c.l.b16 %v3551
    %v3684 = vunpack.c.l.b16 %v3552
    %v3685 = vunpack.c.l.b16 %v3553
    %v3686 = vunpack.c.l.b16 %v3554
    %v3687 = vunpack.c.l.b16 %v3555
    %v3688 = vunpack.c.l.b16 %v3556
    %v3689 = vunpack.c.l.b16 %v3557
    %v3690 = vunpack.c.l.b16 %v3558
    %v3691 = vunpack.c.l.b16 %v3559
    %v3692 = vunpack.c.l.b16 %v3560
    %v3693 = vunpack.c.l.b16 %v3561
    %v3694 = vunpack.c.l.b16 %v3562
    %v3695 = vunpack.c.l.b16 %v3563
    %v3696 = vunpack.c.l.b16 %v3564
    %v3697 = vunpack.c.l.b16 %v3565
    %v3698 = vunpack.c.l.b16 %v3566
    %v3699 = vunpack.c.l.b16 %v3567
    %v3700 = vunpack.c.l.b16 %v3568
    %v3701 = vunpack.c.l.b16 %v3569
    %v3702 = vunpack.c.l.b16 %v3570
    %v3703 = vunpack.c.l.b16 %v3571
    %v3704 = vunpack.c.l.b16 %v3572
    %v3705 = vpack.c.b16 %v3642, %v3641
    %v3706 = vpack.c.b16 %v3644, %v3643
    %v3707 = vpack.c.b16 %v3646, %v3645
    %v3708 = vpack.c.b16 %v3648, %v3647
    %v3709 = vpack.c.b16 %v3650, %v3649
    %v3710 = vpack.c.b16 %v3652, %v3651
    %v3711 = vpack.c.b16 %v3654, %v3653
    %v3712 = vpack.c.b16 %v3656, %v3655
    %v3713 = vpack.c.b16 %v3658, %v3657
    %v3714 = vpack.c.b16 %v3660, %v3659
    %v3715 = vpack.c.b16 %v3662, %v3661
    %v3716 = vpack.c.b16 %v3664, %v3663
    %v3717 = vpack.c.b16 %v3666, %v3665
    %v3718 = vpack.c.b16 %v3668, %v3667
    %v3719 = vpack.c.b16 %v3670, %v3669
    %v3720 = vpack.c.b16 %v3672, %v3671
    %v3721 = vpack.c.b16 %v3674, %v3673
    %v3722 = vpack.c.b16 %v3676, %v3675
    %v3723 = vpack.c.b16 %v3678, %v3677
    %v3724 = vpack.c.b16 %v3680, %v3679
    %v3725 = vpack.c.b16 %v3682, %v3681
    %v3726 = vpack.c.b16 %v3684, %v3683
    %v3727 = vpack.c.b16 %v3686, %v3685
    %v3728 = vpack.c.b16 %v3688, %v3687
    %v3729 = vpack.c.b16 %v3690, %v3689
    %v3730 = vpack.c.b16 %v3692, %v3691
    %v3731 = vpack.c.b16 %v3694, %v3693
    %v3732 = vpack.c.b16 %v3696, %v3695
    %v3733 = vpack.c.b16 %v3698, %v3697
    %v3734 = vpack.c.b16 %v3700, %v3699
    %v3735 = vpack.c.b16 %v3702, %v3701
    %v3736 = vpack.c.b16 %v3704, %v3703
    %3769 = vmatpush.bf16.msra.mxu0 %v3712
    %3770 = vmatpush.bf16.msra.mxu0 %v3711
    %3771 = vmatpush.bf16.msra.mxu0 %v3710
    %3772 = vmatpush.bf16.msra.mxu0 %v3709
    %3773 = vmatpush.bf16.msra.mxu0 %v3708
    %3774 = vmatpush.bf16.msra.mxu0 %v3707
    %3775 = vmatpush.bf16.msra.mxu0 %v3706
    %3776 = vmatpush.bf16.msra.mxu0 %v3705
    %3777 = vmatmul.bf16.gmra.mxu0 %v3505
    %v3778 = vpop.f32.mrf.mxu0
    %v3779 = vadd.f32 %v3575, %v3778
    %v3780 = vpop.f32.mrf.mxu0
    %3781 = vdwg.mxu0
    %3782 = vmatpush.bf16.msra.mxu0 %v3720
    %3783 = vmatpush.bf16.msra.mxu0 %v3719
    %3784 = vmatpush.bf16.msra.mxu0 %v3718
    %3785 = vmatpush.bf16.msra.mxu0 %v3717
    %3786 = vmatpush.bf16.msra.mxu0 %v3716
    %3787 = vmatpush.bf16.msra.mxu0 %v3715
    %3788 = vmatpush.bf16.msra.mxu0 %v3714
    %3789 = vmatpush.bf16.msra.mxu0 %v3713
    %3790 = vmatmul.bf16.gmra.mxu0 %v3506
    %v3791 = vpop.f32.mrf.mxu0
    %v3792 = vadd.f32 %v3779, %v3791
    %v3793 = vpop.f32.mrf.mxu0
    %3794 = vdwg.mxu0
    %3795 = vmatpush.bf16.msra.mxu0 %v3728
    %3796 = vmatpush.bf16.msra.mxu0 %v3727
    %3797 = vmatpush.bf16.msra.mxu0 %v3726
    %3798 = vmatpush.bf16.msra.mxu0 %v3725
    %3799 = vmatpush.bf16.msra.mxu0 %v3724
    %3800 = vmatpush.bf16.msra.mxu0 %v3723
    %3801 = vmatpush.bf16.msra.mxu0 %v3722
    %3802 = vmatpush.bf16.msra.mxu0 %v3721
    %3803 = vmatmul.bf16.gmra.mxu0 %v3507
    %v3804 = vpop.f32.mrf.mxu0
    %v3805 = vadd.f32 %v3792, %v3804
    %v3806 = vpop.f32.mrf.mxu0
    %3807 = vdwg.mxu0
    %3808 = vmatpush.bf16.msra.mxu0 %v3736
    %3809 = vmatpush.bf16.msra.mxu0 %v3735
    %3810 = vmatpush.bf16.msra.mxu0 %v3734
    %3811 = vmatpush.bf16.msra.mxu0 %v3733
    %3812 = vmatpush.bf16.msra.mxu0 %v3732
    %3813 = vmatpush.bf16.msra.mxu0 %v3731
    %3814 = vmatpush.bf16.msra.mxu0 %v3730
    %3815 = vmatpush.bf16.msra.mxu0 %v3729
    %3816 = vmatmul.bf16.gmra.mxu0 %v3508
    %v3817 = vpop.f32.mrf.mxu0
    %v3818 = vadd.f32 %v3805, %v3817
    %v3819 = vpop.f32.mrf.mxu0
    %3820 = vdwg.mxu0
    %3821 = vst [vmem:[#allocation21] sm:$0x3] %v3818
    // Predicated region
    $region94: #{net_forward.1} parent=1 // pred_check
      _
    $region95: #{net_forward.1} parent=1 // pred_check_branch
      %3823 = sbr.rel (0) target = $region97
    $region96: #{net_forward.1} parent=1 // pred_region
      %3825 = vsyncadd [#allocation9], 0
      %s3827 = sshll.u32 [#allocation21], 4
      %s3828 = int_to_ptr.vmem [resolvable:$true] %s3827
      %s3829 = sshll.u32 %s15, 4
      %s3830 = int_to_ptr.hbm [resolvable:$true] %s3829
      %3832 = dma.vmem_to_hbm [thread:$0]  %s3828, 32, %s3830, [#allocation9]
    $region97: #{net_forward.1} parent=1 // pred_fallthru
      _
    // Predicated region
    $region98: #{net_forward.1} parent=1 // pred_check
      _
    $region99: #{net_forward.1} parent=1 // pred_check_branch
      %3834 = sbr.rel (0) target = $region101
    $region100: #{net_forward.1} parent=1 // pred_region
      %3836 = dma.done [#allocation9], 32
    $region101: #{net_forward.1} parent=1 // pred_fallthru
      _
    %3837 = vsyncpa [#allocation8], 1
    %3838 = vsyncpa [#allocation11], 1
    %3839 = vsyncpa [#allocation14], 1
    %3840 = vsyncpa [#allocation17], 1
    %3841 = vsyncpa [#allocation20], 1
    %3842 = vsyncpa [#allocation9], 1
  %3843 = vsyncmov [#allocation6]
  %s3844 = vpop.sfrf %3843
  %p3845 = scmp.eq.s32.totalorder %s3844, 0
  %p3846 = pneg %p3845
  %3848 = shalt.err (%p3846)
  %s3849 = scalar_lea.sflag [#allocation6], 1
  %3850 = vsyncmov %s3849
  %s3851 = vpop.sfrf %3850
  %p3852 = scmp.eq.s32.totalorder %s3851, 0
  %p3853 = pneg %p3852
  %3855 = shalt.err (%p3853)
  %s3856 = scalar_lea.sflag [#allocation6], 2
  %3857 = vsyncmov %s3856
  %s3858 = vpop.sfrf %3857
  %p3859 = scmp.eq.s32.totalorder %s3858, 0
  %p3860 = pneg %p3859
  %3862 = shalt.err (%p3860)

</llo_original>
